<compile_context>
chip_gen: v5e
topology: v5e:2x2
jax: 0.10.0
libtpu: 0.0.40
codegen_flags: <defaults>
</compile_context>

<pallas_src>
import functools
import math

import jax
import jax.numpy as jnp
from jax.experimental import pallas as pl
from jax.experimental.pallas import tpu as pltpu  # noqa: F401  (TPU backend)

HIDDEN = 256          # hidden_nodes in the torch module
EMBEDDING_DIM = 32    # stands in for os.getenv('EMBEDDING_DIM')
RATIO = 0.8           # SAGPooling ratio


# ----------------------------- Pallas kernels -----------------------------

def _full_spec(shape):
    # Single whole-array block (grid = ()), so no (8,128) divisibility issue.
    # TODO(synk): dense N x N adjacency with whole-array blocks assumes small graphs;
    # tile A over a grid (or go sparse) before scaling N into the thousands.
    return pl.BlockSpec(shape, lambda: (0,) * len(shape))


def _fused_layer_kernel(a_ref, x_ref, w_ref, b_ref, wrel_ref, wroot_ref, brel_ref,
                        gated_ref, score_ref, *, axw_first):
    """Fused GCNConv + SAGPooling score + gating for one layer.

    Computes  h = A_hat @ X @ W + b   with  A_hat = D^-1/2 (A + I) D^-1/2,
              s = tanh( A @ (h @ w_rel) + b_rel + h @ w_root )   (GraphConv(H,1)),
    and emits gated = h * s (what SAGPooling multiplies into x) plus s broadcast
    to 128 lanes (lane-dense store; column 0 is the score).
    """
    f32 = jnp.float32
    bf16 = jnp.bfloat16
    a = a_ref[...]                      # raw 0/1 adjacency (block-diagonal batch)
    x = x_ref[...]
    w_bf = w_ref[...].astype(bf16)
    a_bf = a.astype(bf16)               # 0/1 -> exact in bf16

    # GCN normalization, applied as row scalings around the raw-A matmul:
    #   A_hat @ Y = dinv * ( A @ (dinv * Y) + dinv * Y ),   dinv = (deg(A)+1)^-1/2
    deg = jnp.sum(a, axis=1, keepdims=True) + 1.0           # (+1 for the self loop)
    dinv = jax.lax.rsqrt(deg)                               # (n, 1), deg >= 1

    if axw_first:
        # F_in < F_out (conv1: 32 -> 256): contract A against the narrow X first.
        xs = x * dinv
        z = jnp.dot(a_bf, xs.astype(bf16), preferred_element_type=f32) + xs
        h = jnp.dot((z * dinv).astype(bf16), w_bf, preferred_element_type=f32) + b_ref[...]
    else:
        # Square layers (256 -> 256): standard A_hat @ (X @ W).
        y = jnp.dot(x.astype(bf16), w_bf, preferred_element_type=f32)
        ys = y * dinv
        h = dinv * (jnp.dot(a_bf, ys.astype(bf16), preferred_element_type=f32) + ys) \
            + b_ref[...]

    # SAGPooling score: GraphConv(H, 1) with the rank-1 rewrite (A@h)@w == A@(h@w).
    # h @ w_rel / h @ w_root as VPU lane reductions (no 1-lane-wide MXU results).
    v = jnp.sum(h * wrel_ref[...], axis=-1, keepdims=True)      # (n, 1)
    root = jnp.sum(h * wroot_ref[...], axis=-1, keepdims=True)  # (n, 1)
    raw = jnp.dot(a, v, preferred_element_type=f32) + brel_ref[...] + root
    s = jnp.tanh(raw)                                           # (n, 1)

    gated_ref[...] = h * s                                      # x * tanh(score)
    score_ref[...] = jnp.broadcast_to(s, score_ref.shape)       # lane-dense store


def fused_gcn_sag_layer(a, x, w, b, pool, *, axw_first):
    n = a.shape[0]
    hidden = w.shape[1]
    kernel = functools.partial(_fused_layer_kernel, axw_first=axw_first)
    gated, score128 = pl.pallas_call(
        kernel,
        out_shape=(jax.ShapeDtypeStruct((n, hidden), jnp.float32),
                   jax.ShapeDtypeStruct((n, 128), jnp.float32)),
        in_specs=[_full_spec(a.shape), _full_spec(x.shape), _full_spec(w.shape),
                  _full_spec((1, hidden)), _full_spec((1, hidden)),
                  _full_spec((1, hidden)), _full_spec((1, 1))],
        out_specs=(_full_spec((n, hidden)), _full_spec((n, 128))),
    )(a, x, w, b.reshape(1, hidden),
      pool['w_rel'].reshape(1, hidden), pool['w_root'].reshape(1, hidden),
      pool['b_rel'].reshape(1, 1))
    return gated, score128[:, 0]


def _mlp_kernel(v_ref, w1_ref, b1_ref, w2_ref, b2_ref, w3_ref, b3_ref, o_ref):
    # fc1 -> fc2 -> fc3 fused; intermediates stay in VMEM/vregs.
    # TODO(synk): dropout(p=0.5) between layers is identity in eval mode.
    f32 = jnp.float32
    h = jnp.dot(v_ref[...], w1_ref[...], preferred_element_type=f32) + b1_ref[...]
    h = jnp.dot(h, w2_ref[...], preferred_element_type=f32) + b2_ref[...]
    h = jnp.dot(h, w3_ref[...], preferred_element_type=f32) + b3_ref[...]
    o_ref[...] = jnp.broadcast_to(h, o_ref.shape)               # lane-dense store


def mlp_head(v, params):
    g = v.shape[0]
    out128 = pl.pallas_call(
        _mlp_kernel,
        out_shape=jax.ShapeDtypeStruct((g, 128), jnp.float32),
        in_specs=[_full_spec(v.shape),
                  _full_spec(params['fc1_w'].shape), _full_spec((1, HIDDEN)),
                  _full_spec(params['fc2_w'].shape), _full_spec((1, 64)),
                  _full_spec(params['fc3_w'].shape), _full_spec((1, 1))],
        out_specs=_full_spec((g, 128)),
    )(v, params['fc1_w'], params['fc1_b'].reshape(1, HIDDEN),
      params['fc2_w'], params['fc2_b'].reshape(1, 64),
      params['fc3_w'], params['fc3_b'].reshape(1, 1))
    return out128[:, 0]


# ------------------------------- JAX glue ---------------------------------

def _topk_perm(score, num_graphs, n_per_graph, ratio=RATIO):
    # SAGPooling top-k: k = ceil(ratio * n) per graph, equal contiguous graphs.
    # TODO(synk): tie-breaking can differ from torch.topk on exactly equal scores.
    k = int(math.ceil(ratio * n_per_graph))
    sc = score.reshape(num_graphs, n_per_graph)
    _, local = jax.lax.top_k(sc, k)                              # descending
    perm = (local + jnp.arange(num_graphs)[:, None] * n_per_graph).reshape(-1)
    return perm, k


@functools.partial(jax.jit, static_argnames=("n_q", "n_r", "num_graphs"))
def sag_forward(params, x_q, a_q, x_r, a_r, *, n_q, n_r, num_graphs):
    # Query and reference branches share weights -> run them as ONE block-diagonal
    # batch through the fused layer kernels (halves kernel launches, fills the MXU).
    nq0, nr0 = x_q.shape[0], x_r.shape[0]
    x = jnp.concatenate([x_q, x_r], axis=0)
    a = jnp.zeros((nq0 + nr0, nq0 + nr0), jnp.float32)
    a = a.at[:nq0, :nq0].set(a_q).at[nq0:, nq0:].set(a_r)

    nq, nr = n_q, n_r
    outs_q, outs_r = [], []
    for wk, bk in (('conv1_w', 'conv1_b'), ('conv2_w', 'conv2_b'), ('conv3_w', 'conv3_b')):
        w = params[wk]
        axw_first = w.shape[0] < w.shape[1]          # conv1: (A@X)@W is cheaper
        # NOTE: the torch forward reuses self.pool1 after every conv.
        gated, score = fused_gcn_sag_layer(a, x, w, params[bk], params['pool1'],
                                           axw_first=axw_first)

        # Per-graph top-k + gather (data-dependent) stays in plain JAX.
        nq_tot = num_graphs * nq
        perm_q, kq = _topk_perm(score[:nq_tot], num_graphs, nq)
        perm_r, kr = _topk_perm(score[nq_tot:], num_graphs, nr)
        perm = jnp.concatenate([perm_q, perm_r + nq_tot])
        x = gated[perm]                              # gating already applied in-kernel
        a = a[perm][:, perm]
        nq, nr = kq, kr

        # global_mean_pool: contiguous equal-sized graphs -> reshape + mean.
        nq_new = num_graphs * kq
        outs_q.append(x[:nq_new].reshape(num_graphs, kq, -1).mean(axis=1))
        outs_r.append(x[nq_new:].reshape(num_graphs, kr, -1).mean(axis=1))

    feat = jnp.concatenate(outs_q + outs_r, axis=1)  # (G, 6 * HIDDEN)
    return mlp_head(feat, params)                    # (G,)  == .squeeze(1)


# ---------------------------- params & inputs -----------------------------

def init_params(key):
    def dense(k, fan_in, fan_out):
        return jax.random.normal(k, (fan_in, fan_out), jnp.float32) / jnp.sqrt(fan_in)

    keys = jax.random.split(key, 8)
    return {
        'conv1_w': dense(keys[0], EMBEDDING_DIM, HIDDEN),
        'conv1_b': jnp.zeros((HIDDEN,), jnp.float32),
        'conv2_w': dense(keys[1], HIDDEN, HIDDEN),
        'conv2_b': jnp.zeros((HIDDEN,), jnp.float32),
        'conv3_w': dense(keys[2], HIDDEN, HIDDEN),
        'conv3_b': jnp.zeros((HIDDEN,), jnp.float32),
        'pool1': {                          # SAGPooling's GraphConv(HIDDEN, 1)
            'w_rel': dense(keys[3], HIDDEN, 1),
            'b_rel': jnp.zeros((1,), jnp.float32),
            'w_root': dense(keys[4], HIDDEN, 1),
        },
        # pool2/pool3 and the SoftmaxAggregation readouts exist in __init__ but
        # are never used in forward -> not instantiated here.
        'fc1_w': dense(keys[5], HIDDEN * 6, HIDDEN),
        'fc1_b': jnp.zeros((HIDDEN,), jnp.float32),
        'fc2_w': dense(keys[6], HIDDEN, 64),
        'fc2_b': jnp.zeros((64,), jnp.float32),
        'fc3_w': dense(keys[7], 64, 1),
        'fc3_b': jnp.zeros((1,), jnp.float32),
    }


def ring_adjacency(num_graphs, n_per_graph):
    # block-diagonal batch of ring graphs plus one chord per graph (undirected)
    n_total = num_graphs * n_per_graph
    rows, cols = [], []
    for g in range(num_graphs):
        off = g * n_per_graph
        for i in range(n_per_graph):
            j = (i + 1) % n_per_graph
            rows += [off + i, off + j]
            cols += [off + j, off + i]
        rows += [off + 0, off + n_per_graph // 2]
        cols += [off + n_per_graph // 2, off + 0]
    a = jnp.zeros((n_total, n_total), jnp.float32)
    return a.at[jnp.array(rows), jnp.array(cols)].set(1.0)


if __name__ == "__main__":
    key = jax.random.PRNGKey(0)
    kp, kq, kr = jax.random.split(key, 3)
    params = init_params(kp)

    num_graphs = 2          # batch of 2 graphs per side (equal sizes per batch)
    n_q, n_r = 10, 12       # nodes per graph in the query / reference batches
    x_q = jax.random.normal(kq, (num_graphs * n_q, EMBEDDING_DIM), jnp.float32)
    x_r = jax.random.normal(kr, (num_graphs * n_r, EMBEDDING_DIM), jnp.float32)
    a_q = ring_adjacency(num_graphs, n_q)
    a_r = ring_adjacency(num_graphs, n_r)

    out = sag_forward(params, x_q, a_q, x_r, a_r,
                      n_q=n_q, n_r=n_r, num_graphs=num_graphs)
    out = jax.block_until_ready(out)
    assert out.shape == (num_graphs,) and out.dtype == jnp.float32
    print("KERNEL_OK")
</pallas_src>

<mosaic_0001>
module attributes {stable_mosaic.version = 11 : i64} {
  func.func @_fused_layer_kernel(%arg0: memref<44x44xf32, #tpu.memory_space<vmem>>, %arg1: memref<44x32xf32, #tpu.memory_space<vmem>>, %arg2: memref<32x256xf32, #tpu.memory_space<vmem>>, %arg3: memref<1x256xf32, #tpu.memory_space<vmem>>, %arg4: memref<1x256xf32, #tpu.memory_space<vmem>>, %arg5: memref<1x256xf32, #tpu.memory_space<vmem>>, %arg6: memref<1x1xf32, #tpu.memory_space<vmem>>, %arg7: memref<44x256xf32, #tpu.memory_space<vmem>>, %arg8: memref<44x128xf32, #tpu.memory_space<vmem>>) attributes {dimension_semantics = [], scalar_prefetch = 0 : i64, scratch_operands = 0 : i64, tpu.core_type = #tpu.core_type<tc>} {
    %c0 = arith.constant 0 : index
    %c0_0 = arith.constant 0 : index
    %0 = vector.load %arg0[%c0, %c0_0] : memref<44x44xf32, #tpu.memory_space<vmem>>, vector<44x44xf32>
    %c0_1 = arith.constant 0 : index
    %c0_2 = arith.constant 0 : index
    %1 = vector.load %arg1[%c0_1, %c0_2] : memref<44x32xf32, #tpu.memory_space<vmem>>, vector<44x32xf32>
    %c0_3 = arith.constant 0 : index
    %c0_4 = arith.constant 0 : index
    %2 = vector.load %arg2[%c0_3, %c0_4] : memref<32x256xf32, #tpu.memory_space<vmem>>, vector<32x256xf32>
    %3 = arith.truncf %2 : vector<32x256xf32> to vector<32x256xbf16>
    %4 = arith.truncf %0 : vector<44x44xf32> to vector<44x44xbf16>
    %cst = arith.constant dense<0.000000e+00> : vector<44xf32>
    %5 = vector.multi_reduction <add>, %0, %cst [1] : vector<44x44xf32> to vector<44xf32>
    %6 = vector.shape_cast %5 : vector<44xf32> to vector<44x1xf32>
    %cst_5 = arith.constant 1.000000e+00 : f32
    %7 = vector.broadcast %cst_5 : f32 to vector<44x1xf32>
    %8 = arith.addf %6, %7 : vector<44x1xf32>
    %9 = math.rsqrt %8 : vector<44x1xf32>
    %10 = vector.broadcast %9 : vector<44x1xf32> to vector<44x32xf32>
    %11 = arith.mulf %1, %10 : vector<44x32xf32>
    %12 = arith.truncf %11 : vector<44x32xf32> to vector<44x32xbf16>
    %cst_6 = arith.constant dense<0.000000e+00> : vector<44x32xf32>
    %13 = tpu.matmul %4, %12, %cst_6 {dimension_numbers = #tpu.dot_dimension_numbers<[1], [0], [0], [1], [0, 0, 1, 1], [], []>} : vector<44x44xbf16>, vector<44x32xbf16>, vector<44x32xf32> -> vector<44x32xf32>
    %14 = arith.addf %13, %11 : vector<44x32xf32>
    %15 = vector.broadcast %9 : vector<44x1xf32> to vector<44x32xf32>
    %16 = arith.mulf %14, %15 : vector<44x32xf32>
    %17 = arith.truncf %16 : vector<44x32xf32> to vector<44x32xbf16>
    %cst_7 = arith.constant dense<0.000000e+00> : vector<44x256xf32>
    %18 = tpu.matmul %17, %3, %cst_7 {dimension_numbers = #tpu.dot_dimension_numbers<[1], [0], [0], [1], [0, 0, 1, 1], [], []>} : vector<44x32xbf16>, vector<32x256xbf16>, vector<44x256xf32> -> vector<44x256xf32>
    %c0_8 = arith.constant 0 : index
    %c0_9 = arith.constant 0 : index
    %19 = vector.load %arg3[%c0_8, %c0_9] : memref<1x256xf32, #tpu.memory_space<vmem>>, vector<1x256xf32>
    %20 = vector.broadcast %19 : vector<1x256xf32> to vector<44x256xf32>
    %21 = arith.addf %18, %20 : vector<44x256xf32>
    %c0_10 = arith.constant 0 : index
    %c0_11 = arith.constant 0 : index
    %22 = vector.load %arg4[%c0_10, %c0_11] : memref<1x256xf32, #tpu.memory_space<vmem>>, vector<1x256xf32>
    %23 = vector.broadcast %22 : vector<1x256xf32> to vector<44x256xf32>
    %24 = arith.mulf %21, %23 : vector<44x256xf32>
    %cst_12 = arith.constant dense<0.000000e+00> : vector<44xf32>
    %25 = vector.multi_reduction <add>, %24, %cst_12 [1] : vector<44x256xf32> to vector<44xf32>
    %26 = vector.shape_cast %25 : vector<44xf32> to vector<44x1xf32>
    %c0_13 = arith.constant 0 : index
    %c0_14 = arith.constant 0 : index
    %27 = vector.load %arg5[%c0_13, %c0_14] : memref<1x256xf32, #tpu.memory_space<vmem>>, vector<1x256xf32>
    %28 = vector.broadcast %27 : vector<1x256xf32> to vector<44x256xf32>
    %29 = arith.mulf %21, %28 : vector<44x256xf32>
    %cst_15 = arith.constant dense<0.000000e+00> : vector<44xf32>
    %30 = vector.multi_reduction <add>, %29, %cst_15 [1] : vector<44x256xf32> to vector<44xf32>
    %31 = vector.shape_cast %30 : vector<44xf32> to vector<44x1xf32>
    %cst_16 = arith.constant dense<0.000000e+00> : vector<44x1xf32>
    %32 = tpu.matmul %0, %26, %cst_16 {dimension_numbers = #tpu.dot_dimension_numbers<[1], [0], [0], [1], [0, 0, 1, 1], [], []>} : vector<44x44xf32>, vector<44x1xf32>, vector<44x1xf32> -> vector<44x1xf32>
    %c0_17 = arith.constant 0 : index
    %c0_18 = arith.constant 0 : index
    %33 = vector.load %arg6[%c0_17, %c0_18] : memref<1x1xf32, #tpu.memory_space<vmem>>, vector<1x1xf32>
    %34 = vector.broadcast %33 : vector<1x1xf32> to vector<44x1xf32>
    %35 = arith.addf %32, %34 : vector<44x1xf32>
    %36 = arith.addf %35, %31 : vector<44x1xf32>
    %37 = math.tanh %36 : vector<44x1xf32>
    %38 = vector.broadcast %37 : vector<44x1xf32> to vector<44x256xf32>
    %39 = arith.mulf %21, %38 : vector<44x256xf32>
    %c0_19 = arith.constant 0 : index
    %c0_20 = arith.constant 0 : index
    %40 = vector.load %arg7[%c0_19, %c0_20] : memref<44x256xf32, #tpu.memory_space<vmem>>, vector<44x256xf32>
    tpu.vector_store %arg7[%c0_19, %c0_20], %39 {strides = array<i32>} : memref<44x256xf32, #tpu.memory_space<vmem>>, vector<44x256xf32>,
    %41 = vector.shape_cast %37 : vector<44x1xf32> to vector<44x1xf32>
    %42 = vector.broadcast %41 : vector<44x1xf32> to vector<44x128xf32>
    %c0_21 = arith.constant 0 : index
    %c0_22 = arith.constant 0 : index
    %43 = vector.load %arg8[%c0_21, %c0_22] : memref<44x128xf32, #tpu.memory_space<vmem>>, vector<44x128xf32>
    tpu.vector_store %arg8[%c0_21, %c0_22], %42 {strides = array<i32>} : memref<44x128xf32, #tpu.memory_space<vmem>>, vector<44x128xf32>,
    return
  }
}

module attributes {stable_mosaic.version = 11 : i64} {
  func.func @_fused_layer_kernel(%arg0: memref<36x36xf32, #tpu.memory_space<vmem>>, %arg1: memref<36x256xf32, #tpu.memory_space<vmem>>, %arg2: memref<256x256xf32, #tpu.memory_space<vmem>>, %arg3: memref<1x256xf32, #tpu.memory_space<vmem>>, %arg4: memref<1x256xf32, #tpu.memory_space<vmem>>, %arg5: memref<1x256xf32, #tpu.memory_space<vmem>>, %arg6: memref<1x1xf32, #tpu.memory_space<vmem>>, %arg7: memref<36x256xf32, #tpu.memory_space<vmem>>, %arg8: memref<36x128xf32, #tpu.memory_space<vmem>>) attributes {dimension_semantics = [], scalar_prefetch = 0 : i64, scratch_operands = 0 : i64, tpu.core_type = #tpu.core_type<tc>} {
    %c0 = arith.constant 0 : index
    %c0_0 = arith.constant 0 : index
    %0 = vector.load %arg0[%c0, %c0_0] : memref<36x36xf32, #tpu.memory_space<vmem>>, vector<36x36xf32>
    %c0_1 = arith.constant 0 : index
    %c0_2 = arith.constant 0 : index
    %1 = vector.load %arg1[%c0_1, %c0_2] : memref<36x256xf32, #tpu.memory_space<vmem>>, vector<36x256xf32>
    %c0_3 = arith.constant 0 : index
    %c0_4 = arith.constant 0 : index
    %2 = vector.load %arg2[%c0_3, %c0_4] : memref<256x256xf32, #tpu.memory_space<vmem>>, vector<256x256xf32>
    %3 = arith.truncf %2 : vector<256x256xf32> to vector<256x256xbf16>
    %4 = arith.truncf %0 : vector<36x36xf32> to vector<36x36xbf16>
    %cst = arith.constant dense<0.000000e+00> : vector<36xf32>
    %5 = vector.multi_reduction <add>, %0, %cst [1] : vector<36x36xf32> to vector<36xf32>
    %6 = vector.shape_cast %5 : vector<36xf32> to vector<36x1xf32>
    %cst_5 = arith.constant 1.000000e+00 : f32
    %7 = vector.broadcast %cst_5 : f32 to vector<36x1xf32>
    %8 = arith.addf %6, %7 : vector<36x1xf32>
    %9 = math.rsqrt %8 : vector<36x1xf32>
    %10 = arith.truncf %1 : vector<36x256xf32> to vector<36x256xbf16>
    %cst_6 = arith.constant dense<0.000000e+00> : vector<36x256xf32>
    %11 = tpu.matmul %10, %3, %cst_6 {dimension_numbers = #tpu.dot_dimension_numbers<[1], [0], [0], [1], [0, 0, 1, 1], [], []>} : vector<36x256xbf16>, vector<256x256xbf16>, vector<36x256xf32> -> vector<36x256xf32>
    %12 = vector.broadcast %9 : vector<36x1xf32> to vector<36x256xf32>
    %13 = arith.mulf %11, %12 : vector<36x256xf32>
    %14 = arith.truncf %13 : vector<36x256xf32> to vector<36x256xbf16>
    %cst_7 = arith.constant dense<0.000000e+00> : vector<36x256xf32>
    %15 = tpu.matmul %4, %14, %cst_7 {dimension_numbers = #tpu.dot_dimension_numbers<[1], [0], [0], [1], [0, 0, 1, 1], [], []>} : vector<36x36xbf16>, vector<36x256xbf16>, vector<36x256xf32> -> vector<36x256xf32>
    %16 = arith.addf %15, %13 : vector<36x256xf32>
    %17 = vector.broadcast %9 : vector<36x1xf32> to vector<36x256xf32>
    %18 = arith.mulf %17, %16 : vector<36x256xf32>
    %c0_8 = arith.constant 0 : index
    %c0_9 = arith.constant 0 : index
    %19 = vector.load %arg3[%c0_8, %c0_9] : memref<1x256xf32, #tpu.memory_space<vmem>>, vector<1x256xf32>
    %20 = vector.broadcast %19 : vector<1x256xf32> to vector<36x256xf32>
    %21 = arith.addf %18, %20 : vector<36x256xf32>
    %c0_10 = arith.constant 0 : index
    %c0_11 = arith.constant 0 : index
    %22 = vector.load %arg4[%c0_10, %c0_11] : memref<1x256xf32, #tpu.memory_space<vmem>>, vector<1x256xf32>
    %23 = vector.broadcast %22 : vector<1x256xf32> to vector<36x256xf32>
    %24 = arith.mulf %21, %23 : vector<36x256xf32>
    %cst_12 = arith.constant dense<0.000000e+00> : vector<36xf32>
    %25 = vector.multi_reduction <add>, %24, %cst_12 [1] : vector<36x256xf32> to vector<36xf32>
    %26 = vector.shape_cast %25 : vector<36xf32> to vector<36x1xf32>
    %c0_13 = arith.constant 0 : index
    %c0_14 = arith.constant 0 : index
    %27 = vector.load %arg5[%c0_13, %c0_14] : memref<1x256xf32, #tpu.memory_space<vmem>>, vector<1x256xf32>
    %28 = vector.broadcast %27 : vector<1x256xf32> to vector<36x256xf32>
    %29 = arith.mulf %21, %28 : vector<36x256xf32>
    %cst_15 = arith.constant dense<0.000000e+00> : vector<36xf32>
    %30 = vector.multi_reduction <add>, %29, %cst_15 [1] : vector<36x256xf32> to vector<36xf32>
    %31 = vector.shape_cast %30 : vector<36xf32> to vector<36x1xf32>
    %cst_16 = arith.constant dense<0.000000e+00> : vector<36x1xf32>
    %32 = tpu.matmul %0, %26, %cst_16 {dimension_numbers = #tpu.dot_dimension_numbers<[1], [0], [0], [1], [0, 0, 1, 1], [], []>} : vector<36x36xf32>, vector<36x1xf32>, vector<36x1xf32> -> vector<36x1xf32>
    %c0_17 = arith.constant 0 : index
    %c0_18 = arith.constant 0 : index
    %33 = vector.load %arg6[%c0_17, %c0_18] : memref<1x1xf32, #tpu.memory_space<vmem>>, vector<1x1xf32>
    %34 = vector.broadcast %33 : vector<1x1xf32> to vector<36x1xf32>
    %35 = arith.addf %32, %34 : vector<36x1xf32>
    %36 = arith.addf %35, %31 : vector<36x1xf32>
    %37 = math.tanh %36 : vector<36x1xf32>
    %38 = vector.broadcast %37 : vector<36x1xf32> to vector<36x256xf32>
    %39 = arith.mulf %21, %38 : vector<36x256xf32>
    %c0_19 = arith.constant 0 : index
    %c0_20 = arith.constant 0 : index
    %40 = vector.load %arg7[%c0_19, %c0_20] : memref<36x256xf32, #tpu.memory_space<vmem>>, vector<36x256xf32>
    tpu.vector_store %arg7[%c0_19, %c0_20], %39 {strides = array<i32>} : memref<36x256xf32, #tpu.memory_space<vmem>>, vector<36x256xf32>,
    %41 = vector.shape_cast %37 : vector<36x1xf32> to vector<36x1xf32>
    %42 = vector.broadcast %41 : vector<36x1xf32> to vector<36x128xf32>
    %c0_21 = arith.constant 0 : index
    %c0_22 = arith.constant 0 : index
    %43 = vector.load %arg8[%c0_21, %c0_22] : memref<36x128xf32, #tpu.memory_space<vmem>>, vector<36x128xf32>
    tpu.vector_store %arg8[%c0_21, %c0_22], %42 {strides = array<i32>} : memref<36x128xf32, #tpu.memory_space<vmem>>, vector<36x128xf32>,
    return
  }
}

module attributes {stable_mosaic.version = 11 : i64} {
  func.func @_fused_layer_kernel(%arg0: memref<30x30xf32, #tpu.memory_space<vmem>>, %arg1: memref<30x256xf32, #tpu.memory_space<vmem>>, %arg2: memref<256x256xf32, #tpu.memory_space<vmem>>, %arg3: memref<1x256xf32, #tpu.memory_space<vmem>>, %arg4: memref<1x256xf32, #tpu.memory_space<vmem>>, %arg5: memref<1x256xf32, #tpu.memory_space<vmem>>, %arg6: memref<1x1xf32, #tpu.memory_space<vmem>>, %arg7: memref<30x256xf32, #tpu.memory_space<vmem>>, %arg8: memref<30x128xf32, #tpu.memory_space<vmem>>) attributes {dimension_semantics = [], scalar_prefetch = 0 : i64, scratch_operands = 0 : i64, tpu.core_type = #tpu.core_type<tc>} {
    %c0 = arith.constant 0 : index
    %c0_0 = arith.constant 0 : index
    %0 = vector.load %arg0[%c0, %c0_0] : memref<30x30xf32, #tpu.memory_space<vmem>>, vector<30x30xf32>
    %c0_1 = arith.constant 0 : index
    %c0_2 = arith.constant 0 : index
    %1 = vector.load %arg1[%c0_1, %c0_2] : memref<30x256xf32, #tpu.memory_space<vmem>>, vector<30x256xf32>
    %c0_3 = arith.constant 0 : index
    %c0_4 = arith.constant 0 : index
    %2 = vector.load %arg2[%c0_3, %c0_4] : memref<256x256xf32, #tpu.memory_space<vmem>>, vector<256x256xf32>
    %3 = arith.truncf %2 : vector<256x256xf32> to vector<256x256xbf16>
    %4 = arith.truncf %0 : vector<30x30xf32> to vector<30x30xbf16>
    %cst = arith.constant dense<0.000000e+00> : vector<30xf32>
    %5 = vector.multi_reduction <add>, %0, %cst [1] : vector<30x30xf32> to vector<30xf32>
    %6 = vector.shape_cast %5 : vector<30xf32> to vector<30x1xf32>
    %cst_5 = arith.constant 1.000000e+00 : f32
    %7 = vector.broadcast %cst_5 : f32 to vector<30x1xf32>
    %8 = arith.addf %6, %7 : vector<30x1xf32>
    %9 = math.rsqrt %8 : vector<30x1xf32>
    %10 = arith.truncf %1 : vector<30x256xf32> to vector<30x256xbf16>
    %cst_6 = arith.constant dense<0.000000e+00> : vector<30x256xf32>
    %11 = tpu.matmul %10, %3, %cst_6 {dimension_numbers = #tpu.dot_dimension_numbers<[1], [0], [0], [1], [0, 0, 1, 1], [], []>} : vector<30x256xbf16>, vector<256x256xbf16>, vector<30x256xf32> -> vector<30x256xf32>
    %12 = vector.broadcast %9 : vector<30x1xf32> to vector<30x256xf32>
    %13 = arith.mulf %11, %12 : vector<30x256xf32>
    %14 = arith.truncf %13 : vector<30x256xf32> to vector<30x256xbf16>
    %cst_7 = arith.constant dense<0.000000e+00> : vector<30x256xf32>
    %15 = tpu.matmul %4, %14, %cst_7 {dimension_numbers = #tpu.dot_dimension_numbers<[1], [0], [0], [1], [0, 0, 1, 1], [], []>} : vector<30x30xbf16>, vector<30x256xbf16>, vector<30x256xf32> -> vector<30x256xf32>
    %16 = arith.addf %15, %13 : vector<30x256xf32>
    %17 = vector.broadcast %9 : vector<30x1xf32> to vector<30x256xf32>
    %18 = arith.mulf %17, %16 : vector<30x256xf32>
    %c0_8 = arith.constant 0 : index
    %c0_9 = arith.constant 0 : index
    %19 = vector.load %arg3[%c0_8, %c0_9] : memref<1x256xf32, #tpu.memory_space<vmem>>, vector<1x256xf32>
    %20 = vector.broadcast %19 : vector<1x256xf32> to vector<30x256xf32>
    %21 = arith.addf %18, %20 : vector<30x256xf32>
    %c0_10 = arith.constant 0 : index
    %c0_11 = arith.constant 0 : index
    %22 = vector.load %arg4[%c0_10, %c0_11] : memref<1x256xf32, #tpu.memory_space<vmem>>, vector<1x256xf32>
    %23 = vector.broadcast %22 : vector<1x256xf32> to vector<30x256xf32>
    %24 = arith.mulf %21, %23 : vector<30x256xf32>
    %cst_12 = arith.constant dense<0.000000e+00> : vector<30xf32>
    %25 = vector.multi_reduction <add>, %24, %cst_12 [1] : vector<30x256xf32> to vector<30xf32>
    %26 = vector.shape_cast %25 : vector<30xf32> to vector<30x1xf32>
    %c0_13 = arith.constant 0 : index
    %c0_14 = arith.constant 0 : index
    %27 = vector.load %arg5[%c0_13, %c0_14] : memref<1x256xf32, #tpu.memory_space<vmem>>, vector<1x256xf32>
    %28 = vector.broadcast %27 : vector<1x256xf32> to vector<30x256xf32>
    %29 = arith.mulf %21, %28 : vector<30x256xf32>
    %cst_15 = arith.constant dense<0.000000e+00> : vector<30xf32>
    %30 = vector.multi_reduction <add>, %29, %cst_15 [1] : vector<30x256xf32> to vector<30xf32>
    %31 = vector.shape_cast %30 : vector<30xf32> to vector<30x1xf32>
    %cst_16 = arith.constant dense<0.000000e+00> : vector<30x1xf32>
    %32 = tpu.matmul %0, %26, %cst_16 {dimension_numbers = #tpu.dot_dimension_numbers<[1], [0], [0], [1], [0, 0, 1, 1], [], []>} : vector<30x30xf32>, vector<30x1xf32>, vector<30x1xf32> -> vector<30x1xf32>
    %c0_17 = arith.constant 0 : index
    %c0_18 = arith.constant 0 : index
    %33 = vector.load %arg6[%c0_17, %c0_18] : memref<1x1xf32, #tpu.memory_space<vmem>>, vector<1x1xf32>
    %34 = vector.broadcast %33 : vector<1x1xf32> to vector<30x1xf32>
    %35 = arith.addf %32, %34 : vector<30x1xf32>
    %36 = arith.addf %35, %31 : vector<30x1xf32>
    %37 = math.tanh %36 : vector<30x1xf32>
    %38 = vector.broadcast %37 : vector<30x1xf32> to vector<30x256xf32>
    %39 = arith.mulf %21, %38 : vector<30x256xf32>
    %c0_19 = arith.constant 0 : index
    %c0_20 = arith.constant 0 : index
    %40 = vector.load %arg7[%c0_19, %c0_20] : memref<30x256xf32, #tpu.memory_space<vmem>>, vector<30x256xf32>
    tpu.vector_store %arg7[%c0_19, %c0_20], %39 {strides = array<i32>} : memref<30x256xf32, #tpu.memory_space<vmem>>, vector<30x256xf32>,
    %41 = vector.shape_cast %37 : vector<30x1xf32> to vector<30x1xf32>
    %42 = vector.broadcast %41 : vector<30x1xf32> to vector<30x128xf32>
    %c0_21 = arith.constant 0 : index
    %c0_22 = arith.constant 0 : index
    %43 = vector.load %arg8[%c0_21, %c0_22] : memref<30x128xf32, #tpu.memory_space<vmem>>, vector<30x128xf32>
    tpu.vector_store %arg8[%c0_21, %c0_22], %42 {strides = array<i32>} : memref<30x128xf32, #tpu.memory_space<vmem>>, vector<30x128xf32>,
    return
  }
}

module attributes {stable_mosaic.version = 11 : i64} {
  func.func @_mlp_kernel(%arg0: memref<2x1536xf32, #tpu.memory_space<vmem>>, %arg1: memref<1536x256xf32, #tpu.memory_space<vmem>>, %arg2: memref<1x256xf32, #tpu.memory_space<vmem>>, %arg3: memref<256x64xf32, #tpu.memory_space<vmem>>, %arg4: memref<1x64xf32, #tpu.memory_space<vmem>>, %arg5: memref<64x1xf32, #tpu.memory_space<vmem>>, %arg6: memref<1x1xf32, #tpu.memory_space<vmem>>, %arg7: memref<2x128xf32, #tpu.memory_space<vmem>>) attributes {dimension_semantics = [], scalar_prefetch = 0 : i64, scratch_operands = 0 : i64, tpu.core_type = #tpu.core_type<tc>} {
    %c0 = arith.constant 0 : index
    %c0_0 = arith.constant 0 : index
    %0 = vector.load %arg0[%c0, %c0_0] : memref<2x1536xf32, #tpu.memory_space<vmem>>, vector<2x1536xf32>
    %c0_1 = arith.constant 0 : index
    %c0_2 = arith.constant 0 : index
    %1 = vector.load %arg1[%c0_1, %c0_2] : memref<1536x256xf32, #tpu.memory_space<vmem>>, vector<1536x256xf32>
    %cst = arith.constant dense<0.000000e+00> : vector<2x256xf32>
    %2 = tpu.matmul %0, %1, %cst {dimension_numbers = #tpu.dot_dimension_numbers<[1], [0], [0], [1], [0, 0, 1, 1], [], []>} : vector<2x1536xf32>, vector<1536x256xf32>, vector<2x256xf32> -> vector<2x256xf32>
    %c0_3 = arith.constant 0 : index
    %c0_4 = arith.constant 0 : index
    %3 = vector.load %arg2[%c0_3, %c0_4] : memref<1x256xf32, #tpu.memory_space<vmem>>, vector<1x256xf32>
    %4 = vector.broadcast %3 : vector<1x256xf32> to vector<2x256xf32>
    %5 = arith.addf %2, %4 : vector<2x256xf32>
    %c0_5 = arith.constant 0 : index
    %c0_6 = arith.constant 0 : index
    %6 = vector.load %arg3[%c0_5, %c0_6] : memref<256x64xf32, #tpu.memory_space<vmem>>, vector<256x64xf32>
    %cst_7 = arith.constant dense<0.000000e+00> : vector<2x64xf32>
    %7 = tpu.matmul %5, %6, %cst_7 {dimension_numbers = #tpu.dot_dimension_numbers<[1], [0], [0], [1], [0, 0, 1, 1], [], []>} : vector<2x256xf32>, vector<256x64xf32>, vector<2x64xf32> -> vector<2x64xf32>
    %c0_8 = arith.constant 0 : index
    %c0_9 = arith.constant 0 : index
    %8 = vector.load %arg4[%c0_8, %c0_9] : memref<1x64xf32, #tpu.memory_space<vmem>>, vector<1x64xf32>
    %9 = vector.broadcast %8 : vector<1x64xf32> to vector<2x64xf32>
    %10 = arith.addf %7, %9 : vector<2x64xf32>
    %c0_10 = arith.constant 0 : index
    %c0_11 = arith.constant 0 : index
    %11 = vector.load %arg5[%c0_10, %c0_11] : memref<64x1xf32, #tpu.memory_space<vmem>>, vector<64x1xf32>
    %cst_12 = arith.constant dense<0.000000e+00> : vector<2x1xf32>
    %12 = tpu.matmul %10, %11, %cst_12 {dimension_numbers = #tpu.dot_dimension_numbers<[1], [0], [0], [1], [0, 0, 1, 1], [], []>} : vector<2x64xf32>, vector<64x1xf32>, vector<2x1xf32> -> vector<2x1xf32>
    %c0_13 = arith.constant 0 : index
    %c0_14 = arith.constant 0 : index
    %13 = vector.load %arg6[%c0_13, %c0_14] : memref<1x1xf32, #tpu.memory_space<vmem>>, vector<1x1xf32>
    %14 = vector.broadcast %13 : vector<1x1xf32> to vector<2x1xf32>
    %15 = arith.addf %12, %14 : vector<2x1xf32>
    %16 = vector.shape_cast %15 : vector<2x1xf32> to vector<2x1xf32>
    %17 = vector.broadcast %16 : vector<2x1xf32> to vector<2x128xf32>
    %c0_15 = arith.constant 0 : index
    %c0_16 = arith.constant 0 : index
    %18 = vector.load %arg7[%c0_15, %c0_16] : memref<2x128xf32, #tpu.memory_space<vmem>>, vector<2x128xf32>
    tpu.vector_store %arg7[%c0_15, %c0_16], %17 {strides = array<i32>} : memref<2x128xf32, #tpu.memory_space<vmem>>, vector<2x128xf32>,
    return
  }
}

</mosaic_0001>

<llo_original>
// kernel: sag_forward.4
$region0: #{sag_forward.4}
  #allocation0 [shape = 'u32[]', space=smem, size = 0x4, offset = 0x4, fixed_abs, tag = 'smem constant byte address 0x4 - core index']
  #allocation1 [shape = 'u32[72,128]{1,0:T(1,128)}', space=vmem, size = 0x9000, scoped, tag = 'internal scratch']
  #allocation2 [shape = 'f32[1,1]{1,0:T(1,128)S(1)}', space=vmem, size = 0x200, scoped, tag = 'scoped memory for sag_forward.4']
  %s0 = inlined_call_operand.vmem [shape: f32[44,44], index: 0, kind: input, shape index: {}]
  %s1 = inlined_call_operand.vmem [shape: f32[44,32], index: 1, kind: input, shape index: {}]
  %s2 = inlined_call_operand.hbm [shape: f32[32,256], index: 2, kind: input, shape index: {}]
  %s3 = inlined_call_operand.hbm [shape: f32[1,256], index: 3, kind: input, shape index: {}]
  %s4 = inlined_call_operand.hbm [shape: f32[1,256], index: 4, kind: input, shape index: {}]
  %s5 = inlined_call_operand.hbm [shape: f32[1,256], index: 5, kind: input, shape index: {}]
  %s6 = inlined_call_operand.<no memory space> [shape: f32[1,1], index: 6, kind: input, shape index: {}]
  %s7 = inlined_call_operand.vmem [shape: f32[44,256], index: 7, kind: output, shape index: {0}]
  %s8 = inlined_call_operand.vmem [shape: f32[44,128], index: 8, kind: output, shape index: {1}]
  %9 = xla_tuple %s7, %s8
  %s10 = sld [smem:[#allocation0]]
  $region62: #{sag_forward.4} parent=0
    _
  %s12 = ssub.s32 1, %s10
  %s13 = scalar_select 0, %s12, %s10
  %v14 = vstv %s6
  %15 = vst [vmem:[#allocation2] sm:$0x1] %v14
  $region1: #{sag_forward.4} parent=0
    #allocation3 [shape = 'u8[32768]{0}', space=vmem, size = 0x8000, scoped, tag = 'input window, operand 2, single buffered']
    #allocation4 [shape = 's32[1]{0}', space=sflag, size = 0x4, scoped, tag = 'scoped memory for sag_forward.4']
    #allocation5 [shape = 'u8[1024]{0}', space=vmem, size = 0x400, scoped, tag = 'input window, operand 3, single buffered']
    #allocation6 [shape = 's32[1]{0}', space=sflag, size = 0x4, scoped, tag = 'scoped memory for sag_forward.4']
    #allocation7 [shape = 'u8[1024]{0}', space=vmem, size = 0x400, scoped, tag = 'input window, operand 4, single buffered']
    #allocation8 [shape = 'u8[1024]{0}', space=vmem, size = 0x400, scoped, tag = 'input window, operand 5, single buffered']
    #allocation9 [shape = 's32[1]{0}', space=sflag, size = 0x4, scoped, tag = 'scoped memory for sag_forward.4']
    %16 = vsyncpa [#allocation4], 0
    %17 = vsyncpa [#allocation6], 0
    %18 = vsyncpa [#allocation9], 0
    // Predicated region
    $region2: #{sag_forward.4} parent=1 // pred_check
      _
    $region3: #{sag_forward.4} parent=1 // pred_check_branch
      %20 = sbr.rel (0) target = $region5
    $region4: #{sag_forward.4} parent=1 // pred_region
      _
    $region5: #{sag_forward.4} parent=1 // pred_fallthru
      _
    // Predicated region
    $region6: #{sag_forward.4} parent=1 // pred_check
      _
    $region7: #{sag_forward.4} parent=1 // pred_check_branch
      %22 = sbr.rel (0) target = $region9
    $region8: #{sag_forward.4} parent=1 // pred_region
      _
    $region9: #{sag_forward.4} parent=1 // pred_fallthru
      _
    // Predicated region
    $region10: #{sag_forward.4} parent=1 // pred_check
      _
    $region11: #{sag_forward.4} parent=1 // pred_check_branch
      %24 = sbr.rel (0) target = $region13
    $region12: #{sag_forward.4} parent=1 // pred_region
      %26 = vsyncadd [#allocation4], 0
      %s27 = sshll.u32 %s2, 4
      %s28 = int_to_ptr.hbm [resolvable:$true] %s27
      %s29 = sshll.u32 [#allocation3], 4
      %s30 = int_to_ptr.vmem [resolvable:$true] %s29
      %35 = dma.hbm_to_vmem [thread:$0]  %s28, 1024, %s30, [#allocation4], 256, 256, 16
    $region13: #{sag_forward.4} parent=1 // pred_fallthru
      _
    // Predicated region
    $region14: #{sag_forward.4} parent=1 // pred_check
      _
    $region15: #{sag_forward.4} parent=1 // pred_check_branch
      %37 = sbr.rel (0) target = $region17
    $region16: #{sag_forward.4} parent=1 // pred_region
      %39 = vsyncadd [#allocation6], 0
      %s41 = sshll.u32 %s3, 4
      %s42 = int_to_ptr.hbm [resolvable:$true] %s41
      %s43 = sshll.u32 [#allocation5], 4
      %s44 = int_to_ptr.vmem [resolvable:$true] %s43
      %46 = dma.hbm_to_vmem [thread:$0]  %s42, 32, %s44, [#allocation6]
    $region17: #{sag_forward.4} parent=1 // pred_fallthru
      _
    // Predicated region
    $region18: #{sag_forward.4} parent=1 // pred_check
      _
    $region19: #{sag_forward.4} parent=1 // pred_check_branch
      %48 = sbr.rel (0) target = $region21
    $region20: #{sag_forward.4} parent=1 // pred_region
      %50 = vsyncadd [#allocation6], 0
      %s52 = sshll.u32 %s4, 4
      %s53 = int_to_ptr.hbm [resolvable:$true] %s52
      %s54 = sshll.u32 [#allocation7], 4
      %s55 = int_to_ptr.vmem [resolvable:$true] %s54
      %57 = dma.hbm_to_vmem [thread:$0]  %s53, 32, %s55, [#allocation6]
    $region21: #{sag_forward.4} parent=1 // pred_fallthru
      _
    // Predicated region
    $region22: #{sag_forward.4} parent=1 // pred_check
      _
    $region23: #{sag_forward.4} parent=1 // pred_check_branch
      %59 = sbr.rel (0) target = $region25
    $region24: #{sag_forward.4} parent=1 // pred_region
      %61 = vsyncadd [#allocation9], 0
      %s63 = sshll.u32 %s5, 4
      %s64 = int_to_ptr.hbm [resolvable:$true] %s63
      %s65 = sshll.u32 [#allocation8], 4
      %s66 = int_to_ptr.vmem [resolvable:$true] %s65
      %68 = dma.hbm_to_vmem [thread:$0]  %s64, 32, %s66, [#allocation9]
    $region25: #{sag_forward.4} parent=1 // pred_fallthru
      _
    // Predicated region
    $region26: #{sag_forward.4} parent=1 // pred_check
      _
    $region27: #{sag_forward.4} parent=1 // pred_check_branch
      %70 = sbr.rel (0) target = $region29
    $region28: #{sag_forward.4} parent=1 // pred_region
      _
    $region29: #{sag_forward.4} parent=1 // pred_fallthru
      _
    // Predicated region
    $region30: #{sag_forward.4} parent=1 // pred_check
      _
    $region31: #{sag_forward.4} parent=1 // pred_check_branch
      %72 = sbr.rel (0) target = $region33
    $region32: #{sag_forward.4} parent=1 // pred_region
      %74 = dma.done [#allocation4], 1024
    $region33: #{sag_forward.4} parent=1 // pred_fallthru
      _
    // Predicated region
    $region34: #{sag_forward.4} parent=1 // pred_check
      _
    $region35: #{sag_forward.4} parent=1 // pred_check_branch
      %76 = sbr.rel (0) target = $region37
    $region36: #{sag_forward.4} parent=1 // pred_region
      %78 = dma.done [#allocation6], 32
    $region37: #{sag_forward.4} parent=1 // pred_fallthru
      _
    // Predicated region
    $region38: #{sag_forward.4} parent=1 // pred_check
      _
    $region39: #{sag_forward.4} parent=1 // pred_check_branch
      %80 = sbr.rel (0) target = $region41
    $region40: #{sag_forward.4} parent=1 // pred_region
      %82 = dma.done [#allocation6], 32
    $region41: #{sag_forward.4} parent=1 // pred_fallthru
      _
    // Predicated region
    $region42: #{sag_forward.4} parent=1 // pred_check
      _
    $region43: #{sag_forward.4} parent=1 // pred_check_branch
      %84 = sbr.rel (0) target = $region45
    $region44: #{sag_forward.4} parent=1 // pred_region
      %86 = dma.done [#allocation9], 32
    $region45: #{sag_forward.4} parent=1 // pred_fallthru
      _
    %v88 = vld [vmem:[%s0] sm:$0xff]
    %v89 = vld [vmem:[%s0 + $0x8] sm:$0xff]
    %v90 = vld [vmem:[%s0 + $0x10] sm:$0xff]
    %v91 = vld [vmem:[%s0 + $0x18] sm:$0xff]
    %v92 = vld [vmem:[%s0 + $0x20] sm:$0xff]
    %v93 = vld [vmem:[%s0 + $0x28] sm:$0xf]
    %v94 = vld [vmem:[%s1] sm:$0xff]
    %v95 = vld [vmem:[%s1 + $0x8] sm:$0xff]
    %v96 = vld [vmem:[%s1 + $0x10] sm:$0xff]
    %v97 = vld [vmem:[%s1 + $0x18] sm:$0xff]
    %v98 = vld [vmem:[%s1 + $0x20] sm:$0xff]
    %v99 = vld [vmem:[%s1 + $0x28] sm:$0xf]
    %v100 = vld [vmem:[#allocation3] sm:$0xff]
    %v101 = vld [vmem:[#allocation3 + $0x8] sm:$0xff]
    %v102 = vld [vmem:[#allocation3 + $0x10] sm:$0xff]
    %v103 = vld [vmem:[#allocation3 + $0x18] sm:$0xff]
    %v104 = vld [vmem:[#allocation3 + $0x20] sm:$0xff]
    %v105 = vld [vmem:[#allocation3 + $0x28] sm:$0xff]
    %v106 = vld [vmem:[#allocation3 + $0x30] sm:$0xff]
    %v107 = vld [vmem:[#allocation3 + $0x38] sm:$0xff]
    %v108 = vpack.c.bf16 %v102, %v100
    %v109 = vpack.c.bf16 %v103, %v101
    %v110 = vpack.c.bf16 %v106, %v104
    %v111 = vpack.c.bf16 %v107, %v105
    %v112 = vpack.c.bf16 %v89, %v88
    %v113 = vpack.c.bf16 %v91, %v90
    %v114 = vpack.c.bf16 %v93, %v92
    %vm115 = vcmask 359424
    %v116 = vsel %vm115, %v88, 0.0
    %117 = vadd.xlane.f32.xlu0 %v116
    %v118 = vpop.xlane.xlu0 %117
    %v119 = vsel %vm115, %v89, 0.0
    %120 = vadd.xlane.f32.xlu0 %v119
    %v121 = vpop.xlane.xlu0 %120
    %v122 = vsel %vm115, %v90, 0.0
    %123 = vadd.xlane.f32.xlu0 %v122
    %v124 = vpop.xlane.xlu0 %123
    %v125 = vsel %vm115, %v91, 0.0
    %126 = vadd.xlane.f32.xlu0 %v125
    %v127 = vpop.xlane.xlu0 %126
    %v128 = vsel %vm115, %v92, 0.0
    %129 = vadd.xlane.f32.xlu0 %v128
    %v130 = vpop.xlane.xlu0 %129
    %vm131 = vcmask 355328
    %v132 = vsel %vm131, %v93, 0.0
    %133 = vadd.xlane.f32.xlu0 %v132
    %v134 = vpop.xlane.xlu0 %133
    %v135 = vadd.f32 %v118, 1.0
    %v136 = vadd.f32 %v121, 1.0
    %v137 = vadd.f32 %v124, 1.0
    %v138 = vadd.f32 %v127, 1.0
    %v139 = vadd.f32 %v130, 1.0
    %v140 = vadd.f32 %v134, 1.0
    %v141 = vrsqrt.pop %v135
    %v142 = vmul.f32 %v141, %v135
    %v143 = vmul.f32 %v142, %v141
    %v144 = vmul.f32 0.5, %v143
    %v145 = vsub.f32 1.5, %v144
    %v146 = vmul.f32 %v141, %v145
    %vm147 = vweird.f32 %v135
    %vm148 = vweird.f32 %v141
    %vm149 = vmor %vm147, %vm148
    %v150 = vsel %vm149, %v141, %v146
    %v151 = vrsqrt.pop %v136
    %v152 = vmul.f32 %v151, %v136
    %v153 = vmul.f32 %v152, %v151
    %v154 = vmul.f32 0.5, %v153
    %v155 = vsub.f32 1.5, %v154
    %v156 = vmul.f32 %v151, %v155
    %vm157 = vweird.f32 %v136
    %vm158 = vweird.f32 %v151
    %vm159 = vmor %vm157, %vm158
    %v160 = vsel %vm159, %v151, %v156
    %v161 = vrsqrt.pop %v137
    %v162 = vmul.f32 %v161, %v137
    %v163 = vmul.f32 %v162, %v161
    %v164 = vmul.f32 0.5, %v163
    %v165 = vsub.f32 1.5, %v164
    %v166 = vmul.f32 %v161, %v165
    %vm167 = vweird.f32 %v137
    %vm168 = vweird.f32 %v161
    %vm169 = vmor %vm167, %vm168
    %v170 = vsel %vm169, %v161, %v166
    %v171 = vrsqrt.pop %v138
    %v172 = vmul.f32 %v171, %v138
    %v173 = vmul.f32 %v172, %v171
    %v174 = vmul.f32 0.5, %v173
    %v175 = vsub.f32 1.5, %v174
    %v176 = vmul.f32 %v171, %v175
    %vm177 = vweird.f32 %v138
    %vm178 = vweird.f32 %v171
    %vm179 = vmor %vm177, %vm178
    %v180 = vsel %vm179, %v171, %v176
    %v181 = vrsqrt.pop %v139
    %v182 = vmul.f32 %v181, %v139
    %v183 = vmul.f32 %v182, %v181
    %v184 = vmul.f32 0.5, %v183
    %v185 = vsub.f32 1.5, %v184
    %v186 = vmul.f32 %v181, %v185
    %vm187 = vweird.f32 %v139
    %vm188 = vweird.f32 %v181
    %vm189 = vmor %vm187, %vm188
    %v190 = vsel %vm189, %v181, %v186
    %v191 = vrsqrt.pop %v140
    %v192 = vmul.f32 %v191, %v140
    %v193 = vmul.f32 %v192, %v191
    %v194 = vmul.f32 0.5, %v193
    %v195 = vsub.f32 1.5, %v194
    %v196 = vmul.f32 %v191, %v195
    %vm197 = vweird.f32 %v140
    %vm198 = vweird.f32 %v191
    %vm199 = vmor %vm197, %vm198
    %v200 = vsel %vm199, %v191, %v196
    %v201 = vmul.f32 %v94, %v150
    %v202 = vmul.f32 %v95, %v160
    %v203 = vmul.f32 %v96, %v170
    %v204 = vmul.f32 %v97, %v180
    %v205 = vmul.f32 %v98, %v190
    %v206 = vmul.f32 %v99, %v200
    %v207 = vpack.c.bf16 %v202, %v201
    %v208 = vpack.c.bf16 %v204, %v203
    %v209 = vpack.c.bf16 %v206, %v205
    %v211 = vsel %vm115, %v112, 0
    %v214 = vsel %vm115, %v113, 0
    %v217 = vsel %vm115, %v114, 0
    %vm219 = vcmask 1045504
    %v221 = vsel %vm219, %v209, 0
    %223 = vmatpush.bf16.msra.mxu0 0
    %224 = vmatpush.bf16.msra.mxu0 0
    %225 = vmatpush.bf16.msra.mxu0 0
    %226 = vmatpush.bf16.msra.mxu0 0
    %227 = vmatpush.bf16.msra.mxu0 0
    %228 = vmatpush.bf16.msra.mxu0 %v221
    %229 = vmatpush.bf16.msra.mxu0 %v208
    %230 = vmatpush.bf16.msra.mxu0 %v207
    %231 = vmatmul.bf16.gmra.mxu0 %v211
    %v232 = vpop.f32.mrf.mxu0
    %v233 = vadd.f32 %v201, %v232
    %v234 = vpop.f32.mrf.mxu0
    %v235 = vadd.f32 %v202, %v234
    %236 = vmatmul.bf16.gmra.mxu0 %v214
    %v237 = vpop.f32.mrf.mxu0
    %v238 = vadd.f32 %v203, %v237
    %v239 = vpop.f32.mrf.mxu0
    %v240 = vadd.f32 %v204, %v239
    %241 = vmatmul.bf16.gmra.mxu0 %v217
    %v242 = vpop.f32.mrf.mxu0
    %v243 = vadd.f32 %v205, %v242
    %v244 = vpop.f32.mrf.mxu0
    %v245 = vadd.f32 %v206, %v244
    %246 = vdwg.mxu0
    %v247 = vmul.f32 %v233, %v150
    %v248 = vmul.f32 %v235, %v160
    %v249 = vmul.f32 %v238, %v170
    %v250 = vmul.f32 %v240, %v180
    %v251 = vmul.f32 %v243, %v190
    %v252 = vmul.f32 %v245, %v200
    %v253 = vpack.c.bf16 %v248, %v247
    %v254 = vpack.c.bf16 %v250, %v249
    %v255 = vpack.c.bf16 %v252, %v251
    %v256 = vld [vmem:[#allocation5] sm:$0x3]
    %v258 = vperm.slane %v256, 0
    %v259 = vperm.slane %v256, 1
    %vm262 = vcmask 261120
    %v264 = vsel %vm262, %v253, 0
    %v267 = vsel %vm262, %v254, 0
    %v270 = vsel %vm262, %v255, 0
    %272 = vmatpush.bf16.msra.mxu0 0
    %273 = vmatpush.bf16.msra.mxu0 0
    %274 = vmatpush.bf16.msra.mxu0 0
    %275 = vmatpush.bf16.msra.mxu0 0
    %276 = vmatpush.bf16.msra.mxu0 0
    %277 = vmatpush.bf16.msra.mxu0 0
    %278 = vmatpush.bf16.msra.mxu0 %v110
    %279 = vmatpush.bf16.msra.mxu0 %v108
    %280 = vmatmul.bf16.gmra.mxu0 %v264
    %v281 = vpop.f32.mrf.mxu0
    %v282 = vadd.f32 %v258, %v281
    %v283 = vpop.f32.mrf.mxu0
    %v284 = vadd.f32 %v258, %v283
    %285 = vmatmul.bf16.gmra.mxu0 %v267
    %v286 = vpop.f32.mrf.mxu0
    %v287 = vadd.f32 %v258, %v286
    %v288 = vpop.f32.mrf.mxu0
    %v289 = vadd.f32 %v258, %v288
    %290 = vmatmul.bf16.gmra.mxu0 %v270
    %v291 = vpop.f32.mrf.mxu0
    %v292 = vadd.f32 %v258, %v291
    %v293 = vpop.f32.mrf.mxu0
    %v294 = vadd.f32 %v258, %v293
    %295 = vdwg.mxu0
    %296 = vmatpush.bf16.msra.mxu0 0
    %297 = vmatpush.bf16.msra.mxu0 0
    %298 = vmatpush.bf16.msra.mxu0 0
    %299 = vmatpush.bf16.msra.mxu0 0
    %300 = vmatpush.bf16.msra.mxu0 0
    %301 = vmatpush.bf16.msra.mxu0 0
    %302 = vmatpush.bf16.msra.mxu0 %v111
    %303 = vmatpush.bf16.msra.mxu0 %v109
    %304 = vmatmul.bf16.gmra.mxu0 %v264
    %v305 = vpop.f32.mrf.mxu0
    %v306 = vadd.f32 %v259, %v305
    %v307 = vpop.f32.mrf.mxu0
    %v308 = vadd.f32 %v259, %v307
    %309 = vmatmul.bf16.gmra.mxu0 %v267
    %v310 = vpop.f32.mrf.mxu0
    %v311 = vadd.f32 %v259, %v310
    %v312 = vpop.f32.mrf.mxu0
    %v313 = vadd.f32 %v259, %v312
    %314 = vmatmul.bf16.gmra.mxu0 %v270
    %v315 = vpop.f32.mrf.mxu0
    %v316 = vadd.f32 %v259, %v315
    %v317 = vpop.f32.mrf.mxu0
    %v318 = vadd.f32 %v259, %v317
    %319 = vdwg.mxu0
    %v320 = vld [vmem:[#allocation7] sm:$0x3]
    %v322 = vperm.slane %v320, 0
    %v323 = vperm.slane %v320, 1
    %v326 = vmul.f32 %v282, %v322
    %v327 = vmul.f32 %v306, %v323
    %v328 = vmul.f32 %v284, %v322
    %v329 = vmul.f32 %v308, %v323
    %v330 = vmul.f32 %v287, %v322
    %v331 = vmul.f32 %v311, %v323
    %v332 = vmul.f32 %v289, %v322
    %v333 = vmul.f32 %v313, %v323
    %v334 = vmul.f32 %v292, %v322
    %v335 = vmul.f32 %v316, %v323
    %v336 = vmul.f32 %v294, %v322
    %v337 = vmul.f32 %v318, %v323
    %v338 = vadd.f32 %v326, %v327
    %339 = vadd.xlane.f32.xlu0 %v338
    %v340 = vpop.xlane.xlu0 %339
    %v341 = vadd.f32 %v328, %v329
    %342 = vadd.xlane.f32.xlu0 %v341
    %v343 = vpop.xlane.xlu0 %342
    %v344 = vadd.f32 %v330, %v331
    %345 = vadd.xlane.f32.xlu0 %v344
    %v346 = vpop.xlane.xlu0 %345
    %v347 = vadd.f32 %v332, %v333
    %348 = vadd.xlane.f32.xlu0 %v347
    %v349 = vpop.xlane.xlu0 %348
    %v350 = vadd.f32 %v334, %v335
    %351 = vadd.xlane.f32.xlu0 %v350
    %v352 = vpop.xlane.xlu0 %351
    %vm353 = vcmask 1043456
    %v354 = vsel %vm353, %v336, 0.0
    %v355 = vsel %vm353, %v337, 0.0
    %v356 = vadd.f32 %v354, %v355
    %357 = vadd.xlane.f32.xlu0 %v356
    %v358 = vpop.xlane.xlu0 %357
    %v359 = vld [vmem:[#allocation8] sm:$0x3]
    %v361 = vperm.slane %v359, 0
    %v362 = vperm.slane %v359, 1
    %v365 = vmul.f32 %v282, %v361
    %v366 = vmul.f32 %v306, %v362
    %v367 = vmul.f32 %v284, %v361
    %v368 = vmul.f32 %v308, %v362
    %v369 = vmul.f32 %v287, %v361
    %v370 = vmul.f32 %v311, %v362
    %v371 = vmul.f32 %v289, %v361
    %v372 = vmul.f32 %v313, %v362
    %v373 = vmul.f32 %v292, %v361
    %v374 = vmul.f32 %v316, %v362
    %v375 = vmul.f32 %v294, %v361
    %v376 = vmul.f32 %v318, %v362
    %v377 = vadd.f32 %v365, %v366
    %378 = vadd.xlane.f32.xlu0 %v377
    %v379 = vpop.xlane.xlu0 %378
    %v380 = vadd.f32 %v367, %v368
    %381 = vadd.xlane.f32.xlu0 %v380
    %v382 = vpop.xlane.xlu0 %381
    %v383 = vadd.f32 %v369, %v370
    %384 = vadd.xlane.f32.xlu0 %v383
    %v385 = vpop.xlane.xlu0 %384
    %v386 = vadd.f32 %v371, %v372
    %387 = vadd.xlane.f32.xlu0 %v386
    %v388 = vpop.xlane.xlu0 %387
    %v389 = vadd.f32 %v373, %v374
    %390 = vadd.xlane.f32.xlu0 %v389
    %v391 = vpop.xlane.xlu0 %390
    %v392 = vsel %vm353, %v375, 0.0
    %v393 = vsel %vm353, %v376, 0.0
    %v394 = vadd.f32 %v392, %v393
    %395 = vadd.xlane.f32.xlu0 %v394
    %v396 = vpop.xlane.xlu0 %395
    %v397 = vld [vmem:[#allocation2] sm:$0x1]
    %v399 = vperm.slane %v397, 0
    %v402 = vsel %vm115, %v88, 0
    %v405 = vsel %vm115, %v89, 0
    %v408 = vsel %vm115, %v90, 0
    %v411 = vsel %vm115, %v91, 0
    %v414 = vsel %vm115, %v92, 0
    %v417 = vsel %vm115, %v93, 0
    %v420 = vsel %vm353, %v358, 0
    %422 = vmatpush.msra.mxu0 0.0
    %423 = vmatpush.msra.mxu0 0.0
    %424 = vmatpush.msra.mxu0 0.0
    %425 = vmatpush.msra.mxu0 0.0
    %426 = vmatpush.msra.mxu0 0.0
    %427 = vmatpush.msra.mxu0 0.0
    %428 = vmatpush.msra.mxu0 0.0
    %429 = vmatpush.msra.mxu0 0.0
    %430 = vmatpush.msra.mxu0 0.0
    %431 = vmatpush.msra.mxu0 0.0
    %432 = vmatpush.msra.mxu0 %v420
    %433 = vmatpush.msra.mxu0 %v352
    %434 = vmatpush.msra.mxu0 %v349
    %435 = vmatpush.msra.mxu0 %v346
    %436 = vmatpush.msra.mxu0 %v343
    %437 = vmatpush.msra.mxu0 %v340
    %438 = vmatmul.f32.gmra.mxu0 %v402
    %v439 = vpop.f32.mrf.mxu0
    %v440 = vadd.f32 %v399, %v439
    %441 = vmatmul.f32.gmra.mxu0 %v405
    %v442 = vpop.f32.mrf.mxu0
    %v443 = vadd.f32 %v399, %v442
    %444 = vmatmul.f32.gmra.mxu0 %v408
    %v445 = vpop.f32.mrf.mxu0
    %v446 = vadd.f32 %v399, %v445
    %447 = vmatmul.f32.gmra.mxu0 %v411
    %v448 = vpop.f32.mrf.mxu0
    %v449 = vadd.f32 %v399, %v448
    %450 = vmatmul.f32.gmra.mxu0 %v414
    %v451 = vpop.f32.mrf.mxu0
    %v452 = vadd.f32 %v399, %v451
    %453 = vmatmul.f32.gmra.mxu0 %v417
    %v454 = vpop.f32.mrf.mxu0
    %v455 = vadd.f32 %v399, %v454
    %456 = vdwg.mxu0
    %v457 = vadd.f32 %v440, %v379
    %v458 = vadd.f32 %v443, %v382
    %v459 = vadd.f32 %v446, %v385
    %v460 = vadd.f32 %v449, %v388
    %v461 = vadd.f32 %v452, %v391
    %v462 = vadd.f32 %v455, %v396
    %v463 = vtanh.pop %v457
    %v464 = vtanh.pop %v458
    %v465 = vtanh.pop %v459
    %v466 = vtanh.pop %v460
    %v467 = vtanh.pop %v461
    %v468 = vtanh.pop %v462
    %470 = vset.pattern.permute.xlu0 0
    %471 = vperm.xlu0 %470, %v463
    %v472 = vpop.permute.xlu0 %471
    %475 = vset.pattern.permute.xlu0 0
    %476 = vperm.xlu0 %475, %v464
    %v477 = vpop.permute.xlu0 %476
    %480 = vset.pattern.permute.xlu0 0
    %481 = vperm.xlu0 %480, %v465
    %v482 = vpop.permute.xlu0 %481
    %485 = vset.pattern.permute.xlu0 0
    %486 = vperm.xlu0 %485, %v466
    %v487 = vpop.permute.xlu0 %486
    %490 = vset.pattern.permute.xlu0 0
    %491 = vperm.xlu0 %490, %v467
    %v492 = vpop.permute.xlu0 %491
    %495 = vset.pattern.permute.xlu0 0
    %496 = vperm.xlu0 %495, %v468
    %v497 = vpop.permute.xlu0 %496
    %v499 = vmul.f32 %v282, %v472
    %v500 = vmul.f32 %v306, %v472
    %v501 = vmul.f32 %v284, %v477
    %v502 = vmul.f32 %v308, %v477
    %v503 = vmul.f32 %v287, %v482
    %v504 = vmul.f32 %v311, %v482
    %v505 = vmul.f32 %v289, %v487
    %v506 = vmul.f32 %v313, %v487
    %v507 = vmul.f32 %v292, %v492
    %v508 = vmul.f32 %v316, %v492
    %v509 = vmul.f32 %v294, %v497
    %v510 = vmul.f32 %v318, %v497
    %511 = vst [vmem:[%s7] sm:$0xff] %v499
    %512 = vst [vmem:[%s7 + $0x8] sm:$0xff] %v500
    %513 = vst [vmem:[%s7 + $0x10] sm:$0xff] %v501
    %514 = vst [vmem:[%s7 + $0x18] sm:$0xff] %v502
    %515 = vst [vmem:[%s7 + $0x20] sm:$0xff] %v503
    %516 = vst [vmem:[%s7 + $0x28] sm:$0xff] %v504
    %517 = vst [vmem:[%s7 + $0x30] sm:$0xff] %v505
    %518 = vst [vmem:[%s7 + $0x38] sm:$0xff] %v506
    %519 = vst [vmem:[%s7 + $0x40] sm:$0xff] %v507
    %520 = vst [vmem:[%s7 + $0x48] sm:$0xff] %v508
    %521 = vst [vmem:[%s7 + $0x50] sm:$0xf] %v509
    %522 = vst [vmem:[%s7 + $0x58] sm:$0xf] %v510
    %523 = vst [vmem:[%s8] sm:$0xff] %v472
    %524 = vst [vmem:[%s8 + $0x8] sm:$0xff] %v477
    %525 = vst [vmem:[%s8 + $0x10] sm:$0xff] %v482
    %526 = vst [vmem:[%s8 + $0x18] sm:$0xff] %v487
    %527 = vst [vmem:[%s8 + $0x20] sm:$0xff] %v492
    %528 = vst [vmem:[%s8 + $0x28] sm:$0xf] %v497
    // Predicated region
    $region46: #{sag_forward.4} parent=1 // pred_check
      _
    $region47: #{sag_forward.4} parent=1 // pred_check_branch
      %530 = sbr.rel (0) target = $region49
    $region48: #{sag_forward.4} parent=1 // pred_region
      _
    $region49: #{sag_forward.4} parent=1 // pred_fallthru
      _
    // Predicated region
    $region50: #{sag_forward.4} parent=1 // pred_check
      _
    $region51: #{sag_forward.4} parent=1 // pred_check_branch
      %532 = sbr.rel (0) target = $region53
    $region52: #{sag_forward.4} parent=1 // pred_region
      _
    $region53: #{sag_forward.4} parent=1 // pred_fallthru
      _
    // Predicated region
    $region54: #{sag_forward.4} parent=1 // pred_check
      _
    $region55: #{sag_forward.4} parent=1 // pred_check_branch
      %534 = sbr.rel (0) target = $region57
    $region56: #{sag_forward.4} parent=1 // pred_region
      _
    $region57: #{sag_forward.4} parent=1 // pred_fallthru
      _
    // Predicated region
    $region58: #{sag_forward.4} parent=1 // pred_check
      _
    $region59: #{sag_forward.4} parent=1 // pred_check_branch
      %536 = sbr.rel (0) target = $region61
    $region60: #{sag_forward.4} parent=1 // pred_region
      _
    $region61: #{sag_forward.4} parent=1 // pred_fallthru
      _
    %537 = vsyncpa [#allocation4], 1
    %538 = vsyncpa [#allocation6], 1
    %539 = vsyncpa [#allocation9], 1

// kernel: sag_forward.5
$region0: #{sag_forward.5}
  #allocation0 [shape = 'u32[]', space=smem, size = 0x4, offset = 0x4, fixed_abs, tag = 'smem constant byte address 0x4 - core index']
  #allocation1 [shape = 'u32[72,128]{1,0:T(1,128)}', space=vmem, size = 0x9000, scoped, tag = 'internal scratch']
  #allocation2 [shape = 'f32[1,1]{1,0:T(1,128)S(1)}', space=vmem, size = 0x200, scoped, tag = 'scoped memory for sag_forward.5']
  %s0 = inlined_call_operand.vmem [shape: f32[36,36], index: 0, kind: input, shape index: {}]
  %s1 = inlined_call_operand.vmem [shape: f32[36,256], index: 1, kind: input, shape index: {}]
  %s2 = inlined_call_operand.hbm [shape: f32[256,256], index: 2, kind: input, shape index: {}]
  %s3 = inlined_call_operand.hbm [shape: f32[1,256], index: 3, kind: input, shape index: {}]
  %s4 = inlined_call_operand.hbm [shape: f32[1,256], index: 4, kind: input, shape index: {}]
  %s5 = inlined_call_operand.hbm [shape: f32[1,256], index: 5, kind: input, shape index: {}]
  %s6 = inlined_call_operand.<no memory space> [shape: f32[1,1], index: 6, kind: input, shape index: {}]
  %s7 = inlined_call_operand.vmem [shape: f32[36,256], index: 7, kind: output, shape index: {0}]
  %s8 = inlined_call_operand.vmem [shape: f32[36,128], index: 8, kind: output, shape index: {1}]
  %9 = xla_tuple %s7, %s8
  %s10 = sld [smem:[#allocation0]]
  $region62: #{sag_forward.5} parent=0
    _
  %s12 = ssub.s32 1, %s10
  %s13 = scalar_select 0, %s12, %s10
  %v14 = vstv %s6
  %15 = vst [vmem:[#allocation2] sm:$0x1] %v14
  $region1: #{sag_forward.5} parent=0
    #allocation3 [shape = 'u8[262144]{0}', space=vmem, size = 0x40000, scoped, tag = 'input window, operand 2, single buffered']
    #allocation4 [shape = 's32[1]{0}', space=sflag, size = 0x4, scoped, tag = 'scoped memory for sag_forward.5']
    #allocation5 [shape = 'u8[1024]{0}', space=vmem, size = 0x400, scoped, tag = 'input window, operand 3, single buffered']
    #allocation6 [shape = 's32[1]{0}', space=sflag, size = 0x4, scoped, tag = 'scoped memory for sag_forward.5']
    #allocation7 [shape = 'u8[1024]{0}', space=vmem, size = 0x400, scoped, tag = 'input window, operand 4, single buffered']
    #allocation8 [shape = 'u8[1024]{0}', space=vmem, size = 0x400, scoped, tag = 'input window, operand 5, single buffered']
    #allocation9 [shape = 's32[1]{0}', space=sflag, size = 0x4, scoped, tag = 'scoped memory for sag_forward.5']
    %16 = vsyncpa [#allocation4], 0
    %17 = vsyncpa [#allocation6], 0
    %18 = vsyncpa [#allocation9], 0
    // Predicated region
    $region2: #{sag_forward.5} parent=1 // pred_check
      _
    $region3: #{sag_forward.5} parent=1 // pred_check_branch
      %20 = sbr.rel (0) target = $region5
    $region4: #{sag_forward.5} parent=1 // pred_region
      _
    $region5: #{sag_forward.5} parent=1 // pred_fallthru
      _
    // Predicated region
    $region6: #{sag_forward.5} parent=1 // pred_check
      _
    $region7: #{sag_forward.5} parent=1 // pred_check_branch
      %22 = sbr.rel (0) target = $region9
    $region8: #{sag_forward.5} parent=1 // pred_region
      _
    $region9: #{sag_forward.5} parent=1 // pred_fallthru
      _
    // Predicated region
    $region10: #{sag_forward.5} parent=1 // pred_check
      _
    $region11: #{sag_forward.5} parent=1 // pred_check_branch
      %24 = sbr.rel (0) target = $region13
    $region12: #{sag_forward.5} parent=1 // pred_region
      %26 = vsyncadd [#allocation4], 0
      %s27 = sshll.u32 %s2, 4
      %s28 = int_to_ptr.hbm [resolvable:$true] %s27
      %s29 = sshll.u32 [#allocation3], 4
      %s30 = int_to_ptr.vmem [resolvable:$true] %s29
      %35 = dma.hbm_to_vmem [thread:$0]  %s28, 8192, %s30, [#allocation4], 256, 256, 16
    $region13: #{sag_forward.5} parent=1 // pred_fallthru
      _
    // Predicated region
    $region14: #{sag_forward.5} parent=1 // pred_check
      _
    $region15: #{sag_forward.5} parent=1 // pred_check_branch
      %37 = sbr.rel (0) target = $region17
    $region16: #{sag_forward.5} parent=1 // pred_region
      %39 = vsyncadd [#allocation6], 0
      %s41 = sshll.u32 %s3, 4
      %s42 = int_to_ptr.hbm [resolvable:$true] %s41
      %s43 = sshll.u32 [#allocation5], 4
      %s44 = int_to_ptr.vmem [resolvable:$true] %s43
      %46 = dma.hbm_to_vmem [thread:$0]  %s42, 32, %s44, [#allocation6]
    $region17: #{sag_forward.5} parent=1 // pred_fallthru
      _
    // Predicated region
    $region18: #{sag_forward.5} parent=1 // pred_check
      _
    $region19: #{sag_forward.5} parent=1 // pred_check_branch
      %48 = sbr.rel (0) target = $region21
    $region20: #{sag_forward.5} parent=1 // pred_region
      %50 = vsyncadd [#allocation6], 0
      %s52 = sshll.u32 %s4, 4
      %s53 = int_to_ptr.hbm [resolvable:$true] %s52
      %s54 = sshll.u32 [#allocation7], 4
      %s55 = int_to_ptr.vmem [resolvable:$true] %s54
      %57 = dma.hbm_to_vmem [thread:$0]  %s53, 32, %s55, [#allocation6]
    $region21: #{sag_forward.5} parent=1 // pred_fallthru
      _
    // Predicated region
    $region22: #{sag_forward.5} parent=1 // pred_check
      _
    $region23: #{sag_forward.5} parent=1 // pred_check_branch
      %59 = sbr.rel (0) target = $region25
    $region24: #{sag_forward.5} parent=1 // pred_region
      %61 = vsyncadd [#allocation9], 0
      %s63 = sshll.u32 %s5, 4
      %s64 = int_to_ptr.hbm [resolvable:$true] %s63
      %s65 = sshll.u32 [#allocation8], 4
      %s66 = int_to_ptr.vmem [resolvable:$true] %s65
      %68 = dma.hbm_to_vmem [thread:$0]  %s64, 32, %s66, [#allocation9]
    $region25: #{sag_forward.5} parent=1 // pred_fallthru
      _
    // Predicated region
    $region26: #{sag_forward.5} parent=1 // pred_check
      _
    $region27: #{sag_forward.5} parent=1 // pred_check_branch
      %70 = sbr.rel (0) target = $region29
    $region28: #{sag_forward.5} parent=1 // pred_region
      _
    $region29: #{sag_forward.5} parent=1 // pred_fallthru
      _
    // Predicated region
    $region30: #{sag_forward.5} parent=1 // pred_check
      _
    $region31: #{sag_forward.5} parent=1 // pred_check_branch
      %72 = sbr.rel (0) target = $region33
    $region32: #{sag_forward.5} parent=1 // pred_region
      %74 = dma.done [#allocation4], 8192
    $region33: #{sag_forward.5} parent=1 // pred_fallthru
      _
    // Predicated region
    $region34: #{sag_forward.5} parent=1 // pred_check
      _
    $region35: #{sag_forward.5} parent=1 // pred_check_branch
      %76 = sbr.rel (0) target = $region37
    $region36: #{sag_forward.5} parent=1 // pred_region
      %78 = dma.done [#allocation6], 32
    $region37: #{sag_forward.5} parent=1 // pred_fallthru
      _
    // Predicated region
    $region38: #{sag_forward.5} parent=1 // pred_check
      _
    $region39: #{sag_forward.5} parent=1 // pred_check_branch
      %80 = sbr.rel (0) target = $region41
    $region40: #{sag_forward.5} parent=1 // pred_region
      %82 = dma.done [#allocation6], 32
    $region41: #{sag_forward.5} parent=1 // pred_fallthru
      _
    // Predicated region
    $region42: #{sag_forward.5} parent=1 // pred_check
      _
    $region43: #{sag_forward.5} parent=1 // pred_check_branch
      %84 = sbr.rel (0) target = $region45
    $region44: #{sag_forward.5} parent=1 // pred_region
      %86 = dma.done [#allocation9], 32
    $region45: #{sag_forward.5} parent=1 // pred_fallthru
      _
    %v88 = vld [vmem:[%s0] sm:$0xff]
    %v89 = vld [vmem:[%s0 + $0x8] sm:$0xff]
    %v90 = vld [vmem:[%s0 + $0x10] sm:$0xff]
    %v91 = vld [vmem:[%s0 + $0x18] sm:$0xff]
    %v92 = vld [vmem:[%s0 + $0x20] sm:$0xf]
    %v93 = vld [vmem:[%s1] sm:$0xff]
    %v94 = vld [vmem:[%s1 + $0x8] sm:$0xff]
    %v95 = vld [vmem:[%s1 + $0x10] sm:$0xff]
    %v96 = vld [vmem:[%s1 + $0x18] sm:$0xff]
    %v97 = vld [vmem:[%s1 + $0x20] sm:$0xff]
    %v98 = vld [vmem:[%s1 + $0x28] sm:$0xff]
    %v99 = vld [vmem:[%s1 + $0x30] sm:$0xff]
    %v100 = vld [vmem:[%s1 + $0x38] sm:$0xff]
    %v101 = vld [vmem:[%s1 + $0x40] sm:$0xf]
    %v102 = vld [vmem:[%s1 + $0x48] sm:$0xf]
    %v103 = vld [vmem:[#allocation3] sm:$0xff]
    %v104 = vld [vmem:[#allocation3 + $0x8] sm:$0xff]
    %v105 = vld [vmem:[#allocation3 + $0x10] sm:$0xff]
    %v106 = vld [vmem:[#allocation3 + $0x18] sm:$0xff]
    %v107 = vld [vmem:[#allocation3 + $0x20] sm:$0xff]
    %v108 = vld [vmem:[#allocation3 + $0x28] sm:$0xff]
    %v109 = vld [vmem:[#allocation3 + $0x30] sm:$0xff]
    %v110 = vld [vmem:[#allocation3 + $0x38] sm:$0xff]
    %v111 = vld [vmem:[#allocation3 + $0x40] sm:$0xff]
    %v112 = vld [vmem:[#allocation3 + $0x48] sm:$0xff]
    %v113 = vld [vmem:[#allocation3 + $0x50] sm:$0xff]
    %v114 = vld [vmem:[#allocation3 + $0x58] sm:$0xff]
    %v115 = vld [vmem:[#allocation3 + $0x60] sm:$0xff]
    %v116 = vld [vmem:[#allocation3 + $0x68] sm:$0xff]
    %v117 = vld [vmem:[#allocation3 + $0x70] sm:$0xff]
    %v118 = vld [vmem:[#allocation3 + $0x78] sm:$0xff]
    %v119 = vld [vmem:[#allocation3 + $0x80] sm:$0xff]
    %v120 = vld [vmem:[#allocation3 + $0x88] sm:$0xff]
    %v121 = vld [vmem:[#allocation3 + $0x90] sm:$0xff]
    %v122 = vld [vmem:[#allocation3 + $0x98] sm:$0xff]
    %v123 = vld [vmem:[#allocation3 + $0xa0] sm:$0xff]
    %v124 = vld [vmem:[#allocation3 + $0xa8] sm:$0xff]
    %v125 = vld [vmem:[#allocation3 + $0xb0] sm:$0xff]
    %v126 = vld [vmem:[#allocation3 + $0xb8] sm:$0xff]
    %v127 = vld [vmem:[#allocation3 + $0xc0] sm:$0xff]
    %v128 = vld [vmem:[#allocation3 + $0xc8] sm:$0xff]
    %v129 = vld [vmem:[#allocation3 + $0xd0] sm:$0xff]
    %v130 = vld [vmem:[#allocation3 + $0xd8] sm:$0xff]
    %v131 = vld [vmem:[#allocation3 + $0xe0] sm:$0xff]
    %v132 = vld [vmem:[#allocation3 + $0xe8] sm:$0xff]
    %v133 = vld [vmem:[#allocation3 + $0xf0] sm:$0xff]
    %v134 = vld [vmem:[#allocation3 + $0xf8] sm:$0xff]
    %v135 = vld [vmem:[#allocation3 + $0x100] sm:$0xff]
    %v136 = vld [vmem:[#allocation3 + $0x108] sm:$0xff]
    %v137 = vld [vmem:[#allocation3 + $0x110] sm:$0xff]
    %v138 = vld [vmem:[#allocation3 + $0x118] sm:$0xff]
    %v139 = vld [vmem:[#allocation3 + $0x120] sm:$0xff]
    %v140 = vld [vmem:[#allocation3 + $0x128] sm:$0xff]
    %v141 = vld [vmem:[#allocation3 + $0x130] sm:$0xff]
    %v142 = vld [vmem:[#allocation3 + $0x138] sm:$0xff]
    %v143 = vld [vmem:[#allocation3 + $0x140] sm:$0xff]
    %v144 = vld [vmem:[#allocation3 + $0x148] sm:$0xff]
    %v145 = vld [vmem:[#allocation3 + $0x150] sm:$0xff]
    %v146 = vld [vmem:[#allocation3 + $0x158] sm:$0xff]
    %v147 = vld [vmem:[#allocation3 + $0x160] sm:$0xff]
    %v148 = vld [vmem:[#allocation3 + $0x168] sm:$0xff]
    %v149 = vld [vmem:[#allocation3 + $0x170] sm:$0xff]
    %v150 = vld [vmem:[#allocation3 + $0x178] sm:$0xff]
    %v151 = vld [vmem:[#allocation3 + $0x180] sm:$0xff]
    %v152 = vld [vmem:[#allocation3 + $0x188] sm:$0xff]
    %v153 = vld [vmem:[#allocation3 + $0x190] sm:$0xff]
    %v154 = vld [vmem:[#allocation3 + $0x198] sm:$0xff]
    %v155 = vld [vmem:[#allocation3 + $0x1a0] sm:$0xff]
    %v156 = vld [vmem:[#allocation3 + $0x1a8] sm:$0xff]
    %v157 = vld [vmem:[#allocation3 + $0x1b0] sm:$0xff]
    %v158 = vld [vmem:[#allocation3 + $0x1b8] sm:$0xff]
    %v159 = vld [vmem:[#allocation3 + $0x1c0] sm:$0xff]
    %v160 = vld [vmem:[#allocation3 + $0x1c8] sm:$0xff]
    %v161 = vld [vmem:[#allocation3 + $0x1d0] sm:$0xff]
    %v162 = vld [vmem:[#allocation3 + $0x1d8] sm:$0xff]
    %v163 = vld [vmem:[#allocation3 + $0x1e0] sm:$0xff]
    %v164 = vld [vmem:[#allocation3 + $0x1e8] sm:$0xff]
    %v165 = vld [vmem:[#allocation3 + $0x1f0] sm:$0xff]
    %v166 = vld [vmem:[#allocation3 + $0x1f8] sm:$0xff]
    %v167 = vpack.c.bf16 %v105, %v103
    %v168 = vpack.c.bf16 %v106, %v104
    %v169 = vpack.c.bf16 %v109, %v107
    %v170 = vpack.c.bf16 %v110, %v108
    %v171 = vpack.c.bf16 %v113, %v111
    %v172 = vpack.c.bf16 %v114, %v112
    %v173 = vpack.c.bf16 %v117, %v115
    %v174 = vpack.c.bf16 %v118, %v116
    %v175 = vpack.c.bf16 %v121, %v119
    %v176 = vpack.c.bf16 %v122, %v120
    %v177 = vpack.c.bf16 %v125, %v123
    %v178 = vpack.c.bf16 %v126, %v124
    %v179 = vpack.c.bf16 %v129, %v127
    %v180 = vpack.c.bf16 %v130, %v128
    %v181 = vpack.c.bf16 %v133, %v131
    %v182 = vpack.c.bf16 %v134, %v132
    %v183 = vpack.c.bf16 %v137, %v135
    %v184 = vpack.c.bf16 %v138, %v136
    %v185 = vpack.c.bf16 %v141, %v139
    %v186 = vpack.c.bf16 %v142, %v140
    %v187 = vpack.c.bf16 %v145, %v143
    %v188 = vpack.c.bf16 %v146, %v144
    %v189 = vpack.c.bf16 %v149, %v147
    %v190 = vpack.c.bf16 %v150, %v148
    %v191 = vpack.c.bf16 %v153, %v151
    %v192 = vpack.c.bf16 %v154, %v152
    %v193 = vpack.c.bf16 %v157, %v155
    %v194 = vpack.c.bf16 %v158, %v156
    %v195 = vpack.c.bf16 %v161, %v159
    %v196 = vpack.c.bf16 %v162, %v160
    %v197 = vpack.c.bf16 %v165, %v163
    %v198 = vpack.c.bf16 %v166, %v164
    %v199 = vpack.c.bf16 %v89, %v88
    %v200 = vpack.c.bf16 %v91, %v90
    %v201 = vpack.c.bf16 %v92, %v92
    %vm202 = vcmask 293888
    %v203 = vsel %vm202, %v88, 0.0
    %204 = vadd.xlane.f32.xlu0 %v203
    %v205 = vpop.xlane.xlu0 %204
    %v206 = vsel %vm202, %v89, 0.0
    %207 = vadd.xlane.f32.xlu0 %v206
    %v208 = vpop.xlane.xlu0 %207
    %v209 = vsel %vm202, %v90, 0.0
    %210 = vadd.xlane.f32.xlu0 %v209
    %v211 = vpop.xlane.xlu0 %210
    %v212 = vsel %vm202, %v91, 0.0
    %213 = vadd.xlane.f32.xlu0 %v212
    %v214 = vpop.xlane.xlu0 %213
    %vm215 = vcmask 289792
    %v216 = vsel %vm215, %v92, 0.0
    %217 = vadd.xlane.f32.xlu0 %v216
    %v218 = vpop.xlane.xlu0 %217
    %v219 = vadd.f32 %v205, 1.0
    %v220 = vadd.f32 %v208, 1.0
    %v221 = vadd.f32 %v211, 1.0
    %v222 = vadd.f32 %v214, 1.0
    %v223 = vadd.f32 %v218, 1.0
    %v224 = vrsqrt.pop %v219
    %v225 = vmul.f32 %v224, %v219
    %v226 = vmul.f32 %v225, %v224
    %v227 = vmul.f32 0.5, %v226
    %v228 = vsub.f32 1.5, %v227
    %v229 = vmul.f32 %v224, %v228
    %vm230 = vweird.f32 %v219
    %vm231 = vweird.f32 %v224
    %vm232 = vmor %vm230, %vm231
    %v233 = vsel %vm232, %v224, %v229
    %v234 = vrsqrt.pop %v220
    %v235 = vmul.f32 %v234, %v220
    %v236 = vmul.f32 %v235, %v234
    %v237 = vmul.f32 0.5, %v236
    %v238 = vsub.f32 1.5, %v237
    %v239 = vmul.f32 %v234, %v238
    %vm240 = vweird.f32 %v220
    %vm241 = vweird.f32 %v234
    %vm242 = vmor %vm240, %vm241
    %v243 = vsel %vm242, %v234, %v239
    %v244 = vrsqrt.pop %v221
    %v245 = vmul.f32 %v244, %v221
    %v246 = vmul.f32 %v245, %v244
    %v247 = vmul.f32 0.5, %v246
    %v248 = vsub.f32 1.5, %v247
    %v249 = vmul.f32 %v244, %v248
    %vm250 = vweird.f32 %v221
    %vm251 = vweird.f32 %v244
    %vm252 = vmor %vm250, %vm251
    %v253 = vsel %vm252, %v244, %v249
    %v254 = vrsqrt.pop %v222
    %v255 = vmul.f32 %v254, %v222
    %v256 = vmul.f32 %v255, %v254
    %v257 = vmul.f32 0.5, %v256
    %v258 = vsub.f32 1.5, %v257
    %v259 = vmul.f32 %v254, %v258
    %vm260 = vweird.f32 %v222
    %vm261 = vweird.f32 %v254
    %vm262 = vmor %vm260, %vm261
    %v263 = vsel %vm262, %v254, %v259
    %v264 = vrsqrt.pop %v223
    %v265 = vmul.f32 %v264, %v223
    %v266 = vmul.f32 %v265, %v264
    %v267 = vmul.f32 0.5, %v266
    %v268 = vsub.f32 1.5, %v267
    %v269 = vmul.f32 %v264, %v268
    %vm270 = vweird.f32 %v223
    %vm271 = vweird.f32 %v264
    %vm272 = vmor %vm270, %vm271
    %v273 = vsel %vm272, %v264, %v269
    %v274 = vpack.c.bf16 %v95, %v93
    %v275 = vpack.c.bf16 %v96, %v94
    %v276 = vpack.c.bf16 %v99, %v97
    %v277 = vpack.c.bf16 %v100, %v98
    %v278 = vpack.c.bf16 %v101, %v101
    %v279 = vpack.c.bf16 %v102, %v102
    %280 = vmatpush.bf16.msra.mxu0 %v181
    %281 = vmatpush.bf16.msra.mxu0 %v179
    %282 = vmatpush.bf16.msra.mxu0 %v177
    %283 = vmatpush.bf16.msra.mxu0 %v175
    %284 = vmatpush.bf16.msra.mxu0 %v173
    %285 = vmatpush.bf16.msra.mxu0 %v171
    %286 = vmatpush.bf16.msra.mxu0 %v169
    %287 = vmatpush.bf16.msra.mxu0 %v167
    %288 = vmatmul.bf16.gmra.mxu0 %v274
    %v289 = vpop.f32.mrf.mxu0
    %v290 = vadd.f32 0.0, %v289
    %v291 = vpop.f32.mrf.mxu0
    %v292 = vadd.f32 0.0, %v291
    %293 = vmatmul.bf16.gmra.mxu0 %v276
    %v294 = vpop.f32.mrf.mxu0
    %v295 = vadd.f32 0.0, %v294
    %v296 = vpop.f32.mrf.mxu0
    %v297 = vadd.f32 0.0, %v296
    %298 = vmatmul.bf16.gmra.mxu0 %v278
    %v299 = vpop.f32.mrf.mxu0
    %v300 = vadd.f32 0.0, %v299
    %v301 = vpop.f32.mrf.mxu0
    %302 = vdwg.mxu0
    %303 = vmatpush.bf16.msra.mxu0 %v197
    %304 = vmatpush.bf16.msra.mxu0 %v195
    %305 = vmatpush.bf16.msra.mxu0 %v193
    %306 = vmatpush.bf16.msra.mxu0 %v191
    %307 = vmatpush.bf16.msra.mxu0 %v189
    %308 = vmatpush.bf16.msra.mxu0 %v187
    %309 = vmatpush.bf16.msra.mxu0 %v185
    %310 = vmatpush.bf16.msra.mxu0 %v183
    %311 = vmatmul.bf16.gmra.mxu0 %v275
    %v312 = vpop.f32.mrf.mxu0
    %v313 = vadd.f32 %v290, %v312
    %v314 = vpop.f32.mrf.mxu0
    %v315 = vadd.f32 %v292, %v314
    %316 = vmatmul.bf16.gmra.mxu0 %v277
    %v317 = vpop.f32.mrf.mxu0
    %v318 = vadd.f32 %v295, %v317
    %v319 = vpop.f32.mrf.mxu0
    %v320 = vadd.f32 %v297, %v319
    %321 = vmatmul.bf16.gmra.mxu0 %v279
    %v322 = vpop.f32.mrf.mxu0
    %v323 = vadd.f32 %v300, %v322
    %v324 = vpop.f32.mrf.mxu0
    %325 = vdwg.mxu0
    %326 = vmatpush.bf16.msra.mxu0 %v182
    %327 = vmatpush.bf16.msra.mxu0 %v180
    %328 = vmatpush.bf16.msra.mxu0 %v178
    %329 = vmatpush.bf16.msra.mxu0 %v176
    %330 = vmatpush.bf16.msra.mxu0 %v174
    %331 = vmatpush.bf16.msra.mxu0 %v172
    %332 = vmatpush.bf16.msra.mxu0 %v170
    %333 = vmatpush.bf16.msra.mxu0 %v168
    %334 = vmatmul.bf16.gmra.mxu0 %v274
    %v335 = vpop.f32.mrf.mxu0
    %v336 = vadd.f32 0.0, %v335
    %v337 = vpop.f32.mrf.mxu0
    %v338 = vadd.f32 0.0, %v337
    %339 = vmatmul.bf16.gmra.mxu0 %v276
    %v340 = vpop.f32.mrf.mxu0
    %v341 = vadd.f32 0.0, %v340
    %v342 = vpop.f32.mrf.mxu0
    %v343 = vadd.f32 0.0, %v342
    %344 = vmatmul.bf16.gmra.mxu0 %v278
    %v345 = vpop.f32.mrf.mxu0
    %v346 = vadd.f32 0.0, %v345
    %v347 = vpop.f32.mrf.mxu0
    %348 = vdwg.mxu0
    %349 = vmatpush.bf16.msra.mxu0 %v198
    %350 = vmatpush.bf16.msra.mxu0 %v196
    %351 = vmatpush.bf16.msra.mxu0 %v194
    %352 = vmatpush.bf16.msra.mxu0 %v192
    %353 = vmatpush.bf16.msra.mxu0 %v190
    %354 = vmatpush.bf16.msra.mxu0 %v188
    %355 = vmatpush.bf16.msra.mxu0 %v186
    %356 = vmatpush.bf16.msra.mxu0 %v184
    %357 = vmatmul.bf16.gmra.mxu0 %v275
    %v358 = vpop.f32.mrf.mxu0
    %v359 = vadd.f32 %v336, %v358
    %v360 = vpop.f32.mrf.mxu0
    %v361 = vadd.f32 %v338, %v360
    %362 = vmatmul.bf16.gmra.mxu0 %v277
    %v363 = vpop.f32.mrf.mxu0
    %v364 = vadd.f32 %v341, %v363
    %v365 = vpop.f32.mrf.mxu0
    %v366 = vadd.f32 %v343, %v365
    %367 = vmatmul.bf16.gmra.mxu0 %v279
    %v368 = vpop.f32.mrf.mxu0
    %v369 = vadd.f32 %v346, %v368
    %v370 = vpop.f32.mrf.mxu0
    %371 = vdwg.mxu0
    %v372 = vmul.f32 %v313, %v233
    %v373 = vmul.f32 %v359, %v233
    %v374 = vmul.f32 %v315, %v243
    %v375 = vmul.f32 %v361, %v243
    %v376 = vmul.f32 %v318, %v253
    %v377 = vmul.f32 %v364, %v253
    %v378 = vmul.f32 %v320, %v263
    %v379 = vmul.f32 %v366, %v263
    %v380 = vmul.f32 %v323, %v273
    %v381 = vmul.f32 %v369, %v273
    %v382 = vpack.c.bf16 %v374, %v372
    %v383 = vpack.c.bf16 %v375, %v373
    %v384 = vpack.c.bf16 %v378, %v376
    %v385 = vpack.c.bf16 %v379, %v377
    %v386 = vpack.c.bf16 %v380, %v380
    %v387 = vpack.c.bf16 %v381, %v381
    %v389 = vsel %vm202, %v199, 0
    %v392 = vsel %vm202, %v200, 0
    %v395 = vsel %vm202, %v201, 0
    %vm397 = vcmask 1041408
    %v399 = vsel %vm397, %v386, 0
    %v402 = vsel %vm397, %v387, 0
    %404 = vmatpush.bf16.msra.mxu0 0
    %405 = vmatpush.bf16.msra.mxu0 0
    %406 = vmatpush.bf16.msra.mxu0 0
    %407 = vmatpush.bf16.msra.mxu0 0
    %408 = vmatpush.bf16.msra.mxu0 0
    %409 = vmatpush.bf16.msra.mxu0 %v399
    %410 = vmatpush.bf16.msra.mxu0 %v384
    %411 = vmatpush.bf16.msra.mxu0 %v382
    %412 = vmatmul.bf16.gmra.mxu0 %v389
    %v413 = vpop.f32.mrf.mxu0
    %v414 = vadd.f32 %v372, %v413
    %v415 = vpop.f32.mrf.mxu0
    %v416 = vadd.f32 %v374, %v415
    %417 = vmatmul.bf16.gmra.mxu0 %v392
    %v418 = vpop.f32.mrf.mxu0
    %v419 = vadd.f32 %v376, %v418
    %v420 = vpop.f32.mrf.mxu0
    %v421 = vadd.f32 %v378, %v420
    %422 = vmatmul.bf16.gmra.mxu0 %v395
    %v423 = vpop.f32.mrf.mxu0
    %v424 = vadd.f32 %v380, %v423
    %v425 = vpop.f32.mrf.mxu0
    %426 = vdwg.mxu0
    %427 = vmatpush.bf16.msra.mxu0 0
    %428 = vmatpush.bf16.msra.mxu0 0
    %429 = vmatpush.bf16.msra.mxu0 0
    %430 = vmatpush.bf16.msra.mxu0 0
    %431 = vmatpush.bf16.msra.mxu0 0
    %432 = vmatpush.bf16.msra.mxu0 %v402
    %433 = vmatpush.bf16.msra.mxu0 %v385
    %434 = vmatpush.bf16.msra.mxu0 %v383
    %435 = vmatmul.bf16.gmra.mxu0 %v389
    %v436 = vpop.f32.mrf.mxu0
    %v437 = vadd.f32 %v373, %v436
    %v438 = vpop.f32.mrf.mxu0
    %v439 = vadd.f32 %v375, %v438
    %440 = vmatmul.bf16.gmra.mxu0 %v392
    %v441 = vpop.f32.mrf.mxu0
    %v442 = vadd.f32 %v377, %v441
    %v443 = vpop.f32.mrf.mxu0
    %v444 = vadd.f32 %v379, %v443
    %445 = vmatmul.bf16.gmra.mxu0 %v395
    %v446 = vpop.f32.mrf.mxu0
    %v447 = vadd.f32 %v381, %v446
    %v448 = vpop.f32.mrf.mxu0
    %449 = vdwg.mxu0
    %v450 = vmul.f32 %v233, %v414
    %v451 = vmul.f32 %v233, %v437
    %v452 = vmul.f32 %v243, %v416
    %v453 = vmul.f32 %v243, %v439
    %v454 = vmul.f32 %v253, %v419
    %v455 = vmul.f32 %v253, %v442
    %v456 = vmul.f32 %v263, %v421
    %v457 = vmul.f32 %v263, %v444
    %v458 = vmul.f32 %v273, %v424
    %v459 = vmul.f32 %v273, %v447
    %v460 = vld [vmem:[#allocation5] sm:$0x3]
    %v462 = vperm.slane %v460, 0
    %v463 = vperm.slane %v460, 1
    %v466 = vadd.f32 %v450, %v462
    %v467 = vadd.f32 %v451, %v463
    %v468 = vadd.f32 %v452, %v462
    %v469 = vadd.f32 %v453, %v463
    %v470 = vadd.f32 %v454, %v462
    %v471 = vadd.f32 %v455, %v463
    %v472 = vadd.f32 %v456, %v462
    %v473 = vadd.f32 %v457, %v463
    %v474 = vadd.f32 %v458, %v462
    %v475 = vadd.f32 %v459, %v463
    %v476 = vld [vmem:[#allocation7] sm:$0x3]
    %v478 = vperm.slane %v476, 0
    %v479 = vperm.slane %v476, 1
    %v482 = vmul.f32 %v466, %v478
    %v483 = vmul.f32 %v467, %v479
    %v484 = vmul.f32 %v468, %v478
    %v485 = vmul.f32 %v469, %v479
    %v486 = vmul.f32 %v470, %v478
    %v487 = vmul.f32 %v471, %v479
    %v488 = vmul.f32 %v472, %v478
    %v489 = vmul.f32 %v473, %v479
    %v490 = vmul.f32 %v474, %v478
    %v491 = vmul.f32 %v475, %v479
    %v492 = vadd.f32 %v482, %v483
    %493 = vadd.xlane.f32.xlu0 %v492
    %v494 = vpop.xlane.xlu0 %493
    %v495 = vadd.f32 %v484, %v485
    %496 = vadd.xlane.f32.xlu0 %v495
    %v497 = vpop.xlane.xlu0 %496
    %v498 = vadd.f32 %v486, %v487
    %499 = vadd.xlane.f32.xlu0 %v498
    %v500 = vpop.xlane.xlu0 %499
    %v501 = vadd.f32 %v488, %v489
    %502 = vadd.xlane.f32.xlu0 %v501
    %v503 = vpop.xlane.xlu0 %502
    %vm504 = vcmask 1043456
    %v505 = vsel %vm504, %v490, 0.0
    %v506 = vsel %vm504, %v491, 0.0
    %v507 = vadd.f32 %v505, %v506
    %508 = vadd.xlane.f32.xlu0 %v507
    %v509 = vpop.xlane.xlu0 %508
    %v510 = vld [vmem:[#allocation8] sm:$0x3]
    %v512 = vperm.slane %v510, 0
    %v513 = vperm.slane %v510, 1
    %v516 = vmul.f32 %v466, %v512
    %v517 = vmul.f32 %v467, %v513
    %v518 = vmul.f32 %v468, %v512
    %v519 = vmul.f32 %v469, %v513
    %v520 = vmul.f32 %v470, %v512
    %v521 = vmul.f32 %v471, %v513
    %v522 = vmul.f32 %v472, %v512
    %v523 = vmul.f32 %v473, %v513
    %v524 = vmul.f32 %v474, %v512
    %v525 = vmul.f32 %v475, %v513
    %v526 = vadd.f32 %v516, %v517
    %527 = vadd.xlane.f32.xlu0 %v526
    %v528 = vpop.xlane.xlu0 %527
    %v529 = vadd.f32 %v518, %v519
    %530 = vadd.xlane.f32.xlu0 %v529
    %v531 = vpop.xlane.xlu0 %530
    %v532 = vadd.f32 %v520, %v521
    %533 = vadd.xlane.f32.xlu0 %v532
    %v534 = vpop.xlane.xlu0 %533
    %v535 = vadd.f32 %v522, %v523
    %536 = vadd.xlane.f32.xlu0 %v535
    %v537 = vpop.xlane.xlu0 %536
    %v538 = vsel %vm504, %v524, 0.0
    %v539 = vsel %vm504, %v525, 0.0
    %v540 = vadd.f32 %v538, %v539
    %541 = vadd.xlane.f32.xlu0 %v540
    %v542 = vpop.xlane.xlu0 %541
    %v543 = vld [vmem:[#allocation2] sm:$0x1]
    %v545 = vperm.slane %v543, 0
    %v548 = vsel %vm202, %v88, 0
    %v551 = vsel %vm202, %v89, 0
    %v554 = vsel %vm202, %v90, 0
    %v557 = vsel %vm202, %v91, 0
    %v560 = vsel %vm202, %v92, 0
    %v563 = vsel %vm504, %v509, 0
    %565 = vmatpush.msra.mxu0 0.0
    %566 = vmatpush.msra.mxu0 0.0
    %567 = vmatpush.msra.mxu0 0.0
    %568 = vmatpush.msra.mxu0 0.0
    %569 = vmatpush.msra.mxu0 0.0
    %570 = vmatpush.msra.mxu0 0.0
    %571 = vmatpush.msra.mxu0 0.0
    %572 = vmatpush.msra.mxu0 0.0
    %573 = vmatpush.msra.mxu0 0.0
    %574 = vmatpush.msra.mxu0 0.0
    %575 = vmatpush.msra.mxu0 0.0
    %576 = vmatpush.msra.mxu0 %v563
    %577 = vmatpush.msra.mxu0 %v503
    %578 = vmatpush.msra.mxu0 %v500
    %579 = vmatpush.msra.mxu0 %v497
    %580 = vmatpush.msra.mxu0 %v494
    %581 = vmatmul.f32.gmra.mxu0 %v548
    %v582 = vpop.f32.mrf.mxu0
    %v583 = vadd.f32 %v545, %v582
    %584 = vmatmul.f32.gmra.mxu0 %v551
    %v585 = vpop.f32.mrf.mxu0
    %v586 = vadd.f32 %v545, %v585
    %587 = vmatmul.f32.gmra.mxu0 %v554
    %v588 = vpop.f32.mrf.mxu0
    %v589 = vadd.f32 %v545, %v588
    %590 = vmatmul.f32.gmra.mxu0 %v557
    %v591 = vpop.f32.mrf.mxu0
    %v592 = vadd.f32 %v545, %v591
    %593 = vmatmul.f32.gmra.mxu0 %v560
    %v594 = vpop.f32.mrf.mxu0
    %v595 = vadd.f32 %v545, %v594
    %596 = vdwg.mxu0
    %v597 = vadd.f32 %v583, %v528
    %v598 = vadd.f32 %v586, %v531
    %v599 = vadd.f32 %v589, %v534
    %v600 = vadd.f32 %v592, %v537
    %v601 = vadd.f32 %v595, %v542
    %v602 = vtanh.pop %v597
    %v603 = vtanh.pop %v598
    %v604 = vtanh.pop %v599
    %v605 = vtanh.pop %v600
    %v606 = vtanh.pop %v601
    %608 = vset.pattern.permute.xlu0 0
    %609 = vperm.xlu0 %608, %v602
    %v610 = vpop.permute.xlu0 %609
    %613 = vset.pattern.permute.xlu0 0
    %614 = vperm.xlu0 %613, %v603
    %v615 = vpop.permute.xlu0 %614
    %618 = vset.pattern.permute.xlu0 0
    %619 = vperm.xlu0 %618, %v604
    %v620 = vpop.permute.xlu0 %619
    %623 = vset.pattern.permute.xlu0 0
    %624 = vperm.xlu0 %623, %v605
    %v625 = vpop.permute.xlu0 %624
    %628 = vset.pattern.permute.xlu0 0
    %629 = vperm.xlu0 %628, %v606
    %v630 = vpop.permute.xlu0 %629
    %v632 = vmul.f32 %v466, %v610
    %v633 = vmul.f32 %v467, %v610
    %v634 = vmul.f32 %v468, %v615
    %v635 = vmul.f32 %v469, %v615
    %v636 = vmul.f32 %v470, %v620
    %v637 = vmul.f32 %v471, %v620
    %v638 = vmul.f32 %v472, %v625
    %v639 = vmul.f32 %v473, %v625
    %v640 = vmul.f32 %v474, %v630
    %v641 = vmul.f32 %v475, %v630
    %642 = vst [vmem:[%s7] sm:$0xff] %v632
    %643 = vst [vmem:[%s7 + $0x8] sm:$0xff] %v633
    %644 = vst [vmem:[%s7 + $0x10] sm:$0xff] %v634
    %645 = vst [vmem:[%s7 + $0x18] sm:$0xff] %v635
    %646 = vst [vmem:[%s7 + $0x20] sm:$0xff] %v636
    %647 = vst [vmem:[%s7 + $0x28] sm:$0xff] %v637
    %648 = vst [vmem:[%s7 + $0x30] sm:$0xff] %v638
    %649 = vst [vmem:[%s7 + $0x38] sm:$0xff] %v639
    %650 = vst [vmem:[%s7 + $0x40] sm:$0xf] %v640
    %651 = vst [vmem:[%s7 + $0x48] sm:$0xf] %v641
    %652 = vst [vmem:[%s8] sm:$0xff] %v610
    %653 = vst [vmem:[%s8 + $0x8] sm:$0xff] %v615
    %654 = vst [vmem:[%s8 + $0x10] sm:$0xff] %v620
    %655 = vst [vmem:[%s8 + $0x18] sm:$0xff] %v625
    %656 = vst [vmem:[%s8 + $0x20] sm:$0xf] %v630
    // Predicated region
    $region46: #{sag_forward.5} parent=1 // pred_check
      _
    $region47: #{sag_forward.5} parent=1 // pred_check_branch
      %658 = sbr.rel (0) target = $region49
    $region48: #{sag_forward.5} parent=1 // pred_region
      _
    $region49: #{sag_forward.5} parent=1 // pred_fallthru
      _
    // Predicated region
    $region50: #{sag_forward.5} parent=1 // pred_check
      _
    $region51: #{sag_forward.5} parent=1 // pred_check_branch
      %660 = sbr.rel (0) target = $region53
    $region52: #{sag_forward.5} parent=1 // pred_region
      _
    $region53: #{sag_forward.5} parent=1 // pred_fallthru
      _
    // Predicated region
    $region54: #{sag_forward.5} parent=1 // pred_check
      _
    $region55: #{sag_forward.5} parent=1 // pred_check_branch
      %662 = sbr.rel (0) target = $region57
    $region56: #{sag_forward.5} parent=1 // pred_region
      _
    $region57: #{sag_forward.5} parent=1 // pred_fallthru
      _
    // Predicated region
    $region58: #{sag_forward.5} parent=1 // pred_check
      _
    $region59: #{sag_forward.5} parent=1 // pred_check_branch
      %664 = sbr.rel (0) target = $region61
    $region60: #{sag_forward.5} parent=1 // pred_region
      _
    $region61: #{sag_forward.5} parent=1 // pred_fallthru
      _
    %665 = vsyncpa [#allocation4], 1
    %666 = vsyncpa [#allocation6], 1
    %667 = vsyncpa [#allocation9], 1

// kernel: sag_forward.6
$region0: #{sag_forward.6}
  #allocation0 [shape = 'u32[]', space=smem, size = 0x4, offset = 0x4, fixed_abs, tag = 'smem constant byte address 0x4 - core index']
  #allocation1 [shape = 'u32[72,128]{1,0:T(1,128)}', space=vmem, size = 0x9000, scoped, tag = 'internal scratch']
  #allocation2 [shape = 'f32[1,1]{1,0:T(1,128)S(1)}', space=vmem, size = 0x200, scoped, tag = 'scoped memory for sag_forward.6']
  %s0 = inlined_call_operand.vmem [shape: f32[30,30], index: 0, kind: input, shape index: {}]
  %s1 = inlined_call_operand.vmem [shape: f32[30,256], index: 1, kind: input, shape index: {}]
  %s2 = inlined_call_operand.vmem [shape: f32[256,256], index: 2, kind: input, shape index: {}]
  %s3 = inlined_call_operand.vmem [shape: f32[1,256], index: 3, kind: input, shape index: {}]
  %s4 = inlined_call_operand.vmem [shape: f32[1,256], index: 4, kind: input, shape index: {}]
  %s5 = inlined_call_operand.vmem [shape: f32[1,256], index: 5, kind: input, shape index: {}]
  %s6 = inlined_call_operand.<no memory space> [shape: f32[1,1], index: 6, kind: input, shape index: {}]
  %s7 = inlined_call_operand.vmem [shape: f32[30,256], index: 7, kind: output, shape index: {0}]
  %s8 = inlined_call_operand.vmem [shape: f32[30,128], index: 8, kind: output, shape index: {1}]
  %9 = xla_tuple %s7, %s8
  %s10 = sld [smem:[#allocation0]]
  $region46: #{sag_forward.6} parent=0
    _
  %s12 = ssub.s32 1, %s10
  %s13 = scalar_select 0, %s12, %s10
  %v14 = vstv %s6
  %15 = vst [vmem:[#allocation2] sm:$0x1] %v14
  // Predicated region
  $region2: #{sag_forward.6} parent=0 // pred_check
    _
  $region3: #{sag_forward.6} parent=0 // pred_check_branch
    %17 = sbr.rel (0) target = $region5
  $region4: #{sag_forward.6} parent=0 // pred_region
    _
  $region5: #{sag_forward.6} parent=0 // pred_fallthru
    _
  // Predicated region
  $region6: #{sag_forward.6} parent=0 // pred_check
    _
  $region7: #{sag_forward.6} parent=0 // pred_check_branch
    %19 = sbr.rel (0) target = $region9
  $region8: #{sag_forward.6} parent=0 // pred_region
    _
  $region9: #{sag_forward.6} parent=0 // pred_fallthru
    _
  // Predicated region
  $region10: #{sag_forward.6} parent=0 // pred_check
    _
  $region11: #{sag_forward.6} parent=0 // pred_check_branch
    %21 = sbr.rel (0) target = $region13
  $region12: #{sag_forward.6} parent=0 // pred_region
    _
  $region13: #{sag_forward.6} parent=0 // pred_fallthru
    _
  // Predicated region
  $region14: #{sag_forward.6} parent=0 // pred_check
    _
  $region15: #{sag_forward.6} parent=0 // pred_check_branch
    %23 = sbr.rel (0) target = $region17
  $region16: #{sag_forward.6} parent=0 // pred_region
    _
  $region17: #{sag_forward.6} parent=0 // pred_fallthru
    _
  // Predicated region
  $region18: #{sag_forward.6} parent=0 // pred_check
    _
  $region19: #{sag_forward.6} parent=0 // pred_check_branch
    %25 = sbr.rel (0) target = $region21
  $region20: #{sag_forward.6} parent=0 // pred_region
    _
  $region21: #{sag_forward.6} parent=0 // pred_fallthru
    _
  // Predicated region
  $region22: #{sag_forward.6} parent=0 // pred_check
    _
  $region23: #{sag_forward.6} parent=0 // pred_check_branch
    %27 = sbr.rel (0) target = $region25
  $region24: #{sag_forward.6} parent=0 // pred_region
    _
  $region25: #{sag_forward.6} parent=0 // pred_fallthru
    _
  // Predicated region
  $region26: #{sag_forward.6} parent=0 // pred_check
    _
  $region27: #{sag_forward.6} parent=0 // pred_check_branch
    %29 = sbr.rel (0) target = $region29
  $region28: #{sag_forward.6} parent=0 // pred_region
    _
  $region29: #{sag_forward.6} parent=0 // pred_fallthru
    _
  %v31 = vld [vmem:[%s0] sm:$0xff]
  %v32 = vld [vmem:[%s0 + $0x8] sm:$0xff]
  %v33 = vld [vmem:[%s0 + $0x10] sm:$0xff]
  %v34 = vld [vmem:[%s0 + $0x18] sm:$0x3f]
  %v35 = vld [vmem:[%s1] sm:$0xff]
  %v36 = vld [vmem:[%s1 + $0x8] sm:$0xff]
  %v37 = vld [vmem:[%s1 + $0x10] sm:$0xff]
  %v38 = vld [vmem:[%s1 + $0x18] sm:$0xff]
  %v39 = vld [vmem:[%s1 + $0x20] sm:$0xff]
  %v40 = vld [vmem:[%s1 + $0x28] sm:$0xff]
  %v41 = vld [vmem:[%s1 + $0x30] sm:$0x3f]
  %v42 = vld [vmem:[%s1 + $0x38] sm:$0x3f]
  %v43 = vld [vmem:[%s2] sm:$0xff]
  %v44 = vld [vmem:[%s2 + $0x8] sm:$0xff]
  %v45 = vld [vmem:[%s2 + $0x10] sm:$0xff]
  %v46 = vld [vmem:[%s2 + $0x18] sm:$0xff]
  %v47 = vld [vmem:[%s2 + $0x20] sm:$0xff]
  %v48 = vld [vmem:[%s2 + $0x28] sm:$0xff]
  %v49 = vld [vmem:[%s2 + $0x30] sm:$0xff]
  %v50 = vld [vmem:[%s2 + $0x38] sm:$0xff]
  %v51 = vld [vmem:[%s2 + $0x40] sm:$0xff]
  %v52 = vld [vmem:[%s2 + $0x48] sm:$0xff]
  %v53 = vld [vmem:[%s2 + $0x50] sm:$0xff]
  %v54 = vld [vmem:[%s2 + $0x58] sm:$0xff]
  %v55 = vld [vmem:[%s2 + $0x60] sm:$0xff]
  %v56 = vld [vmem:[%s2 + $0x68] sm:$0xff]
  %v57 = vld [vmem:[%s2 + $0x70] sm:$0xff]
  %v58 = vld [vmem:[%s2 + $0x78] sm:$0xff]
  %v59 = vld [vmem:[%s2 + $0x80] sm:$0xff]
  %v60 = vld [vmem:[%s2 + $0x88] sm:$0xff]
  %v61 = vld [vmem:[%s2 + $0x90] sm:$0xff]
  %v62 = vld [vmem:[%s2 + $0x98] sm:$0xff]
  %v63 = vld [vmem:[%s2 + $0xa0] sm:$0xff]
  %v64 = vld [vmem:[%s2 + $0xa8] sm:$0xff]
  %v65 = vld [vmem:[%s2 + $0xb0] sm:$0xff]
  %v66 = vld [vmem:[%s2 + $0xb8] sm:$0xff]
  %v67 = vld [vmem:[%s2 + $0xc0] sm:$0xff]
  %v68 = vld [vmem:[%s2 + $0xc8] sm:$0xff]
  %v69 = vld [vmem:[%s2 + $0xd0] sm:$0xff]
  %v70 = vld [vmem:[%s2 + $0xd8] sm:$0xff]
  %v71 = vld [vmem:[%s2 + $0xe0] sm:$0xff]
  %v72 = vld [vmem:[%s2 + $0xe8] sm:$0xff]
  %v73 = vld [vmem:[%s2 + $0xf0] sm:$0xff]
  %v74 = vld [vmem:[%s2 + $0xf8] sm:$0xff]
  %v75 = vld [vmem:[%s2 + $0x100] sm:$0xff]
  %v76 = vld [vmem:[%s2 + $0x108] sm:$0xff]
  %v77 = vld [vmem:[%s2 + $0x110] sm:$0xff]
  %v78 = vld [vmem:[%s2 + $0x118] sm:$0xff]
  %v79 = vld [vmem:[%s2 + $0x120] sm:$0xff]
  %v80 = vld [vmem:[%s2 + $0x128] sm:$0xff]
  %v81 = vld [vmem:[%s2 + $0x130] sm:$0xff]
  %v82 = vld [vmem:[%s2 + $0x138] sm:$0xff]
  %v83 = vld [vmem:[%s2 + $0x140] sm:$0xff]
  %v84 = vld [vmem:[%s2 + $0x148] sm:$0xff]
  %v85 = vld [vmem:[%s2 + $0x150] sm:$0xff]
  %v86 = vld [vmem:[%s2 + $0x158] sm:$0xff]
  %v87 = vld [vmem:[%s2 + $0x160] sm:$0xff]
  %v88 = vld [vmem:[%s2 + $0x168] sm:$0xff]
  %v89 = vld [vmem:[%s2 + $0x170] sm:$0xff]
  %v90 = vld [vmem:[%s2 + $0x178] sm:$0xff]
  %v91 = vld [vmem:[%s2 + $0x180] sm:$0xff]
  %v92 = vld [vmem:[%s2 + $0x188] sm:$0xff]
  %v93 = vld [vmem:[%s2 + $0x190] sm:$0xff]
  %v94 = vld [vmem:[%s2 + $0x198] sm:$0xff]
  %v95 = vld [vmem:[%s2 + $0x1a0] sm:$0xff]
  %v96 = vld [vmem:[%s2 + $0x1a8] sm:$0xff]
  %v97 = vld [vmem:[%s2 + $0x1b0] sm:$0xff]
  %v98 = vld [vmem:[%s2 + $0x1b8] sm:$0xff]
  %v99 = vld [vmem:[%s2 + $0x1c0] sm:$0xff]
  %v100 = vld [vmem:[%s2 + $0x1c8] sm:$0xff]
  %v101 = vld [vmem:[%s2 + $0x1d0] sm:$0xff]
  %v102 = vld [vmem:[%s2 + $0x1d8] sm:$0xff]
  %v103 = vld [vmem:[%s2 + $0x1e0] sm:$0xff]
  %v104 = vld [vmem:[%s2 + $0x1e8] sm:$0xff]
  %v105 = vld [vmem:[%s2 + $0x1f0] sm:$0xff]
  %v106 = vld [vmem:[%s2 + $0x1f8] sm:$0xff]
  %v107 = vpack.c.bf16 %v45, %v43
  %v108 = vpack.c.bf16 %v46, %v44
  %v109 = vpack.c.bf16 %v49, %v47
  %v110 = vpack.c.bf16 %v50, %v48
  %v111 = vpack.c.bf16 %v53, %v51
  %v112 = vpack.c.bf16 %v54, %v52
  %v113 = vpack.c.bf16 %v57, %v55
  %v114 = vpack.c.bf16 %v58, %v56
  %v115 = vpack.c.bf16 %v61, %v59
  %v116 = vpack.c.bf16 %v62, %v60
  %v117 = vpack.c.bf16 %v65, %v63
  %v118 = vpack.c.bf16 %v66, %v64
  %v119 = vpack.c.bf16 %v69, %v67
  %v120 = vpack.c.bf16 %v70, %v68
  %v121 = vpack.c.bf16 %v73, %v71
  %v122 = vpack.c.bf16 %v74, %v72
  %v123 = vpack.c.bf16 %v77, %v75
  %v124 = vpack.c.bf16 %v78, %v76
  %v125 = vpack.c.bf16 %v81, %v79
  %v126 = vpack.c.bf16 %v82, %v80
  %v127 = vpack.c.bf16 %v85, %v83
  %v128 = vpack.c.bf16 %v86, %v84
  %v129 = vpack.c.bf16 %v89, %v87
  %v130 = vpack.c.bf16 %v90, %v88
  %v131 = vpack.c.bf16 %v93, %v91
  %v132 = vpack.c.bf16 %v94, %v92
  %v133 = vpack.c.bf16 %v97, %v95
  %v134 = vpack.c.bf16 %v98, %v96
  %v135 = vpack.c.bf16 %v101, %v99
  %v136 = vpack.c.bf16 %v102, %v100
  %v137 = vpack.c.bf16 %v105, %v103
  %v138 = vpack.c.bf16 %v106, %v104
  %v139 = vpack.c.bf16 %v32, %v31
  %v140 = vpack.c.bf16 %v34, %v33
  %vm141 = vcmask 244736
  %v142 = vsel %vm141, %v31, 0.0
  %143 = vadd.xlane.f32.xlu0 %v142
  %v144 = vpop.xlane.xlu0 %143
  %v145 = vsel %vm141, %v32, 0.0
  %146 = vadd.xlane.f32.xlu0 %v145
  %v147 = vpop.xlane.xlu0 %146
  %v148 = vsel %vm141, %v33, 0.0
  %149 = vadd.xlane.f32.xlu0 %v148
  %v150 = vpop.xlane.xlu0 %149
  %vm151 = vcmask 242688
  %v152 = vsel %vm151, %v34, 0.0
  %153 = vadd.xlane.f32.xlu0 %v152
  %v154 = vpop.xlane.xlu0 %153
  %v155 = vadd.f32 %v144, 1.0
  %v156 = vadd.f32 %v147, 1.0
  %v157 = vadd.f32 %v150, 1.0
  %v158 = vadd.f32 %v154, 1.0
  %v159 = vrsqrt.pop %v155
  %v160 = vmul.f32 %v159, %v155
  %v161 = vmul.f32 %v160, %v159
  %v162 = vmul.f32 0.5, %v161
  %v163 = vsub.f32 1.5, %v162
  %v164 = vmul.f32 %v159, %v163
  %vm165 = vweird.f32 %v155
  %vm166 = vweird.f32 %v159
  %vm167 = vmor %vm165, %vm166
  %v168 = vsel %vm167, %v159, %v164
  %v169 = vrsqrt.pop %v156
  %v170 = vmul.f32 %v169, %v156
  %v171 = vmul.f32 %v170, %v169
  %v172 = vmul.f32 0.5, %v171
  %v173 = vsub.f32 1.5, %v172
  %v174 = vmul.f32 %v169, %v173
  %vm175 = vweird.f32 %v156
  %vm176 = vweird.f32 %v169
  %vm177 = vmor %vm175, %vm176
  %v178 = vsel %vm177, %v169, %v174
  %v179 = vrsqrt.pop %v157
  %v180 = vmul.f32 %v179, %v157
  %v181 = vmul.f32 %v180, %v179
  %v182 = vmul.f32 0.5, %v181
  %v183 = vsub.f32 1.5, %v182
  %v184 = vmul.f32 %v179, %v183
  %vm185 = vweird.f32 %v157
  %vm186 = vweird.f32 %v179
  %vm187 = vmor %vm185, %vm186
  %v188 = vsel %vm187, %v179, %v184
  %v189 = vrsqrt.pop %v158
  %v190 = vmul.f32 %v189, %v158
  %v191 = vmul.f32 %v190, %v189
  %v192 = vmul.f32 0.5, %v191
  %v193 = vsub.f32 1.5, %v192
  %v194 = vmul.f32 %v189, %v193
  %vm195 = vweird.f32 %v158
  %vm196 = vweird.f32 %v189
  %vm197 = vmor %vm195, %vm196
  %v198 = vsel %vm197, %v189, %v194
  %v199 = vpack.c.bf16 %v37, %v35
  %v200 = vpack.c.bf16 %v38, %v36
  %v201 = vpack.c.bf16 %v41, %v39
  %v202 = vpack.c.bf16 %v42, %v40
  %203 = vmatpush.bf16.msra.mxu0 %v121
  %204 = vmatpush.bf16.msra.mxu0 %v119
  %205 = vmatpush.bf16.msra.mxu0 %v117
  %206 = vmatpush.bf16.msra.mxu0 %v115
  %207 = vmatpush.bf16.msra.mxu0 %v113
  %208 = vmatpush.bf16.msra.mxu0 %v111
  %209 = vmatpush.bf16.msra.mxu0 %v109
  %210 = vmatpush.bf16.msra.mxu0 %v107
  %211 = vmatmul.bf16.gmra.mxu0 %v199
  %v212 = vpop.f32.mrf.mxu0
  %v213 = vadd.f32 0.0, %v212
  %v214 = vpop.f32.mrf.mxu0
  %v215 = vadd.f32 0.0, %v214
  %216 = vmatmul.bf16.gmra.mxu0 %v201
  %v217 = vpop.f32.mrf.mxu0
  %v218 = vadd.f32 0.0, %v217
  %v219 = vpop.f32.mrf.mxu0
  %v220 = vadd.f32 0.0, %v219
  %221 = vdwg.mxu0
  %222 = vmatpush.bf16.msra.mxu0 %v137
  %223 = vmatpush.bf16.msra.mxu0 %v135
  %224 = vmatpush.bf16.msra.mxu0 %v133
  %225 = vmatpush.bf16.msra.mxu0 %v131
  %226 = vmatpush.bf16.msra.mxu0 %v129
  %227 = vmatpush.bf16.msra.mxu0 %v127
  %228 = vmatpush.bf16.msra.mxu0 %v125
  %229 = vmatpush.bf16.msra.mxu0 %v123
  %230 = vmatmul.bf16.gmra.mxu0 %v200
  %v231 = vpop.f32.mrf.mxu0
  %v232 = vadd.f32 %v213, %v231
  %v233 = vpop.f32.mrf.mxu0
  %v234 = vadd.f32 %v215, %v233
  %235 = vmatmul.bf16.gmra.mxu0 %v202
  %v236 = vpop.f32.mrf.mxu0
  %v237 = vadd.f32 %v218, %v236
  %v238 = vpop.f32.mrf.mxu0
  %v239 = vadd.f32 %v220, %v238
  %240 = vdwg.mxu0
  %241 = vmatpush.bf16.msra.mxu0 %v122
  %242 = vmatpush.bf16.msra.mxu0 %v120
  %243 = vmatpush.bf16.msra.mxu0 %v118
  %244 = vmatpush.bf16.msra.mxu0 %v116
  %245 = vmatpush.bf16.msra.mxu0 %v114
  %246 = vmatpush.bf16.msra.mxu0 %v112
  %247 = vmatpush.bf16.msra.mxu0 %v110
  %248 = vmatpush.bf16.msra.mxu0 %v108
  %249 = vmatmul.bf16.gmra.mxu0 %v199
  %v250 = vpop.f32.mrf.mxu0
  %v251 = vadd.f32 0.0, %v250
  %v252 = vpop.f32.mrf.mxu0
  %v253 = vadd.f32 0.0, %v252
  %254 = vmatmul.bf16.gmra.mxu0 %v201
  %v255 = vpop.f32.mrf.mxu0
  %v256 = vadd.f32 0.0, %v255
  %v257 = vpop.f32.mrf.mxu0
  %v258 = vadd.f32 0.0, %v257
  %259 = vdwg.mxu0
  %260 = vmatpush.bf16.msra.mxu0 %v138
  %261 = vmatpush.bf16.msra.mxu0 %v136
  %262 = vmatpush.bf16.msra.mxu0 %v134
  %263 = vmatpush.bf16.msra.mxu0 %v132
  %264 = vmatpush.bf16.msra.mxu0 %v130
  %265 = vmatpush.bf16.msra.mxu0 %v128
  %266 = vmatpush.bf16.msra.mxu0 %v126
  %267 = vmatpush.bf16.msra.mxu0 %v124
  %268 = vmatmul.bf16.gmra.mxu0 %v200
  %v269 = vpop.f32.mrf.mxu0
  %v270 = vadd.f32 %v251, %v269
  %v271 = vpop.f32.mrf.mxu0
  %v272 = vadd.f32 %v253, %v271
  %273 = vmatmul.bf16.gmra.mxu0 %v202
  %v274 = vpop.f32.mrf.mxu0
  %v275 = vadd.f32 %v256, %v274
  %v276 = vpop.f32.mrf.mxu0
  %v277 = vadd.f32 %v258, %v276
  %278 = vdwg.mxu0
  %v279 = vmul.f32 %v232, %v168
  %v280 = vmul.f32 %v270, %v168
  %v281 = vmul.f32 %v234, %v178
  %v282 = vmul.f32 %v272, %v178
  %v283 = vmul.f32 %v237, %v188
  %v284 = vmul.f32 %v275, %v188
  %v285 = vmul.f32 %v239, %v198
  %v286 = vmul.f32 %v277, %v198
  %v287 = vpack.c.bf16 %v281, %v279
  %v288 = vpack.c.bf16 %v282, %v280
  %v289 = vpack.c.bf16 %v285, %v283
  %v290 = vpack.c.bf16 %v286, %v284
  %v292 = vsel %vm141, %v139, 0
  %v295 = vsel %vm141, %v140, 0
  %vm297 = vcmask 1046528
  %v299 = vsel %vm297, %v289, 0
  %v302 = vsel %vm297, %v290, 0
  %304 = vmatpush.bf16.msra.mxu0 0
  %305 = vmatpush.bf16.msra.mxu0 0
  %306 = vmatpush.bf16.msra.mxu0 0
  %307 = vmatpush.bf16.msra.mxu0 0
  %308 = vmatpush.bf16.msra.mxu0 0
  %309 = vmatpush.bf16.msra.mxu0 0
  %310 = vmatpush.bf16.msra.mxu0 %v299
  %311 = vmatpush.bf16.msra.mxu0 %v287
  %312 = vmatmul.bf16.gmra.mxu0 %v292
  %v313 = vpop.f32.mrf.mxu0
  %v314 = vadd.f32 %v279, %v313
  %v315 = vpop.f32.mrf.mxu0
  %v316 = vadd.f32 %v281, %v315
  %317 = vmatmul.bf16.gmra.mxu0 %v295
  %v318 = vpop.f32.mrf.mxu0
  %v319 = vadd.f32 %v283, %v318
  %v320 = vpop.f32.mrf.mxu0
  %v321 = vadd.f32 %v285, %v320
  %322 = vdwg.mxu0
  %323 = vmatpush.bf16.msra.mxu0 0
  %324 = vmatpush.bf16.msra.mxu0 0
  %325 = vmatpush.bf16.msra.mxu0 0
  %326 = vmatpush.bf16.msra.mxu0 0
  %327 = vmatpush.bf16.msra.mxu0 0
  %328 = vmatpush.bf16.msra.mxu0 0
  %329 = vmatpush.bf16.msra.mxu0 %v302
  %330 = vmatpush.bf16.msra.mxu0 %v288
  %331 = vmatmul.bf16.gmra.mxu0 %v292
  %v332 = vpop.f32.mrf.mxu0
  %v333 = vadd.f32 %v280, %v332
  %v334 = vpop.f32.mrf.mxu0
  %v335 = vadd.f32 %v282, %v334
  %336 = vmatmul.bf16.gmra.mxu0 %v295
  %v337 = vpop.f32.mrf.mxu0
  %v338 = vadd.f32 %v284, %v337
  %v339 = vpop.f32.mrf.mxu0
  %v340 = vadd.f32 %v286, %v339
  %341 = vdwg.mxu0
  %v342 = vmul.f32 %v168, %v314
  %v343 = vmul.f32 %v168, %v333
  %v344 = vmul.f32 %v178, %v316
  %v345 = vmul.f32 %v178, %v335
  %v346 = vmul.f32 %v188, %v319
  %v347 = vmul.f32 %v188, %v338
  %v348 = vmul.f32 %v198, %v321
  %v349 = vmul.f32 %v198, %v340
  %v350 = vld [vmem:[%s3] sm:$0x3]
  %v352 = vperm.slane %v350, 0
  %v353 = vperm.slane %v350, 1
  %v356 = vadd.f32 %v342, %v352
  %v357 = vadd.f32 %v343, %v353
  %v358 = vadd.f32 %v344, %v352
  %v359 = vadd.f32 %v345, %v353
  %v360 = vadd.f32 %v346, %v352
  %v361 = vadd.f32 %v347, %v353
  %v362 = vadd.f32 %v348, %v352
  %v363 = vadd.f32 %v349, %v353
  %v364 = vld [vmem:[%s4] sm:$0x3]
  %v366 = vperm.slane %v364, 0
  %v367 = vperm.slane %v364, 1
  %v370 = vmul.f32 %v356, %v366
  %v371 = vmul.f32 %v357, %v367
  %v372 = vmul.f32 %v358, %v366
  %v373 = vmul.f32 %v359, %v367
  %v374 = vmul.f32 %v360, %v366
  %v375 = vmul.f32 %v361, %v367
  %v376 = vmul.f32 %v362, %v366
  %v377 = vmul.f32 %v363, %v367
  %v378 = vadd.f32 %v370, %v371
  %379 = vadd.xlane.f32.xlu0 %v378
  %v380 = vpop.xlane.xlu0 %379
  %v381 = vadd.f32 %v372, %v373
  %382 = vadd.xlane.f32.xlu0 %v381
  %v383 = vpop.xlane.xlu0 %382
  %v384 = vadd.f32 %v374, %v375
  %385 = vadd.xlane.f32.xlu0 %v384
  %v386 = vpop.xlane.xlu0 %385
  %vm387 = vcmask 1045504
  %v388 = vsel %vm387, %v376, 0.0
  %v389 = vsel %vm387, %v377, 0.0
  %v390 = vadd.f32 %v388, %v389
  %391 = vadd.xlane.f32.xlu0 %v390
  %v392 = vpop.xlane.xlu0 %391
  %v393 = vld [vmem:[%s5] sm:$0x3]
  %v395 = vperm.slane %v393, 0
  %v396 = vperm.slane %v393, 1
  %v399 = vmul.f32 %v356, %v395
  %v400 = vmul.f32 %v357, %v396
  %v401 = vmul.f32 %v358, %v395
  %v402 = vmul.f32 %v359, %v396
  %v403 = vmul.f32 %v360, %v395
  %v404 = vmul.f32 %v361, %v396
  %v405 = vmul.f32 %v362, %v395
  %v406 = vmul.f32 %v363, %v396
  %v407 = vadd.f32 %v399, %v400
  %408 = vadd.xlane.f32.xlu0 %v407
  %v409 = vpop.xlane.xlu0 %408
  %v410 = vadd.f32 %v401, %v402
  %411 = vadd.xlane.f32.xlu0 %v410
  %v412 = vpop.xlane.xlu0 %411
  %v413 = vadd.f32 %v403, %v404
  %414 = vadd.xlane.f32.xlu0 %v413
  %v415 = vpop.xlane.xlu0 %414
  %v416 = vsel %vm387, %v405, 0.0
  %v417 = vsel %vm387, %v406, 0.0
  %v418 = vadd.f32 %v416, %v417
  %419 = vadd.xlane.f32.xlu0 %v418
  %v420 = vpop.xlane.xlu0 %419
  %v421 = vld [vmem:[#allocation2] sm:$0x1]
  %v423 = vperm.slane %v421, 0
  %v426 = vsel %vm141, %v31, 0
  %v429 = vsel %vm141, %v32, 0
  %v432 = vsel %vm141, %v33, 0
  %v435 = vsel %vm141, %v34, 0
  %v438 = vsel %vm387, %v392, 0
  %440 = vmatpush.msra.mxu0 0.0
  %441 = vmatpush.msra.mxu0 0.0
  %442 = vmatpush.msra.mxu0 0.0
  %443 = vmatpush.msra.mxu0 0.0
  %444 = vmatpush.msra.mxu0 0.0
  %445 = vmatpush.msra.mxu0 0.0
  %446 = vmatpush.msra.mxu0 0.0
  %447 = vmatpush.msra.mxu0 0.0
  %448 = vmatpush.msra.mxu0 0.0
  %449 = vmatpush.msra.mxu0 0.0
  %450 = vmatpush.msra.mxu0 0.0
  %451 = vmatpush.msra.mxu0 0.0
  %452 = vmatpush.msra.mxu0 %v438
  %453 = vmatpush.msra.mxu0 %v386
  %454 = vmatpush.msra.mxu0 %v383
  %455 = vmatpush.msra.mxu0 %v380
  %456 = vmatmul.f32.gmra.mxu0 %v426
  %v457 = vpop.f32.mrf.mxu0
  %v458 = vadd.f32 %v423, %v457
  %459 = vmatmul.f32.gmra.mxu0 %v429
  %v460 = vpop.f32.mrf.mxu0
  %v461 = vadd.f32 %v423, %v460
  %462 = vmatmul.f32.gmra.mxu0 %v432
  %v463 = vpop.f32.mrf.mxu0
  %v464 = vadd.f32 %v423, %v463
  %465 = vmatmul.f32.gmra.mxu0 %v435
  %v466 = vpop.f32.mrf.mxu0
  %v467 = vadd.f32 %v423, %v466
  %468 = vdwg.mxu0
  %v469 = vadd.f32 %v458, %v409
  %v470 = vadd.f32 %v461, %v412
  %v471 = vadd.f32 %v464, %v415
  %v472 = vadd.f32 %v467, %v420
  %v473 = vtanh.pop %v469
  %v474 = vtanh.pop %v470
  %v475 = vtanh.pop %v471
  %v476 = vtanh.pop %v472
  %478 = vset.pattern.permute.xlu0 0
  %479 = vperm.xlu0 %478, %v473
  %v480 = vpop.permute.xlu0 %479
  %483 = vset.pattern.permute.xlu0 0
  %484 = vperm.xlu0 %483, %v474
  %v485 = vpop.permute.xlu0 %484
  %488 = vset.pattern.permute.xlu0 0
  %489 = vperm.xlu0 %488, %v475
  %v490 = vpop.permute.xlu0 %489
  %493 = vset.pattern.permute.xlu0 0
  %494 = vperm.xlu0 %493, %v476
  %v495 = vpop.permute.xlu0 %494
  %v497 = vmul.f32 %v356, %v480
  %v498 = vmul.f32 %v357, %v480
  %v499 = vmul.f32 %v358, %v485
  %v500 = vmul.f32 %v359, %v485
  %v501 = vmul.f32 %v360, %v490
  %v502 = vmul.f32 %v361, %v490
  %v503 = vmul.f32 %v362, %v495
  %v504 = vmul.f32 %v363, %v495
  %505 = vst [vmem:[%s7] sm:$0xff] %v497
  %506 = vst [vmem:[%s7 + $0x8] sm:$0xff] %v498
  %507 = vst [vmem:[%s7 + $0x10] sm:$0xff] %v499
  %508 = vst [vmem:[%s7 + $0x18] sm:$0xff] %v500
  %509 = vst [vmem:[%s7 + $0x20] sm:$0xff] %v501
  %510 = vst [vmem:[%s7 + $0x28] sm:$0xff] %v502
  %511 = vst [vmem:[%s7 + $0x30] sm:$0x3f] %v503
  %512 = vst [vmem:[%s7 + $0x38] sm:$0x3f] %v504
  %513 = vst [vmem:[%s8] sm:$0xff] %v480
  %514 = vst [vmem:[%s8 + $0x8] sm:$0xff] %v485
  %515 = vst [vmem:[%s8 + $0x10] sm:$0xff] %v490
  %516 = vst [vmem:[%s8 + $0x18] sm:$0x3f] %v495
  // Predicated region
  $region30: #{sag_forward.6} parent=0 // pred_check
    _
  $region31: #{sag_forward.6} parent=0 // pred_check_branch
    %518 = sbr.rel (0) target = $region33
  $region32: #{sag_forward.6} parent=0 // pred_region
    _
  $region33: #{sag_forward.6} parent=0 // pred_fallthru
    _
  // Predicated region
  $region34: #{sag_forward.6} parent=0 // pred_check
    _
  $region35: #{sag_forward.6} parent=0 // pred_check_branch
    %520 = sbr.rel (0) target = $region37
  $region36: #{sag_forward.6} parent=0 // pred_region
    _
  $region37: #{sag_forward.6} parent=0 // pred_fallthru
    _
  // Predicated region
  $region38: #{sag_forward.6} parent=0 // pred_check
    _
  $region39: #{sag_forward.6} parent=0 // pred_check_branch
    %522 = sbr.rel (0) target = $region41
  $region40: #{sag_forward.6} parent=0 // pred_region
    _
  $region41: #{sag_forward.6} parent=0 // pred_fallthru
    _
  // Predicated region
  $region42: #{sag_forward.6} parent=0 // pred_check
    _
  $region43: #{sag_forward.6} parent=0 // pred_check_branch
    %524 = sbr.rel (0) target = $region45
  $region44: #{sag_forward.6} parent=0 // pred_region
    _
  $region45: #{sag_forward.6} parent=0 // pred_fallthru
    _

// kernel: sag_forward.7
$region0: #{sag_forward.7}
  #allocation0 [shape = 'u32[]', space=smem, size = 0x4, offset = 0x4, fixed_abs, tag = 'smem constant byte address 0x4 - core index']
  #allocation1 [shape = 'u32[72,128]{1,0:T(1,128)}', space=vmem, size = 0x9000, scoped, tag = 'internal scratch']
  #allocation2 [shape = 'f32[1,1]{1,0:T(1,128)S(1)}', space=vmem, size = 0x200, scoped, tag = 'scoped memory for sag_forward.7']
  %s0 = inlined_call_operand.vmem [shape: f32[2,1536], index: 0, kind: input, shape index: {}]
  %s1 = inlined_call_operand.vmem [shape: f32[1536,256], index: 1, kind: input, shape index: {}]
  %s2 = inlined_call_operand.vmem [shape: f32[1,256], index: 2, kind: input, shape index: {}]
  %s3 = inlined_call_operand.vmem [shape: f32[256,64], index: 3, kind: input, shape index: {}]
  %s4 = inlined_call_operand.vmem [shape: f32[1,64], index: 4, kind: input, shape index: {}]
  %s5 = inlined_call_operand.vmem [shape: f32[64,1], index: 5, kind: input, shape index: {}]
  %s6 = inlined_call_operand.<no memory space> [shape: f32[1,1], index: 6, kind: input, shape index: {}]
  %s7 = inlined_call_operand.vmem [shape: f32[2,128], index: 7, kind: output, shape index: {}]
  %s8 = sld [smem:[#allocation0]]
  $region38: #{sag_forward.7} parent=0
    _
  %s10 = ssub.s32 1, %s8
  %s11 = scalar_select 0, %s10, %s8
  %v12 = vstv %s6
  %13 = vst [vmem:[#allocation2] sm:$0x1] %v12
  // Predicated region
  $region2: #{sag_forward.7} parent=0 // pred_check
    _
  $region3: #{sag_forward.7} parent=0 // pred_check_branch
    %15 = sbr.rel (0) target = $region5
  $region4: #{sag_forward.7} parent=0 // pred_region
    _
  $region5: #{sag_forward.7} parent=0 // pred_fallthru
    _
  // Predicated region
  $region6: #{sag_forward.7} parent=0 // pred_check
    _
  $region7: #{sag_forward.7} parent=0 // pred_check_branch
    %17 = sbr.rel (0) target = $region9
  $region8: #{sag_forward.7} parent=0 // pred_region
    _
  $region9: #{sag_forward.7} parent=0 // pred_fallthru
    _
  // Predicated region
  $region10: #{sag_forward.7} parent=0 // pred_check
    _
  $region11: #{sag_forward.7} parent=0 // pred_check_branch
    %19 = sbr.rel (0) target = $region13
  $region12: #{sag_forward.7} parent=0 // pred_region
    _
  $region13: #{sag_forward.7} parent=0 // pred_fallthru
    _
  // Predicated region
  $region14: #{sag_forward.7} parent=0 // pred_check
    _
  $region15: #{sag_forward.7} parent=0 // pred_check_branch
    %21 = sbr.rel (0) target = $region17
  $region16: #{sag_forward.7} parent=0 // pred_region
    _
  $region17: #{sag_forward.7} parent=0 // pred_fallthru
    _
  // Predicated region
  $region18: #{sag_forward.7} parent=0 // pred_check
    _
  $region19: #{sag_forward.7} parent=0 // pred_check_branch
    %23 = sbr.rel (0) target = $region21
  $region20: #{sag_forward.7} parent=0 // pred_region
    _
  $region21: #{sag_forward.7} parent=0 // pred_fallthru
    _
  // Predicated region
  $region22: #{sag_forward.7} parent=0 // pred_check
    _
  $region23: #{sag_forward.7} parent=0 // pred_check_branch
    %25 = sbr.rel (0) target = $region25
  $region24: #{sag_forward.7} parent=0 // pred_region
    _
  $region25: #{sag_forward.7} parent=0 // pred_fallthru
    _
  // Predicated region
  $region26: #{sag_forward.7} parent=0 // pred_check
    _
  $region27: #{sag_forward.7} parent=0 // pred_check_branch
    %27 = sbr.rel (0) target = $region29
  $region28: #{sag_forward.7} parent=0 // pred_region
    _
  $region29: #{sag_forward.7} parent=0 // pred_fallthru
    _
  %v28 = vld [vmem:[%s0] sm:$0xff]
  %v29 = vld [vmem:[%s0 + $0x8] sm:$0xff]
  %v30 = vld [vmem:[%s0 + $0x10] sm:$0xff]
  %v31 = vld [vmem:[%s1] sm:$0xff]
  %v32 = vld [vmem:[%s1 + $0x8] sm:$0xff]
  %v33 = vld [vmem:[%s1 + $0x10] sm:$0xff]
  %v34 = vld [vmem:[%s1 + $0x18] sm:$0xff]
  %v35 = vld [vmem:[%s1 + $0x20] sm:$0xff]
  %v36 = vld [vmem:[%s1 + $0x28] sm:$0xff]
  %v37 = vld [vmem:[%s1 + $0x30] sm:$0xff]
  %v38 = vld [vmem:[%s1 + $0x38] sm:$0xff]
  %v39 = vld [vmem:[%s1 + $0x40] sm:$0xff]
  %v40 = vld [vmem:[%s1 + $0x48] sm:$0xff]
  %v41 = vld [vmem:[%s1 + $0x50] sm:$0xff]
  %v42 = vld [vmem:[%s1 + $0x58] sm:$0xff]
  %v43 = vld [vmem:[%s1 + $0x60] sm:$0xff]
  %v44 = vld [vmem:[%s1 + $0x68] sm:$0xff]
  %v45 = vld [vmem:[%s1 + $0x70] sm:$0xff]
  %v46 = vld [vmem:[%s1 + $0x78] sm:$0xff]
  %v47 = vld [vmem:[%s1 + $0x80] sm:$0xff]
  %v48 = vld [vmem:[%s1 + $0x88] sm:$0xff]
  %v49 = vld [vmem:[%s1 + $0x90] sm:$0xff]
  %v50 = vld [vmem:[%s1 + $0x98] sm:$0xff]
  %v51 = vld [vmem:[%s1 + $0xa0] sm:$0xff]
  %v52 = vld [vmem:[%s1 + $0xa8] sm:$0xff]
  %v53 = vld [vmem:[%s1 + $0xb0] sm:$0xff]
  %v54 = vld [vmem:[%s1 + $0xb8] sm:$0xff]
  %v55 = vld [vmem:[%s1 + $0xc0] sm:$0xff]
  %v56 = vld [vmem:[%s1 + $0xc8] sm:$0xff]
  %v57 = vld [vmem:[%s1 + $0xd0] sm:$0xff]
  %v58 = vld [vmem:[%s1 + $0xd8] sm:$0xff]
  %v59 = vld [vmem:[%s1 + $0xe0] sm:$0xff]
  %v60 = vld [vmem:[%s1 + $0xe8] sm:$0xff]
  %v61 = vld [vmem:[%s1 + $0xf0] sm:$0xff]
  %v62 = vld [vmem:[%s1 + $0xf8] sm:$0xff]
  %v63 = vld [vmem:[%s1 + $0x100] sm:$0xff]
  %v64 = vld [vmem:[%s1 + $0x108] sm:$0xff]
  %v65 = vld [vmem:[%s1 + $0x110] sm:$0xff]
  %v66 = vld [vmem:[%s1 + $0x118] sm:$0xff]
  %v67 = vld [vmem:[%s1 + $0x120] sm:$0xff]
  %v68 = vld [vmem:[%s1 + $0x128] sm:$0xff]
  %v69 = vld [vmem:[%s1 + $0x130] sm:$0xff]
  %v70 = vld [vmem:[%s1 + $0x138] sm:$0xff]
  %v71 = vld [vmem:[%s1 + $0x140] sm:$0xff]
  %v72 = vld [vmem:[%s1 + $0x148] sm:$0xff]
  %v73 = vld [vmem:[%s1 + $0x150] sm:$0xff]
  %v74 = vld [vmem:[%s1 + $0x158] sm:$0xff]
  %v75 = vld [vmem:[%s1 + $0x160] sm:$0xff]
  %v76 = vld [vmem:[%s1 + $0x168] sm:$0xff]
  %v77 = vld [vmem:[%s1 + $0x170] sm:$0xff]
  %v78 = vld [vmem:[%s1 + $0x178] sm:$0xff]
  %v79 = vld [vmem:[%s1 + $0x180] sm:$0xff]
  %v80 = vld [vmem:[%s1 + $0x188] sm:$0xff]
  %v81 = vld [vmem:[%s1 + $0x190] sm:$0xff]
  %v82 = vld [vmem:[%s1 + $0x198] sm:$0xff]
  %v83 = vld [vmem:[%s1 + $0x1a0] sm:$0xff]
  %v84 = vld [vmem:[%s1 + $0x1a8] sm:$0xff]
  %v85 = vld [vmem:[%s1 + $0x1b0] sm:$0xff]
  %v86 = vld [vmem:[%s1 + $0x1b8] sm:$0xff]
  %v87 = vld [vmem:[%s1 + $0x1c0] sm:$0xff]
  %v88 = vld [vmem:[%s1 + $0x1c8] sm:$0xff]
  %v89 = vld [vmem:[%s1 + $0x1d0] sm:$0xff]
  %v90 = vld [vmem:[%s1 + $0x1d8] sm:$0xff]
  %v91 = vld [vmem:[%s1 + $0x1e0] sm:$0xff]
  %v92 = vld [vmem:[%s1 + $0x1e8] sm:$0xff]
  %v93 = vld [vmem:[%s1 + $0x1f0] sm:$0xff]
  %v94 = vld [vmem:[%s1 + $0x1f8] sm:$0xff]
  %v95 = vld [vmem:[%s1 + $0x200] sm:$0xff]
  %v96 = vld [vmem:[%s1 + $0x208] sm:$0xff]
  %v97 = vld [vmem:[%s1 + $0x210] sm:$0xff]
  %v98 = vld [vmem:[%s1 + $0x218] sm:$0xff]
  %v99 = vld [vmem:[%s1 + $0x220] sm:$0xff]
  %v100 = vld [vmem:[%s1 + $0x228] sm:$0xff]
  %v101 = vld [vmem:[%s1 + $0x230] sm:$0xff]
  %v102 = vld [vmem:[%s1 + $0x238] sm:$0xff]
  %v103 = vld [vmem:[%s1 + $0x240] sm:$0xff]
  %v104 = vld [vmem:[%s1 + $0x248] sm:$0xff]
  %v105 = vld [vmem:[%s1 + $0x250] sm:$0xff]
  %v106 = vld [vmem:[%s1 + $0x258] sm:$0xff]
  %v107 = vld [vmem:[%s1 + $0x260] sm:$0xff]
  %v108 = vld [vmem:[%s1 + $0x268] sm:$0xff]
  %v109 = vld [vmem:[%s1 + $0x270] sm:$0xff]
  %v110 = vld [vmem:[%s1 + $0x278] sm:$0xff]
  %v111 = vld [vmem:[%s1 + $0x280] sm:$0xff]
  %v112 = vld [vmem:[%s1 + $0x288] sm:$0xff]
  %v113 = vld [vmem:[%s1 + $0x290] sm:$0xff]
  %v114 = vld [vmem:[%s1 + $0x298] sm:$0xff]
  %v115 = vld [vmem:[%s1 + $0x2a0] sm:$0xff]
  %v116 = vld [vmem:[%s1 + $0x2a8] sm:$0xff]
  %v117 = vld [vmem:[%s1 + $0x2b0] sm:$0xff]
  %v118 = vld [vmem:[%s1 + $0x2b8] sm:$0xff]
  %v119 = vld [vmem:[%s1 + $0x2c0] sm:$0xff]
  %v120 = vld [vmem:[%s1 + $0x2c8] sm:$0xff]
  %v121 = vld [vmem:[%s1 + $0x2d0] sm:$0xff]
  %v122 = vld [vmem:[%s1 + $0x2d8] sm:$0xff]
  %v123 = vld [vmem:[%s1 + $0x2e0] sm:$0xff]
  %v124 = vld [vmem:[%s1 + $0x2e8] sm:$0xff]
  %v125 = vld [vmem:[%s1 + $0x2f0] sm:$0xff]
  %v126 = vld [vmem:[%s1 + $0x2f8] sm:$0xff]
  %v127 = vld [vmem:[%s1 + $0x300] sm:$0xff]
  %v128 = vld [vmem:[%s1 + $0x308] sm:$0xff]
  %v129 = vld [vmem:[%s1 + $0x310] sm:$0xff]
  %v130 = vld [vmem:[%s1 + $0x318] sm:$0xff]
  %v131 = vld [vmem:[%s1 + $0x320] sm:$0xff]
  %v132 = vld [vmem:[%s1 + $0x328] sm:$0xff]
  %v133 = vld [vmem:[%s1 + $0x330] sm:$0xff]
  %v134 = vld [vmem:[%s1 + $0x338] sm:$0xff]
  %v135 = vld [vmem:[%s1 + $0x340] sm:$0xff]
  %v136 = vld [vmem:[%s1 + $0x348] sm:$0xff]
  %v137 = vld [vmem:[%s1 + $0x350] sm:$0xff]
  %v138 = vld [vmem:[%s1 + $0x358] sm:$0xff]
  %v139 = vld [vmem:[%s1 + $0x360] sm:$0xff]
  %v140 = vld [vmem:[%s1 + $0x368] sm:$0xff]
  %v141 = vld [vmem:[%s1 + $0x370] sm:$0xff]
  %v142 = vld [vmem:[%s1 + $0x378] sm:$0xff]
  %v143 = vld [vmem:[%s1 + $0x380] sm:$0xff]
  %v144 = vld [vmem:[%s1 + $0x388] sm:$0xff]
  %v145 = vld [vmem:[%s1 + $0x390] sm:$0xff]
  %v146 = vld [vmem:[%s1 + $0x398] sm:$0xff]
  %v147 = vld [vmem:[%s1 + $0x3a0] sm:$0xff]
  %v148 = vld [vmem:[%s1 + $0x3a8] sm:$0xff]
  %v149 = vld [vmem:[%s1 + $0x3b0] sm:$0xff]
  %v150 = vld [vmem:[%s1 + $0x3b8] sm:$0xff]
  %v151 = vld [vmem:[%s1 + $0x3c0] sm:$0xff]
  %v152 = vld [vmem:[%s1 + $0x3c8] sm:$0xff]
  %v153 = vld [vmem:[%s1 + $0x3d0] sm:$0xff]
  %v154 = vld [vmem:[%s1 + $0x3d8] sm:$0xff]
  %v155 = vld [vmem:[%s1 + $0x3e0] sm:$0xff]
  %v156 = vld [vmem:[%s1 + $0x3e8] sm:$0xff]
  %v157 = vld [vmem:[%s1 + $0x3f0] sm:$0xff]
  %v158 = vld [vmem:[%s1 + $0x3f8] sm:$0xff]
  %v159 = vld [vmem:[%s1 + $0x400] sm:$0xff]
  %v160 = vld [vmem:[%s1 + $0x408] sm:$0xff]
  %v161 = vld [vmem:[%s1 + $0x410] sm:$0xff]
  %v162 = vld [vmem:[%s1 + $0x418] sm:$0xff]
  %v163 = vld [vmem:[%s1 + $0x420] sm:$0xff]
  %v164 = vld [vmem:[%s1 + $0x428] sm:$0xff]
  %v165 = vld [vmem:[%s1 + $0x430] sm:$0xff]
  %v166 = vld [vmem:[%s1 + $0x438] sm:$0xff]
  %v167 = vld [vmem:[%s1 + $0x440] sm:$0xff]
  %v168 = vld [vmem:[%s1 + $0x448] sm:$0xff]
  %v169 = vld [vmem:[%s1 + $0x450] sm:$0xff]
  %v170 = vld [vmem:[%s1 + $0x458] sm:$0xff]
  %v171 = vld [vmem:[%s1 + $0x460] sm:$0xff]
  %v172 = vld [vmem:[%s1 + $0x468] sm:$0xff]
  %v173 = vld [vmem:[%s1 + $0x470] sm:$0xff]
  %v174 = vld [vmem:[%s1 + $0x478] sm:$0xff]
  %v175 = vld [vmem:[%s1 + $0x480] sm:$0xff]
  %v176 = vld [vmem:[%s1 + $0x488] sm:$0xff]
  %v177 = vld [vmem:[%s1 + $0x490] sm:$0xff]
  %v178 = vld [vmem:[%s1 + $0x498] sm:$0xff]
  %v179 = vld [vmem:[%s1 + $0x4a0] sm:$0xff]
  %v180 = vld [vmem:[%s1 + $0x4a8] sm:$0xff]
  %v181 = vld [vmem:[%s1 + $0x4b0] sm:$0xff]
  %v182 = vld [vmem:[%s1 + $0x4b8] sm:$0xff]
  %v183 = vld [vmem:[%s1 + $0x4c0] sm:$0xff]
  %v184 = vld [vmem:[%s1 + $0x4c8] sm:$0xff]
  %v185 = vld [vmem:[%s1 + $0x4d0] sm:$0xff]
  %v186 = vld [vmem:[%s1 + $0x4d8] sm:$0xff]
  %v187 = vld [vmem:[%s1 + $0x4e0] sm:$0xff]
  %v188 = vld [vmem:[%s1 + $0x4e8] sm:$0xff]
  %v189 = vld [vmem:[%s1 + $0x4f0] sm:$0xff]
  %v190 = vld [vmem:[%s1 + $0x4f8] sm:$0xff]
  %v191 = vld [vmem:[%s1 + $0x500] sm:$0xff]
  %v192 = vld [vmem:[%s1 + $0x508] sm:$0xff]
  %v193 = vld [vmem:[%s1 + $0x510] sm:$0xff]
  %v194 = vld [vmem:[%s1 + $0x518] sm:$0xff]
  %v195 = vld [vmem:[%s1 + $0x520] sm:$0xff]
  %v196 = vld [vmem:[%s1 + $0x528] sm:$0xff]
  %v197 = vld [vmem:[%s1 + $0x530] sm:$0xff]
  %v198 = vld [vmem:[%s1 + $0x538] sm:$0xff]
  %v199 = vld [vmem:[%s1 + $0x540] sm:$0xff]
  %v200 = vld [vmem:[%s1 + $0x548] sm:$0xff]
  %v201 = vld [vmem:[%s1 + $0x550] sm:$0xff]
  %v202 = vld [vmem:[%s1 + $0x558] sm:$0xff]
  %v203 = vld [vmem:[%s1 + $0x560] sm:$0xff]
  %v204 = vld [vmem:[%s1 + $0x568] sm:$0xff]
  %v205 = vld [vmem:[%s1 + $0x570] sm:$0xff]
  %v206 = vld [vmem:[%s1 + $0x578] sm:$0xff]
  %v207 = vld [vmem:[%s1 + $0x580] sm:$0xff]
  %v208 = vld [vmem:[%s1 + $0x588] sm:$0xff]
  %v209 = vld [vmem:[%s1 + $0x590] sm:$0xff]
  %v210 = vld [vmem:[%s1 + $0x598] sm:$0xff]
  %v211 = vld [vmem:[%s1 + $0x5a0] sm:$0xff]
  %v212 = vld [vmem:[%s1 + $0x5a8] sm:$0xff]
  %v213 = vld [vmem:[%s1 + $0x5b0] sm:$0xff]
  %v214 = vld [vmem:[%s1 + $0x5b8] sm:$0xff]
  %v215 = vld [vmem:[%s1 + $0x5c0] sm:$0xff]
  %v216 = vld [vmem:[%s1 + $0x5c8] sm:$0xff]
  %v217 = vld [vmem:[%s1 + $0x5d0] sm:$0xff]
  %v218 = vld [vmem:[%s1 + $0x5d8] sm:$0xff]
  %v219 = vld [vmem:[%s1 + $0x5e0] sm:$0xff]
  %v220 = vld [vmem:[%s1 + $0x5e8] sm:$0xff]
  %v221 = vld [vmem:[%s1 + $0x5f0] sm:$0xff]
  %v222 = vld [vmem:[%s1 + $0x5f8] sm:$0xff]
  %v223 = vld [vmem:[%s1 + $0x600] sm:$0xff]
  %v224 = vld [vmem:[%s1 + $0x608] sm:$0xff]
  %v225 = vld [vmem:[%s1 + $0x610] sm:$0xff]
  %v226 = vld [vmem:[%s1 + $0x618] sm:$0xff]
  %v227 = vld [vmem:[%s1 + $0x620] sm:$0xff]
  %v228 = vld [vmem:[%s1 + $0x628] sm:$0xff]
  %v229 = vld [vmem:[%s1 + $0x630] sm:$0xff]
  %v230 = vld [vmem:[%s1 + $0x638] sm:$0xff]
  %v231 = vld [vmem:[%s1 + $0x640] sm:$0xff]
  %v232 = vld [vmem:[%s1 + $0x648] sm:$0xff]
  %v233 = vld [vmem:[%s1 + $0x650] sm:$0xff]
  %v234 = vld [vmem:[%s1 + $0x658] sm:$0xff]
  %v235 = vld [vmem:[%s1 + $0x660] sm:$0xff]
  %v236 = vld [vmem:[%s1 + $0x668] sm:$0xff]
  %v237 = vld [vmem:[%s1 + $0x670] sm:$0xff]
  %v238 = vld [vmem:[%s1 + $0x678] sm:$0xff]
  %v239 = vld [vmem:[%s1 + $0x680] sm:$0xff]
  %v240 = vld [vmem:[%s1 + $0x688] sm:$0xff]
  %v241 = vld [vmem:[%s1 + $0x690] sm:$0xff]
  %v242 = vld [vmem:[%s1 + $0x698] sm:$0xff]
  %v243 = vld [vmem:[%s1 + $0x6a0] sm:$0xff]
  %v244 = vld [vmem:[%s1 + $0x6a8] sm:$0xff]
  %v245 = vld [vmem:[%s1 + $0x6b0] sm:$0xff]
  %v246 = vld [vmem:[%s1 + $0x6b8] sm:$0xff]
  %v247 = vld [vmem:[%s1 + $0x6c0] sm:$0xff]
  %v248 = vld [vmem:[%s1 + $0x6c8] sm:$0xff]
  %v249 = vld [vmem:[%s1 + $0x6d0] sm:$0xff]
  %v250 = vld [vmem:[%s1 + $0x6d8] sm:$0xff]
  %v251 = vld [vmem:[%s1 + $0x6e0] sm:$0xff]
  %v252 = vld [vmem:[%s1 + $0x6e8] sm:$0xff]
  %v253 = vld [vmem:[%s1 + $0x6f0] sm:$0xff]
  %v254 = vld [vmem:[%s1 + $0x6f8] sm:$0xff]
  %v255 = vld [vmem:[%s1 + $0x700] sm:$0xff]
  %v256 = vld [vmem:[%s1 + $0x708] sm:$0xff]
  %v257 = vld [vmem:[%s1 + $0x710] sm:$0xff]
  %v258 = vld [vmem:[%s1 + $0x718] sm:$0xff]
  %v259 = vld [vmem:[%s1 + $0x720] sm:$0xff]
  %v260 = vld [vmem:[%s1 + $0x728] sm:$0xff]
  %v261 = vld [vmem:[%s1 + $0x730] sm:$0xff]
  %v262 = vld [vmem:[%s1 + $0x738] sm:$0xff]
  %v263 = vld [vmem:[%s1 + $0x740] sm:$0xff]
  %v264 = vld [vmem:[%s1 + $0x748] sm:$0xff]
  %v265 = vld [vmem:[%s1 + $0x750] sm:$0xff]
  %v266 = vld [vmem:[%s1 + $0x758] sm:$0xff]
  %v267 = vld [vmem:[%s1 + $0x760] sm:$0xff]
  %v268 = vld [vmem:[%s1 + $0x768] sm:$0xff]
  %v269 = vld [vmem:[%s1 + $0x770] sm:$0xff]
  %v270 = vld [vmem:[%s1 + $0x778] sm:$0xff]
  %v271 = vld [vmem:[%s1 + $0x780] sm:$0xff]
  %v272 = vld [vmem:[%s1 + $0x788] sm:$0xff]
  %v273 = vld [vmem:[%s1 + $0x790] sm:$0xff]
  %v274 = vld [vmem:[%s1 + $0x798] sm:$0xff]
  %v275 = vld [vmem:[%s1 + $0x7a0] sm:$0xff]
  %v276 = vld [vmem:[%s1 + $0x7a8] sm:$0xff]
  %v277 = vld [vmem:[%s1 + $0x7b0] sm:$0xff]
  %v278 = vld [vmem:[%s1 + $0x7b8] sm:$0xff]
  %v279 = vld [vmem:[%s1 + $0x7c0] sm:$0xff]
  %v280 = vld [vmem:[%s1 + $0x7c8] sm:$0xff]
  %v281 = vld [vmem:[%s1 + $0x7d0] sm:$0xff]
  %v282 = vld [vmem:[%s1 + $0x7d8] sm:$0xff]
  %v283 = vld [vmem:[%s1 + $0x7e0] sm:$0xff]
  %v284 = vld [vmem:[%s1 + $0x7e8] sm:$0xff]
  %v285 = vld [vmem:[%s1 + $0x7f0] sm:$0xff]
  %v286 = vld [vmem:[%s1 + $0x7f8] sm:$0xff]
  %v287 = vld [vmem:[%s1 + $0x800] sm:$0xff]
  %v288 = vld [vmem:[%s1 + $0x808] sm:$0xff]
  %v289 = vld [vmem:[%s1 + $0x810] sm:$0xff]
  %v290 = vld [vmem:[%s1 + $0x818] sm:$0xff]
  %v291 = vld [vmem:[%s1 + $0x820] sm:$0xff]
  %v292 = vld [vmem:[%s1 + $0x828] sm:$0xff]
  %v293 = vld [vmem:[%s1 + $0x830] sm:$0xff]
  %v294 = vld [vmem:[%s1 + $0x838] sm:$0xff]
  %v295 = vld [vmem:[%s1 + $0x840] sm:$0xff]
  %v296 = vld [vmem:[%s1 + $0x848] sm:$0xff]
  %v297 = vld [vmem:[%s1 + $0x850] sm:$0xff]
  %v298 = vld [vmem:[%s1 + $0x858] sm:$0xff]
  %v299 = vld [vmem:[%s1 + $0x860] sm:$0xff]
  %v300 = vld [vmem:[%s1 + $0x868] sm:$0xff]
  %v301 = vld [vmem:[%s1 + $0x870] sm:$0xff]
  %v302 = vld [vmem:[%s1 + $0x878] sm:$0xff]
  %v303 = vld [vmem:[%s1 + $0x880] sm:$0xff]
  %v304 = vld [vmem:[%s1 + $0x888] sm:$0xff]
  %v305 = vld [vmem:[%s1 + $0x890] sm:$0xff]
  %v306 = vld [vmem:[%s1 + $0x898] sm:$0xff]
  %v307 = vld [vmem:[%s1 + $0x8a0] sm:$0xff]
  %v308 = vld [vmem:[%s1 + $0x8a8] sm:$0xff]
  %v309 = vld [vmem:[%s1 + $0x8b0] sm:$0xff]
  %v310 = vld [vmem:[%s1 + $0x8b8] sm:$0xff]
  %v311 = vld [vmem:[%s1 + $0x8c0] sm:$0xff]
  %v312 = vld [vmem:[%s1 + $0x8c8] sm:$0xff]
  %v313 = vld [vmem:[%s1 + $0x8d0] sm:$0xff]
  %v314 = vld [vmem:[%s1 + $0x8d8] sm:$0xff]
  %v315 = vld [vmem:[%s1 + $0x8e0] sm:$0xff]
  %v316 = vld [vmem:[%s1 + $0x8e8] sm:$0xff]
  %v317 = vld [vmem:[%s1 + $0x8f0] sm:$0xff]
  %v318 = vld [vmem:[%s1 + $0x8f8] sm:$0xff]
  %v319 = vld [vmem:[%s1 + $0x900] sm:$0xff]
  %v320 = vld [vmem:[%s1 + $0x908] sm:$0xff]
  %v321 = vld [vmem:[%s1 + $0x910] sm:$0xff]
  %v322 = vld [vmem:[%s1 + $0x918] sm:$0xff]
  %v323 = vld [vmem:[%s1 + $0x920] sm:$0xff]
  %v324 = vld [vmem:[%s1 + $0x928] sm:$0xff]
  %v325 = vld [vmem:[%s1 + $0x930] sm:$0xff]
  %v326 = vld [vmem:[%s1 + $0x938] sm:$0xff]
  %v327 = vld [vmem:[%s1 + $0x940] sm:$0xff]
  %v328 = vld [vmem:[%s1 + $0x948] sm:$0xff]
  %v329 = vld [vmem:[%s1 + $0x950] sm:$0xff]
  %v330 = vld [vmem:[%s1 + $0x958] sm:$0xff]
  %v331 = vld [vmem:[%s1 + $0x960] sm:$0xff]
  %v332 = vld [vmem:[%s1 + $0x968] sm:$0xff]
  %v333 = vld [vmem:[%s1 + $0x970] sm:$0xff]
  %v334 = vld [vmem:[%s1 + $0x978] sm:$0xff]
  %v335 = vld [vmem:[%s1 + $0x980] sm:$0xff]
  %v336 = vld [vmem:[%s1 + $0x988] sm:$0xff]
  %v337 = vld [vmem:[%s1 + $0x990] sm:$0xff]
  %v338 = vld [vmem:[%s1 + $0x998] sm:$0xff]
  %v339 = vld [vmem:[%s1 + $0x9a0] sm:$0xff]
  %v340 = vld [vmem:[%s1 + $0x9a8] sm:$0xff]
  %v341 = vld [vmem:[%s1 + $0x9b0] sm:$0xff]
  %v342 = vld [vmem:[%s1 + $0x9b8] sm:$0xff]
  %v343 = vld [vmem:[%s1 + $0x9c0] sm:$0xff]
  %v344 = vld [vmem:[%s1 + $0x9c8] sm:$0xff]
  %v345 = vld [vmem:[%s1 + $0x9d0] sm:$0xff]
  %v346 = vld [vmem:[%s1 + $0x9d8] sm:$0xff]
  %v347 = vld [vmem:[%s1 + $0x9e0] sm:$0xff]
  %v348 = vld [vmem:[%s1 + $0x9e8] sm:$0xff]
  %v349 = vld [vmem:[%s1 + $0x9f0] sm:$0xff]
  %v350 = vld [vmem:[%s1 + $0x9f8] sm:$0xff]
  %v351 = vld [vmem:[%s1 + $0xa00] sm:$0xff]
  %v352 = vld [vmem:[%s1 + $0xa08] sm:$0xff]
  %v353 = vld [vmem:[%s1 + $0xa10] sm:$0xff]
  %v354 = vld [vmem:[%s1 + $0xa18] sm:$0xff]
  %v355 = vld [vmem:[%s1 + $0xa20] sm:$0xff]
  %v356 = vld [vmem:[%s1 + $0xa28] sm:$0xff]
  %v357 = vld [vmem:[%s1 + $0xa30] sm:$0xff]
  %v358 = vld [vmem:[%s1 + $0xa38] sm:$0xff]
  %v359 = vld [vmem:[%s1 + $0xa40] sm:$0xff]
  %v360 = vld [vmem:[%s1 + $0xa48] sm:$0xff]
  %v361 = vld [vmem:[%s1 + $0xa50] sm:$0xff]
  %v362 = vld [vmem:[%s1 + $0xa58] sm:$0xff]
  %v363 = vld [vmem:[%s1 + $0xa60] sm:$0xff]
  %v364 = vld [vmem:[%s1 + $0xa68] sm:$0xff]
  %v365 = vld [vmem:[%s1 + $0xa70] sm:$0xff]
  %v366 = vld [vmem:[%s1 + $0xa78] sm:$0xff]
  %v367 = vld [vmem:[%s1 + $0xa80] sm:$0xff]
  %v368 = vld [vmem:[%s1 + $0xa88] sm:$0xff]
  %v369 = vld [vmem:[%s1 + $0xa90] sm:$0xff]
  %v370 = vld [vmem:[%s1 + $0xa98] sm:$0xff]
  %v371 = vld [vmem:[%s1 + $0xaa0] sm:$0xff]
  %v372 = vld [vmem:[%s1 + $0xaa8] sm:$0xff]
  %v373 = vld [vmem:[%s1 + $0xab0] sm:$0xff]
  %v374 = vld [vmem:[%s1 + $0xab8] sm:$0xff]
  %v375 = vld [vmem:[%s1 + $0xac0] sm:$0xff]
  %v376 = vld [vmem:[%s1 + $0xac8] sm:$0xff]
  %v377 = vld [vmem:[%s1 + $0xad0] sm:$0xff]
  %v378 = vld [vmem:[%s1 + $0xad8] sm:$0xff]
  %v379 = vld [vmem:[%s1 + $0xae0] sm:$0xff]
  %v380 = vld [vmem:[%s1 + $0xae8] sm:$0xff]
  %v381 = vld [vmem:[%s1 + $0xaf0] sm:$0xff]
  %v382 = vld [vmem:[%s1 + $0xaf8] sm:$0xff]
  %v383 = vld [vmem:[%s1 + $0xb00] sm:$0xff]
  %v384 = vld [vmem:[%s1 + $0xb08] sm:$0xff]
  %v385 = vld [vmem:[%s1 + $0xb10] sm:$0xff]
  %v386 = vld [vmem:[%s1 + $0xb18] sm:$0xff]
  %v387 = vld [vmem:[%s1 + $0xb20] sm:$0xff]
  %v388 = vld [vmem:[%s1 + $0xb28] sm:$0xff]
  %v389 = vld [vmem:[%s1 + $0xb30] sm:$0xff]
  %v390 = vld [vmem:[%s1 + $0xb38] sm:$0xff]
  %v391 = vld [vmem:[%s1 + $0xb40] sm:$0xff]
  %v392 = vld [vmem:[%s1 + $0xb48] sm:$0xff]
  %v393 = vld [vmem:[%s1 + $0xb50] sm:$0xff]
  %v394 = vld [vmem:[%s1 + $0xb58] sm:$0xff]
  %v395 = vld [vmem:[%s1 + $0xb60] sm:$0xff]
  %v396 = vld [vmem:[%s1 + $0xb68] sm:$0xff]
  %v397 = vld [vmem:[%s1 + $0xb70] sm:$0xff]
  %v398 = vld [vmem:[%s1 + $0xb78] sm:$0xff]
  %v399 = vld [vmem:[%s1 + $0xb80] sm:$0xff]
  %v400 = vld [vmem:[%s1 + $0xb88] sm:$0xff]
  %v401 = vld [vmem:[%s1 + $0xb90] sm:$0xff]
  %v402 = vld [vmem:[%s1 + $0xb98] sm:$0xff]
  %v403 = vld [vmem:[%s1 + $0xba0] sm:$0xff]
  %v404 = vld [vmem:[%s1 + $0xba8] sm:$0xff]
  %v405 = vld [vmem:[%s1 + $0xbb0] sm:$0xff]
  %v406 = vld [vmem:[%s1 + $0xbb8] sm:$0xff]
  %v407 = vld [vmem:[%s1 + $0xbc0] sm:$0xff]
  %v408 = vld [vmem:[%s1 + $0xbc8] sm:$0xff]
  %v409 = vld [vmem:[%s1 + $0xbd0] sm:$0xff]
  %v410 = vld [vmem:[%s1 + $0xbd8] sm:$0xff]
  %v411 = vld [vmem:[%s1 + $0xbe0] sm:$0xff]
  %v412 = vld [vmem:[%s1 + $0xbe8] sm:$0xff]
  %v413 = vld [vmem:[%s1 + $0xbf0] sm:$0xff]
  %v414 = vld [vmem:[%s1 + $0xbf8] sm:$0xff]
  %v415 = vld [vmem:[%s2] sm:$0x3]
  %v417 = vperm.slane %v415, 0
  %v418 = vperm.slane %v415, 1
  %424 = vst [vmem:[#allocation1] ss:$4 sm:$0xff] %v28
  %s425 = scalar_lea.vmem [#allocation1], 32
  %426 = vst [vmem:[%s425] ss:$4 sm:$0xff] %v29
  %v427 = vld.sshfl [vmem:[#allocation1] sm:$0xff pattern:$0x73625140]
  %v428 = vld.sshfl [vmem:[#allocation1 + $0x8] sm:$0xff pattern:$0x73625140]
  %v429 = vld.sshfl [vmem:[#allocation1 + $0x10] sm:$0xff pattern:$0x73625140]
  %v430 = vld.sshfl [vmem:[#allocation1 + $0x18] sm:$0xff pattern:$0x73625140]
  %v431 = vld.sshfl [vmem:[#allocation1 + $0x20] sm:$0xff pattern:$0x73625140]
  %v432 = vld.sshfl [vmem:[#allocation1 + $0x28] sm:$0xff pattern:$0x73625140]
  %v433 = vld.sshfl [vmem:[#allocation1 + $0x30] sm:$0xff pattern:$0x73625140]
  %v434 = vld.sshfl [vmem:[#allocation1 + $0x38] sm:$0xff pattern:$0x73625140]
  %435 = vst [vmem:[#allocation1] ss:$4 sm:$0xff] %v30
  %v436 = vld.sshfl [vmem:[#allocation1] sm:$0xff pattern:$0x73625140]
  %v437 = vld.sshfl [vmem:[#allocation1 + $0x8] sm:$0xff pattern:$0x73625140]
  %v438 = vld.sshfl [vmem:[#allocation1 + $0x10] sm:$0xff pattern:$0x73625140]
  %v439 = vld.sshfl [vmem:[#allocation1 + $0x18] sm:$0xff pattern:$0x73625140]
  %452 = vmatpush.msra.mxu0 %v61
  %453 = vmatpush.msra.mxu0 %v59
  %454 = vmatpush.msra.mxu0 %v57
  %455 = vmatpush.msra.mxu0 %v55
  %456 = vmatpush.msra.mxu0 %v53
  %457 = vmatpush.msra.mxu0 %v51
  %458 = vmatpush.msra.mxu0 %v49
  %459 = vmatpush.msra.mxu0 %v47
  %460 = vmatpush.msra.mxu0 %v45
  %461 = vmatpush.msra.mxu0 %v43
  %462 = vmatpush.msra.mxu0 %v41
  %463 = vmatpush.msra.mxu0 %v39
  %464 = vmatpush.msra.mxu0 %v37
  %465 = vmatpush.msra.mxu0 %v35
  %466 = vmatpush.msra.mxu0 %v33
  %467 = vmatpush.msra.mxu0 %v31
  %468 = vmatmul.f32.gmra.mxu0 %v427
  %v469 = vpop.f32.mrf.mxu0
  %v470 = vadd.f32 %v417, %v469
  %471 = vdwg.mxu0
  %472 = vmatpush.msra.mxu0 %v93
  %473 = vmatpush.msra.mxu0 %v91
  %474 = vmatpush.msra.mxu0 %v89
  %475 = vmatpush.msra.mxu0 %v87
  %476 = vmatpush.msra.mxu0 %v85
  %477 = vmatpush.msra.mxu0 %v83
  %478 = vmatpush.msra.mxu0 %v81
  %479 = vmatpush.msra.mxu0 %v79
  %480 = vmatpush.msra.mxu0 %v77
  %481 = vmatpush.msra.mxu0 %v75
  %482 = vmatpush.msra.mxu0 %v73
  %483 = vmatpush.msra.mxu0 %v71
  %484 = vmatpush.msra.mxu0 %v69
  %485 = vmatpush.msra.mxu0 %v67
  %486 = vmatpush.msra.mxu0 %v65
  %487 = vmatpush.msra.mxu0 %v63
  %488 = vmatmul.f32.gmra.mxu0 %v428
  %v489 = vpop.f32.mrf.mxu0
  %v490 = vadd.f32 %v470, %v489
  %491 = vdwg.mxu0
  %492 = vmatpush.msra.mxu0 %v125
  %493 = vmatpush.msra.mxu0 %v123
  %494 = vmatpush.msra.mxu0 %v121
  %495 = vmatpush.msra.mxu0 %v119
  %496 = vmatpush.msra.mxu0 %v117
  %497 = vmatpush.msra.mxu0 %v115
  %498 = vmatpush.msra.mxu0 %v113
  %499 = vmatpush.msra.mxu0 %v111
  %500 = vmatpush.msra.mxu0 %v109
  %501 = vmatpush.msra.mxu0 %v107
  %502 = vmatpush.msra.mxu0 %v105
  %503 = vmatpush.msra.mxu0 %v103
  %504 = vmatpush.msra.mxu0 %v101
  %505 = vmatpush.msra.mxu0 %v99
  %506 = vmatpush.msra.mxu0 %v97
  %507 = vmatpush.msra.mxu0 %v95
  %508 = vmatmul.f32.gmra.mxu0 %v429
  %v509 = vpop.f32.mrf.mxu0
  %v510 = vadd.f32 %v490, %v509
  %511 = vdwg.mxu0
  %512 = vmatpush.msra.mxu0 %v157
  %513 = vmatpush.msra.mxu0 %v155
  %514 = vmatpush.msra.mxu0 %v153
  %515 = vmatpush.msra.mxu0 %v151
  %516 = vmatpush.msra.mxu0 %v149
  %517 = vmatpush.msra.mxu0 %v147
  %518 = vmatpush.msra.mxu0 %v145
  %519 = vmatpush.msra.mxu0 %v143
  %520 = vmatpush.msra.mxu0 %v141
  %521 = vmatpush.msra.mxu0 %v139
  %522 = vmatpush.msra.mxu0 %v137
  %523 = vmatpush.msra.mxu0 %v135
  %524 = vmatpush.msra.mxu0 %v133
  %525 = vmatpush.msra.mxu0 %v131
  %526 = vmatpush.msra.mxu0 %v129
  %527 = vmatpush.msra.mxu0 %v127
  %528 = vmatmul.f32.gmra.mxu0 %v430
  %v529 = vpop.f32.mrf.mxu0
  %v530 = vadd.f32 %v510, %v529
  %531 = vdwg.mxu0
  %532 = vmatpush.msra.mxu0 %v189
  %533 = vmatpush.msra.mxu0 %v187
  %534 = vmatpush.msra.mxu0 %v185
  %535 = vmatpush.msra.mxu0 %v183
  %536 = vmatpush.msra.mxu0 %v181
  %537 = vmatpush.msra.mxu0 %v179
  %538 = vmatpush.msra.mxu0 %v177
  %539 = vmatpush.msra.mxu0 %v175
  %540 = vmatpush.msra.mxu0 %v173
  %541 = vmatpush.msra.mxu0 %v171
  %542 = vmatpush.msra.mxu0 %v169
  %543 = vmatpush.msra.mxu0 %v167
  %544 = vmatpush.msra.mxu0 %v165
  %545 = vmatpush.msra.mxu0 %v163
  %546 = vmatpush.msra.mxu0 %v161
  %547 = vmatpush.msra.mxu0 %v159
  %548 = vmatmul.f32.gmra.mxu0 %v431
  %v549 = vpop.f32.mrf.mxu0
  %v550 = vadd.f32 %v530, %v549
  %551 = vdwg.mxu0
  %552 = vmatpush.msra.mxu0 %v221
  %553 = vmatpush.msra.mxu0 %v219
  %554 = vmatpush.msra.mxu0 %v217
  %555 = vmatpush.msra.mxu0 %v215
  %556 = vmatpush.msra.mxu0 %v213
  %557 = vmatpush.msra.mxu0 %v211
  %558 = vmatpush.msra.mxu0 %v209
  %559 = vmatpush.msra.mxu0 %v207
  %560 = vmatpush.msra.mxu0 %v205
  %561 = vmatpush.msra.mxu0 %v203
  %562 = vmatpush.msra.mxu0 %v201
  %563 = vmatpush.msra.mxu0 %v199
  %564 = vmatpush.msra.mxu0 %v197
  %565 = vmatpush.msra.mxu0 %v195
  %566 = vmatpush.msra.mxu0 %v193
  %567 = vmatpush.msra.mxu0 %v191
  %568 = vmatmul.f32.gmra.mxu0 %v432
  %v569 = vpop.f32.mrf.mxu0
  %v570 = vadd.f32 %v550, %v569
  %571 = vdwg.mxu0
  %572 = vmatpush.msra.mxu0 %v253
  %573 = vmatpush.msra.mxu0 %v251
  %574 = vmatpush.msra.mxu0 %v249
  %575 = vmatpush.msra.mxu0 %v247
  %576 = vmatpush.msra.mxu0 %v245
  %577 = vmatpush.msra.mxu0 %v243
  %578 = vmatpush.msra.mxu0 %v241
  %579 = vmatpush.msra.mxu0 %v239
  %580 = vmatpush.msra.mxu0 %v237
  %581 = vmatpush.msra.mxu0 %v235
  %582 = vmatpush.msra.mxu0 %v233
  %583 = vmatpush.msra.mxu0 %v231
  %584 = vmatpush.msra.mxu0 %v229
  %585 = vmatpush.msra.mxu0 %v227
  %586 = vmatpush.msra.mxu0 %v225
  %587 = vmatpush.msra.mxu0 %v223
  %588 = vmatmul.f32.gmra.mxu0 %v433
  %v589 = vpop.f32.mrf.mxu0
  %v590 = vadd.f32 %v570, %v589
  %591 = vdwg.mxu0
  %592 = vmatpush.msra.mxu0 %v285
  %593 = vmatpush.msra.mxu0 %v283
  %594 = vmatpush.msra.mxu0 %v281
  %595 = vmatpush.msra.mxu0 %v279
  %596 = vmatpush.msra.mxu0 %v277
  %597 = vmatpush.msra.mxu0 %v275
  %598 = vmatpush.msra.mxu0 %v273
  %599 = vmatpush.msra.mxu0 %v271
  %600 = vmatpush.msra.mxu0 %v269
  %601 = vmatpush.msra.mxu0 %v267
  %602 = vmatpush.msra.mxu0 %v265
  %603 = vmatpush.msra.mxu0 %v263
  %604 = vmatpush.msra.mxu0 %v261
  %605 = vmatpush.msra.mxu0 %v259
  %606 = vmatpush.msra.mxu0 %v257
  %607 = vmatpush.msra.mxu0 %v255
  %608 = vmatmul.f32.gmra.mxu0 %v434
  %v609 = vpop.f32.mrf.mxu0
  %v610 = vadd.f32 %v590, %v609
  %611 = vdwg.mxu0
  %612 = vmatpush.msra.mxu0 %v317
  %613 = vmatpush.msra.mxu0 %v315
  %614 = vmatpush.msra.mxu0 %v313
  %615 = vmatpush.msra.mxu0 %v311
  %616 = vmatpush.msra.mxu0 %v309
  %617 = vmatpush.msra.mxu0 %v307
  %618 = vmatpush.msra.mxu0 %v305
  %619 = vmatpush.msra.mxu0 %v303
  %620 = vmatpush.msra.mxu0 %v301
  %621 = vmatpush.msra.mxu0 %v299
  %622 = vmatpush.msra.mxu0 %v297
  %623 = vmatpush.msra.mxu0 %v295
  %624 = vmatpush.msra.mxu0 %v293
  %625 = vmatpush.msra.mxu0 %v291
  %626 = vmatpush.msra.mxu0 %v289
  %627 = vmatpush.msra.mxu0 %v287
  %628 = vmatmul.f32.gmra.mxu0 %v436
  %v629 = vpop.f32.mrf.mxu0
  %v630 = vadd.f32 %v610, %v629
  %631 = vdwg.mxu0
  %632 = vmatpush.msra.mxu0 %v349
  %633 = vmatpush.msra.mxu0 %v347
  %634 = vmatpush.msra.mxu0 %v345
  %635 = vmatpush.msra.mxu0 %v343
  %636 = vmatpush.msra.mxu0 %v341
  %637 = vmatpush.msra.mxu0 %v339
  %638 = vmatpush.msra.mxu0 %v337
  %639 = vmatpush.msra.mxu0 %v335
  %640 = vmatpush.msra.mxu0 %v333
  %641 = vmatpush.msra.mxu0 %v331
  %642 = vmatpush.msra.mxu0 %v329
  %643 = vmatpush.msra.mxu0 %v327
  %644 = vmatpush.msra.mxu0 %v325
  %645 = vmatpush.msra.mxu0 %v323
  %646 = vmatpush.msra.mxu0 %v321
  %647 = vmatpush.msra.mxu0 %v319
  %648 = vmatmul.f32.gmra.mxu0 %v437
  %v649 = vpop.f32.mrf.mxu0
  %v650 = vadd.f32 %v630, %v649
  %651 = vdwg.mxu0
  %652 = vmatpush.msra.mxu0 %v381
  %653 = vmatpush.msra.mxu0 %v379
  %654 = vmatpush.msra.mxu0 %v377
  %655 = vmatpush.msra.mxu0 %v375
  %656 = vmatpush.msra.mxu0 %v373
  %657 = vmatpush.msra.mxu0 %v371
  %658 = vmatpush.msra.mxu0 %v369
  %659 = vmatpush.msra.mxu0 %v367
  %660 = vmatpush.msra.mxu0 %v365
  %661 = vmatpush.msra.mxu0 %v363
  %662 = vmatpush.msra.mxu0 %v361
  %663 = vmatpush.msra.mxu0 %v359
  %664 = vmatpush.msra.mxu0 %v357
  %665 = vmatpush.msra.mxu0 %v355
  %666 = vmatpush.msra.mxu0 %v353
  %667 = vmatpush.msra.mxu0 %v351
  %668 = vmatmul.f32.gmra.mxu0 %v438
  %v669 = vpop.f32.mrf.mxu0
  %v670 = vadd.f32 %v650, %v669
  %671 = vdwg.mxu0
  %672 = vmatpush.msra.mxu0 %v413
  %673 = vmatpush.msra.mxu0 %v411
  %674 = vmatpush.msra.mxu0 %v409
  %675 = vmatpush.msra.mxu0 %v407
  %676 = vmatpush.msra.mxu0 %v405
  %677 = vmatpush.msra.mxu0 %v403
  %678 = vmatpush.msra.mxu0 %v401
  %679 = vmatpush.msra.mxu0 %v399
  %680 = vmatpush.msra.mxu0 %v397
  %681 = vmatpush.msra.mxu0 %v395
  %682 = vmatpush.msra.mxu0 %v393
  %683 = vmatpush.msra.mxu0 %v391
  %684 = vmatpush.msra.mxu0 %v389
  %685 = vmatpush.msra.mxu0 %v387
  %686 = vmatpush.msra.mxu0 %v385
  %687 = vmatpush.msra.mxu0 %v383
  %688 = vmatmul.f32.gmra.mxu0 %v439
  %v689 = vpop.f32.mrf.mxu0
  %v690 = vadd.f32 %v670, %v689
  %691 = vdwg.mxu0
  %692 = vmatpush.msra.mxu0 %v62
  %693 = vmatpush.msra.mxu0 %v60
  %694 = vmatpush.msra.mxu0 %v58
  %695 = vmatpush.msra.mxu0 %v56
  %696 = vmatpush.msra.mxu0 %v54
  %697 = vmatpush.msra.mxu0 %v52
  %698 = vmatpush.msra.mxu0 %v50
  %699 = vmatpush.msra.mxu0 %v48
  %700 = vmatpush.msra.mxu0 %v46
  %701 = vmatpush.msra.mxu0 %v44
  %702 = vmatpush.msra.mxu0 %v42
  %703 = vmatpush.msra.mxu0 %v40
  %704 = vmatpush.msra.mxu0 %v38
  %705 = vmatpush.msra.mxu0 %v36
  %706 = vmatpush.msra.mxu0 %v34
  %707 = vmatpush.msra.mxu0 %v32
  %708 = vmatmul.f32.gmra.mxu0 %v427
  %v709 = vpop.f32.mrf.mxu0
  %v710 = vadd.f32 %v418, %v709
  %711 = vdwg.mxu0
  %712 = vmatpush.msra.mxu0 %v94
  %713 = vmatpush.msra.mxu0 %v92
  %714 = vmatpush.msra.mxu0 %v90
  %715 = vmatpush.msra.mxu0 %v88
  %716 = vmatpush.msra.mxu0 %v86
  %717 = vmatpush.msra.mxu0 %v84
  %718 = vmatpush.msra.mxu0 %v82
  %719 = vmatpush.msra.mxu0 %v80
  %720 = vmatpush.msra.mxu0 %v78
  %721 = vmatpush.msra.mxu0 %v76
  %722 = vmatpush.msra.mxu0 %v74
  %723 = vmatpush.msra.mxu0 %v72
  %724 = vmatpush.msra.mxu0 %v70
  %725 = vmatpush.msra.mxu0 %v68
  %726 = vmatpush.msra.mxu0 %v66
  %727 = vmatpush.msra.mxu0 %v64
  %728 = vmatmul.f32.gmra.mxu0 %v428
  %v729 = vpop.f32.mrf.mxu0
  %v730 = vadd.f32 %v710, %v729
  %731 = vdwg.mxu0
  %732 = vmatpush.msra.mxu0 %v126
  %733 = vmatpush.msra.mxu0 %v124
  %734 = vmatpush.msra.mxu0 %v122
  %735 = vmatpush.msra.mxu0 %v120
  %736 = vmatpush.msra.mxu0 %v118
  %737 = vmatpush.msra.mxu0 %v116
  %738 = vmatpush.msra.mxu0 %v114
  %739 = vmatpush.msra.mxu0 %v112
  %740 = vmatpush.msra.mxu0 %v110
  %741 = vmatpush.msra.mxu0 %v108
  %742 = vmatpush.msra.mxu0 %v106
  %743 = vmatpush.msra.mxu0 %v104
  %744 = vmatpush.msra.mxu0 %v102
  %745 = vmatpush.msra.mxu0 %v100
  %746 = vmatpush.msra.mxu0 %v98
  %747 = vmatpush.msra.mxu0 %v96
  %748 = vmatmul.f32.gmra.mxu0 %v429
  %v749 = vpop.f32.mrf.mxu0
  %v750 = vadd.f32 %v730, %v749
  %751 = vdwg.mxu0
  %752 = vmatpush.msra.mxu0 %v158
  %753 = vmatpush.msra.mxu0 %v156
  %754 = vmatpush.msra.mxu0 %v154
  %755 = vmatpush.msra.mxu0 %v152
  %756 = vmatpush.msra.mxu0 %v150
  %757 = vmatpush.msra.mxu0 %v148
  %758 = vmatpush.msra.mxu0 %v146
  %759 = vmatpush.msra.mxu0 %v144
  %760 = vmatpush.msra.mxu0 %v142
  %761 = vmatpush.msra.mxu0 %v140
  %762 = vmatpush.msra.mxu0 %v138
  %763 = vmatpush.msra.mxu0 %v136
  %764 = vmatpush.msra.mxu0 %v134
  %765 = vmatpush.msra.mxu0 %v132
  %766 = vmatpush.msra.mxu0 %v130
  %767 = vmatpush.msra.mxu0 %v128
  %768 = vmatmul.f32.gmra.mxu0 %v430
  %v769 = vpop.f32.mrf.mxu0
  %v770 = vadd.f32 %v750, %v769
  %771 = vdwg.mxu0
  %772 = vmatpush.msra.mxu0 %v190
  %773 = vmatpush.msra.mxu0 %v188
  %774 = vmatpush.msra.mxu0 %v186
  %775 = vmatpush.msra.mxu0 %v184
  %776 = vmatpush.msra.mxu0 %v182
  %777 = vmatpush.msra.mxu0 %v180
  %778 = vmatpush.msra.mxu0 %v178
  %779 = vmatpush.msra.mxu0 %v176
  %780 = vmatpush.msra.mxu0 %v174
  %781 = vmatpush.msra.mxu0 %v172
  %782 = vmatpush.msra.mxu0 %v170
  %783 = vmatpush.msra.mxu0 %v168
  %784 = vmatpush.msra.mxu0 %v166
  %785 = vmatpush.msra.mxu0 %v164
  %786 = vmatpush.msra.mxu0 %v162
  %787 = vmatpush.msra.mxu0 %v160
  %788 = vmatmul.f32.gmra.mxu0 %v431
  %v789 = vpop.f32.mrf.mxu0
  %v790 = vadd.f32 %v770, %v789
  %791 = vdwg.mxu0
  %792 = vmatpush.msra.mxu0 %v222
  %793 = vmatpush.msra.mxu0 %v220
  %794 = vmatpush.msra.mxu0 %v218
  %795 = vmatpush.msra.mxu0 %v216
  %796 = vmatpush.msra.mxu0 %v214
  %797 = vmatpush.msra.mxu0 %v212
  %798 = vmatpush.msra.mxu0 %v210
  %799 = vmatpush.msra.mxu0 %v208
  %800 = vmatpush.msra.mxu0 %v206
  %801 = vmatpush.msra.mxu0 %v204
  %802 = vmatpush.msra.mxu0 %v202
  %803 = vmatpush.msra.mxu0 %v200
  %804 = vmatpush.msra.mxu0 %v198
  %805 = vmatpush.msra.mxu0 %v196
  %806 = vmatpush.msra.mxu0 %v194
  %807 = vmatpush.msra.mxu0 %v192
  %808 = vmatmul.f32.gmra.mxu0 %v432
  %v809 = vpop.f32.mrf.mxu0
  %v810 = vadd.f32 %v790, %v809
  %811 = vdwg.mxu0
  %812 = vmatpush.msra.mxu0 %v254
  %813 = vmatpush.msra.mxu0 %v252
  %814 = vmatpush.msra.mxu0 %v250
  %815 = vmatpush.msra.mxu0 %v248
  %816 = vmatpush.msra.mxu0 %v246
  %817 = vmatpush.msra.mxu0 %v244
  %818 = vmatpush.msra.mxu0 %v242
  %819 = vmatpush.msra.mxu0 %v240
  %820 = vmatpush.msra.mxu0 %v238
  %821 = vmatpush.msra.mxu0 %v236
  %822 = vmatpush.msra.mxu0 %v234
  %823 = vmatpush.msra.mxu0 %v232
  %824 = vmatpush.msra.mxu0 %v230
  %825 = vmatpush.msra.mxu0 %v228
  %826 = vmatpush.msra.mxu0 %v226
  %827 = vmatpush.msra.mxu0 %v224
  %828 = vmatmul.f32.gmra.mxu0 %v433
  %v829 = vpop.f32.mrf.mxu0
  %v830 = vadd.f32 %v810, %v829
  %831 = vdwg.mxu0
  %832 = vmatpush.msra.mxu0 %v286
  %833 = vmatpush.msra.mxu0 %v284
  %834 = vmatpush.msra.mxu0 %v282
  %835 = vmatpush.msra.mxu0 %v280
  %836 = vmatpush.msra.mxu0 %v278
  %837 = vmatpush.msra.mxu0 %v276
  %838 = vmatpush.msra.mxu0 %v274
  %839 = vmatpush.msra.mxu0 %v272
  %840 = vmatpush.msra.mxu0 %v270
  %841 = vmatpush.msra.mxu0 %v268
  %842 = vmatpush.msra.mxu0 %v266
  %843 = vmatpush.msra.mxu0 %v264
  %844 = vmatpush.msra.mxu0 %v262
  %845 = vmatpush.msra.mxu0 %v260
  %846 = vmatpush.msra.mxu0 %v258
  %847 = vmatpush.msra.mxu0 %v256
  %848 = vmatmul.f32.gmra.mxu0 %v434
  %v849 = vpop.f32.mrf.mxu0
  %v850 = vadd.f32 %v830, %v849
  %851 = vdwg.mxu0
  %852 = vmatpush.msra.mxu0 %v318
  %853 = vmatpush.msra.mxu0 %v316
  %854 = vmatpush.msra.mxu0 %v314
  %855 = vmatpush.msra.mxu0 %v312
  %856 = vmatpush.msra.mxu0 %v310
  %857 = vmatpush.msra.mxu0 %v308
  %858 = vmatpush.msra.mxu0 %v306
  %859 = vmatpush.msra.mxu0 %v304
  %860 = vmatpush.msra.mxu0 %v302
  %861 = vmatpush.msra.mxu0 %v300
  %862 = vmatpush.msra.mxu0 %v298
  %863 = vmatpush.msra.mxu0 %v296
  %864 = vmatpush.msra.mxu0 %v294
  %865 = vmatpush.msra.mxu0 %v292
  %866 = vmatpush.msra.mxu0 %v290
  %867 = vmatpush.msra.mxu0 %v288
  %868 = vmatmul.f32.gmra.mxu0 %v436
  %v869 = vpop.f32.mrf.mxu0
  %v870 = vadd.f32 %v850, %v869
  %871 = vdwg.mxu0
  %872 = vmatpush.msra.mxu0 %v350
  %873 = vmatpush.msra.mxu0 %v348
  %874 = vmatpush.msra.mxu0 %v346
  %875 = vmatpush.msra.mxu0 %v344
  %876 = vmatpush.msra.mxu0 %v342
  %877 = vmatpush.msra.mxu0 %v340
  %878 = vmatpush.msra.mxu0 %v338
  %879 = vmatpush.msra.mxu0 %v336
  %880 = vmatpush.msra.mxu0 %v334
  %881 = vmatpush.msra.mxu0 %v332
  %882 = vmatpush.msra.mxu0 %v330
  %883 = vmatpush.msra.mxu0 %v328
  %884 = vmatpush.msra.mxu0 %v326
  %885 = vmatpush.msra.mxu0 %v324
  %886 = vmatpush.msra.mxu0 %v322
  %887 = vmatpush.msra.mxu0 %v320
  %888 = vmatmul.f32.gmra.mxu0 %v437
  %v889 = vpop.f32.mrf.mxu0
  %v890 = vadd.f32 %v870, %v889
  %891 = vdwg.mxu0
  %892 = vmatpush.msra.mxu0 %v382
  %893 = vmatpush.msra.mxu0 %v380
  %894 = vmatpush.msra.mxu0 %v378
  %895 = vmatpush.msra.mxu0 %v376
  %896 = vmatpush.msra.mxu0 %v374
  %897 = vmatpush.msra.mxu0 %v372
  %898 = vmatpush.msra.mxu0 %v370
  %899 = vmatpush.msra.mxu0 %v368
  %900 = vmatpush.msra.mxu0 %v366
  %901 = vmatpush.msra.mxu0 %v364
  %902 = vmatpush.msra.mxu0 %v362
  %903 = vmatpush.msra.mxu0 %v360
  %904 = vmatpush.msra.mxu0 %v358
  %905 = vmatpush.msra.mxu0 %v356
  %906 = vmatpush.msra.mxu0 %v354
  %907 = vmatpush.msra.mxu0 %v352
  %908 = vmatmul.f32.gmra.mxu0 %v438
  %v909 = vpop.f32.mrf.mxu0
  %v910 = vadd.f32 %v890, %v909
  %911 = vdwg.mxu0
  %912 = vmatpush.msra.mxu0 %v414
  %913 = vmatpush.msra.mxu0 %v412
  %914 = vmatpush.msra.mxu0 %v410
  %915 = vmatpush.msra.mxu0 %v408
  %916 = vmatpush.msra.mxu0 %v406
  %917 = vmatpush.msra.mxu0 %v404
  %918 = vmatpush.msra.mxu0 %v402
  %919 = vmatpush.msra.mxu0 %v400
  %920 = vmatpush.msra.mxu0 %v398
  %921 = vmatpush.msra.mxu0 %v396
  %922 = vmatpush.msra.mxu0 %v394
  %923 = vmatpush.msra.mxu0 %v392
  %924 = vmatpush.msra.mxu0 %v390
  %925 = vmatpush.msra.mxu0 %v388
  %926 = vmatpush.msra.mxu0 %v386
  %927 = vmatpush.msra.mxu0 %v384
  %928 = vmatmul.f32.gmra.mxu0 %v439
  %v929 = vpop.f32.mrf.mxu0
  %v930 = vadd.f32 %v910, %v929
  %931 = vdwg.mxu0
  %v932 = vld [vmem:[%s3] sm:$0xff]
  %v933 = vld [vmem:[%s3 + $0x8] sm:$0xff]
  %v934 = vld [vmem:[%s3 + $0x10] sm:$0xff]
  %v935 = vld [vmem:[%s3 + $0x18] sm:$0xff]
  %v936 = vld [vmem:[%s3 + $0x20] sm:$0xff]
  %v937 = vld [vmem:[%s3 + $0x28] sm:$0xff]
  %v938 = vld [vmem:[%s3 + $0x30] sm:$0xff]
  %v939 = vld [vmem:[%s3 + $0x38] sm:$0xff]
  %v940 = vld [vmem:[%s3 + $0x40] sm:$0xff]
  %v941 = vld [vmem:[%s3 + $0x48] sm:$0xff]
  %v942 = vld [vmem:[%s3 + $0x50] sm:$0xff]
  %v943 = vld [vmem:[%s3 + $0x58] sm:$0xff]
  %v944 = vld [vmem:[%s3 + $0x60] sm:$0xff]
  %v945 = vld [vmem:[%s3 + $0x68] sm:$0xff]
  %v946 = vld [vmem:[%s3 + $0x70] sm:$0xff]
  %v947 = vld [vmem:[%s3 + $0x78] sm:$0xff]
  %v948 = vld [vmem:[%s3 + $0x80] sm:$0xff]
  %v949 = vld [vmem:[%s3 + $0x88] sm:$0xff]
  %v950 = vld [vmem:[%s3 + $0x90] sm:$0xff]
  %v951 = vld [vmem:[%s3 + $0x98] sm:$0xff]
  %v952 = vld [vmem:[%s3 + $0xa0] sm:$0xff]
  %v953 = vld [vmem:[%s3 + $0xa8] sm:$0xff]
  %v954 = vld [vmem:[%s3 + $0xb0] sm:$0xff]
  %v955 = vld [vmem:[%s3 + $0xb8] sm:$0xff]
  %v956 = vld [vmem:[%s3 + $0xc0] sm:$0xff]
  %v957 = vld [vmem:[%s3 + $0xc8] sm:$0xff]
  %v958 = vld [vmem:[%s3 + $0xd0] sm:$0xff]
  %v959 = vld [vmem:[%s3 + $0xd8] sm:$0xff]
  %v960 = vld [vmem:[%s3 + $0xe0] sm:$0xff]
  %v961 = vld [vmem:[%s3 + $0xe8] sm:$0xff]
  %v962 = vld [vmem:[%s3 + $0xf0] sm:$0xff]
  %v963 = vld [vmem:[%s3 + $0xf8] sm:$0xff]
  %v964 = vld [vmem:[%s4] sm:$0x1]
  %v966 = vperm.slane %v964, 0
  %968 = vmatpush.msra.mxu0 %v947
  %969 = vmatpush.msra.mxu0 %v946
  %970 = vmatpush.msra.mxu0 %v945
  %971 = vmatpush.msra.mxu0 %v944
  %972 = vmatpush.msra.mxu0 %v943
  %973 = vmatpush.msra.mxu0 %v942
  %974 = vmatpush.msra.mxu0 %v941
  %975 = vmatpush.msra.mxu0 %v940
  %976 = vmatpush.msra.mxu0 %v939
  %977 = vmatpush.msra.mxu0 %v938
  %978 = vmatpush.msra.mxu0 %v937
  %979 = vmatpush.msra.mxu0 %v936
  %980 = vmatpush.msra.mxu0 %v935
  %981 = vmatpush.msra.mxu0 %v934
  %982 = vmatpush.msra.mxu0 %v933
  %983 = vmatpush.msra.mxu0 %v932
  %984 = vmatmul.f32.gmra.mxu0 %v690
  %v985 = vpop.f32.mrf.mxu0
  %v986 = vadd.f32 %v966, %v985
  %987 = vdwg.mxu0
  %988 = vmatpush.msra.mxu0 %v963
  %989 = vmatpush.msra.mxu0 %v962
  %990 = vmatpush.msra.mxu0 %v961
  %991 = vmatpush.msra.mxu0 %v960
  %992 = vmatpush.msra.mxu0 %v959
  %993 = vmatpush.msra.mxu0 %v958
  %994 = vmatpush.msra.mxu0 %v957
  %995 = vmatpush.msra.mxu0 %v956
  %996 = vmatpush.msra.mxu0 %v955
  %997 = vmatpush.msra.mxu0 %v954
  %998 = vmatpush.msra.mxu0 %v953
  %999 = vmatpush.msra.mxu0 %v952
  %1000 = vmatpush.msra.mxu0 %v951
  %1001 = vmatpush.msra.mxu0 %v950
  %1002 = vmatpush.msra.mxu0 %v949
  %1003 = vmatpush.msra.mxu0 %v948
  %1004 = vmatmul.f32.gmra.mxu0 %v930
  %v1005 = vpop.f32.mrf.mxu0
  %v1006 = vadd.f32 %v986, %v1005
  %1007 = vdwg.mxu0
  %v1008 = vld [vmem:[%s5] sm:$0xff]
  %v1009 = vld [vmem:[%s5 + $0x8] sm:$0xff]
  %v1010 = vld [vmem:[%s5 + $0x10] sm:$0xff]
  %v1011 = vld [vmem:[%s5 + $0x18] sm:$0xff]
  %v1012 = vld [vmem:[%s5 + $0x20] sm:$0xff]
  %v1013 = vld [vmem:[%s5 + $0x28] sm:$0xff]
  %v1014 = vld [vmem:[%s5 + $0x30] sm:$0xff]
  %v1015 = vld [vmem:[%s5 + $0x38] sm:$0xff]
  %v1016 = vld [vmem:[#allocation2] sm:$0x1]
  %v1018 = vperm.slane %v1016, 0
  %vm1020 = vcmask 523264
  %v1022 = vsel %vm1020, %v1006, 0
  %1024 = vmatpush.msra.mxu0 0.0
  %1025 = vmatpush.msra.mxu0 0.0
  %1026 = vmatpush.msra.mxu0 0.0
  %1027 = vmatpush.msra.mxu0 0.0
  %1028 = vmatpush.msra.mxu0 0.0
  %1029 = vmatpush.msra.mxu0 0.0
  %1030 = vmatpush.msra.mxu0 0.0
  %1031 = vmatpush.msra.mxu0 0.0
  %1032 = vmatpush.msra.mxu0 %v1015
  %1033 = vmatpush.msra.mxu0 %v1014
  %1034 = vmatpush.msra.mxu0 %v1013
  %1035 = vmatpush.msra.mxu0 %v1012
  %1036 = vmatpush.msra.mxu0 %v1011
  %1037 = vmatpush.msra.mxu0 %v1010
  %1038 = vmatpush.msra.mxu0 %v1009
  %1039 = vmatpush.msra.mxu0 %v1008
  %1040 = vmatmul.f32.gmra.mxu0 %v1022
  %v1041 = vpop.f32.mrf.mxu0
  %v1042 = vadd.f32 %v1018, %v1041
  %1043 = vdwg.mxu0
  %1045 = vset.pattern.permute.xlu0 0
  %1046 = vperm.xlu0 %1045, %v1042
  %v1047 = vpop.permute.xlu0 %1046
  %1049 = vst [vmem:[%s7] sm:$0x3] %v1047
  // Predicated region
  $region30: #{sag_forward.7} parent=0 // pred_check
    _
  $region31: #{sag_forward.7} parent=0 // pred_check_branch
    %1051 = sbr.rel (0) target = $region33
  $region32: #{sag_forward.7} parent=0 // pred_region
    _
  $region33: #{sag_forward.7} parent=0 // pred_fallthru
    _
  // Predicated region
  $region34: #{sag_forward.7} parent=0 // pred_check
    _
  $region35: #{sag_forward.7} parent=0 // pred_check_branch
    %1053 = sbr.rel (0) target = $region37
  $region36: #{sag_forward.7} parent=0 // pred_region
    _
  $region37: #{sag_forward.7} parent=0 // pred_fallthru
    _

</llo_original>
